<compile_context>
chip_gen: v7x
topology: tpu7x:2x2x1
jax: 0.10.0
libtpu: 0.0.40
codegen_flags: <defaults>
</compile_context>

<pallas_src>
import math
from functools import partial

import jax
import jax.numpy as jnp
from jax import lax
from jax.experimental import pallas as pl
from jax.experimental.pallas import tpu as pltpu


# ----------------------------- Pallas kernel --------------------------------

def _flash_single_head_kernel(xq_ref, xkv_ref, wf_ref, bf_ref, gamma_ref, beta_ref,
                              bias_ref, o_ref,
                              q_scr, m_scr, l_scr, acc_scr, kv_scr,
                              *, dqk, use_kv_cache, bias_resident, bf16_softmax):
    qi = pl.program_id(1)
    ki = pl.program_id(2)
    nk = pl.num_programs(2)

    def project(x_tile):
        # fused qk|v projection + SiLU (f32 MXU accumulation)
        p = lax.dot_general(x_tile, wf_ref[...], (((1,), (0,)), ((), ())),
                            preferred_element_type=jnp.float32) + bf_ref[...]
        return p * jax.nn.sigmoid(p)

    @pl.when(ki == 0)
    def _init():
        m_scr[...] = jnp.full_like(m_scr, -jnp.inf)
        l_scr[...] = jnp.zeros_like(l_scr)
        acc_scr[...] = jnp.zeros_like(acc_scr)
        pq = project(xq_ref[0])                                      # (t, dqk+dv)
        # dim**-0.5 similarity scale is pre-folded into gamma/beta row 0 host-side.
        q = pq[:, :dqk] * gamma_ref[0:1, :] + beta_ref[0:1, :]
        q_scr[...] = q.astype(q_scr.dtype)

    if use_kv_cache:
        # project each kv tile exactly once (qi == 0 pass); reuse from VMEM afterwards
        @pl.when(qi == 0)
        def _fill_cache():
            kv_scr[ki] = project(xkv_ref[0]).astype(kv_scr.dtype)
        pkv = kv_scr[ki]                                             # (t, dqk+dv) bf16
    else:
        pkv = project(xkv_ref[0])                                    # f32

    k = (pkv[:, :dqk] * gamma_ref[1:2, :] + beta_ref[1:2, :]).astype(jnp.bfloat16)
    v = pkv[:, dqk:].astype(jnp.bfloat16)

    if bias_resident:
        bias_tile = bias_ref[ki - qi + (nk - 1)]                     # (t, t) bf16, VMEM-resident
    else:
        bias_tile = bias_ref[0]                                      # streamed (1, t, t) block

    # sim tile: contract last dims of q and k directly (no transposed copy of k).
    s = lax.dot_general(q_scr[...], k, (((1,), (1,)), ((), ())),
                        preferred_element_type=jnp.float32)
    s = s + bias_tile.astype(jnp.float32)

    # online softmax update (m / l / acc kept in f32)
    m_prev = m_scr[...]
    m_new = jnp.maximum(m_prev, jnp.max(s, axis=-1, keepdims=True))
    alpha = jnp.exp(m_prev - m_new)
    sm = s - m_new
    if bf16_softmax:
        p_mm = jnp.exp(sm.astype(jnp.bfloat16))                      # bf16 EUP path (v6e/v7x)
        p_sum = jnp.sum(p_mm.astype(jnp.float32), axis=-1, keepdims=True)
    else:
        p_f32 = jnp.exp(sm)                                          # f32 path (v5e and older)
        p_sum = jnp.sum(p_f32, axis=-1, keepdims=True)
        p_mm = p_f32.astype(jnp.bfloat16)
    l_scr[...] = alpha * l_scr[...] + p_sum
    acc_scr[...] = alpha * acc_scr[...] + lax.dot_general(
        p_mm, v, (((1,), (0,)), ((), ())), preferred_element_type=jnp.float32)
    m_scr[...] = m_new

    @pl.when(ki == nk - 1)
    def _finalize():
        # approx reciprocal is fine at bf16/2e-2 level tolerances; use approx=False
        # if tighter f32 output accuracy is ever required.
        inv_l = pl.reciprocal(l_scr[...], approx=True)
        o_ref[0] = (acc_scr[...] * inv_l).astype(o_ref.dtype)


# ------------------------------ host helpers ---------------------------------

def _tpu_vmem_capacity_bytes():
    try:
        info = pltpu.get_tpu_info()
        return int(getattr(info, "vmem_capacity_bytes", 64 * 1024 * 1024))
    except Exception:
        return 64 * 1024 * 1024          # conservative v7x floor


def _default_bf16_softmax():
    # bf16 EUP (exp) path only pays off on v6e / v7x; keep f32 on v5e and older.
    try:
        kind = jax.devices()[0].device_kind.lower()
    except Exception:
        return False
    return any(tag in kind for tag in ("v6", "v7", "7x"))


def single_headed_attention(x, wqk, bqk, gamma, beta, wv, bv, rel_strip,
                            *, block=256, bf16_softmax=None):
    """MEGA single-head attention forward.  x: (B, N, D) -> (B, N, dim_value).

    rel_strip: (2N-1,) T5 relative-position bias values; rel_strip[k] is the bias for
    relative position j - i = k - (N - 1), already multiplied by dim_qk**0.5.
    Non-causal, softmax attention (module defaults).
    """
    B, N, D = x.shape
    dqk = wqk.shape[1]
    dv = wv.shape[1]
    dtot = dqk + dv
    out_dtype = x.dtype

    t = min(block, N)
    assert N % t == 0, "sequence length must be divisible by the tile size"
    assert D % 128 == 0 and dqk % 128 == 0 and dv % 128 == 0, (
        "dim / dim_qk / dim_value must be multiples of 128 (lane-dense layout)")
    assert rel_strip.shape == (2 * N - 1,)
    nb = N // t

    if bf16_softmax is None:
        bf16_softmax = _default_bf16_softmax()

    # Fold the dim**-0.5 similarity scale into the q row of OffsetScale (host side).
    scale = float(D) ** -0.5
    gamma_f = jnp.concatenate([gamma[0:1] * scale, gamma[1:2]], axis=0).astype(jnp.float32)
    beta_f = jnp.concatenate([beta[0:1] * scale, beta[1:2]], axis=0).astype(jnp.float32)

    # Fuse the qk / v projections into a single matmul.
    wf = jnp.concatenate([wqk, wv], axis=1).astype(jnp.bfloat16)     # (D, dqk+dv)
    bf = jnp.concatenate([bqk, bv], axis=1).astype(jnp.float32)      # (1, dqk+dv)
    x_bf = x.astype(jnp.bfloat16)

    # Toeplitz rel-pos bias: only the 2*nb-1 distinct (t, t) diagonal-offset tiles, bf16.
    m_i = jnp.arange(2 * nb - 1, dtype=jnp.int32)[:, None, None]
    a_i = jnp.arange(t, dtype=jnp.int32)[None, :, None]
    b_i = jnp.arange(t, dtype=jnp.int32)[None, None, :]
    bias_tiles = rel_strip[(m_i - (nb - 1)) * t + b_i - a_i + (N - 1)]
    bias_tiles = bias_tiles.astype(jnp.bfloat16)                     # (2nb-1, t, t)

    # ---- VMEM budgeting (v7x: 64 MiB/TC vs 128 MiB on v5e/v6e) ----
    out_isz = jnp.dtype(out_dtype).itemsize
    dbl = 2  # double-buffered pipeline blocks
    base = (dbl * (2 * t * D * 2                                     # xq + xkv blocks
                   + D * dtot * 2 + dtot * 4 + 2 * (2 * dqk * 4)     # weights
                   + t * dv * out_isz)                               # output block
            + t * dqk * 2 + 2 * t * 4 + t * dv * 4)                  # q/m/l/acc scratch
    kv_cache_bytes = nb * t * dtot * 2
    bias_res_bytes = dbl * (2 * nb - 1) * t * t * 2
    bias_stream_bytes = dbl * t * t * 2
    budget = _tpu_vmem_capacity_bytes() // 2

    use_kv_cache = base + bias_stream_bytes + kv_cache_bytes <= budget
    cache_bytes = kv_cache_bytes if use_kv_cache else 8 * 128 * 2
    bias_resident = base + cache_bytes + bias_res_bytes <= budget
    needed = base + cache_bytes + (bias_res_bytes if bias_resident else bias_stream_bytes)
    vmem_limit = int(min(max(needed * 3 // 2, 16 * 1024 * 1024), 100 * 1024 * 1024))

    if use_kv_cache:
        # kv tiles projected once on the qi == 0 pass; afterwards collapse the x kv-row
        # stream to block 0 (constant block index -> no re-fetch).
        xkv_map = lambda b, q_i, k_i: (b, jnp.where(q_i == 0, k_i, 0), 0)
        dims = ("parallel", "arbitrary", "arbitrary")   # qi must run sequentially per core
        kv_scratch = pltpu.VMEM((nb, t, dtot), jnp.bfloat16)
    else:
        # TODO(synk): for very long N (cache does not fit VMEM) a pre-projected K/V in
        # HBM would be better than recomputing; fallback keeps the original recompute.
        xkv_map = lambda b, q_i, k_i: (b, k_i, 0)
        dims = ("parallel", "parallel", "arbitrary")
        kv_scratch = pltpu.VMEM((8, 128), jnp.bfloat16)              # unused dummy

    if bias_resident:
        bias_spec = pl.BlockSpec((2 * nb - 1, t, t), lambda b, q_i, k_i: (0, 0, 0))
    else:
        bias_spec = pl.BlockSpec((1, t, t), lambda b, q_i, k_i: (k_i - q_i + nb - 1, 0, 0))

    kernel = partial(_flash_single_head_kernel, dqk=dqk, use_kv_cache=use_kv_cache,
                     bias_resident=bias_resident, bf16_softmax=bf16_softmax)

    # advisory cost estimate (post-restructure)
    proj_passes = 2 if use_kv_cache else (1 + nb)
    flops = (2 * B * N * D * dtot * proj_passes        # projections
             + 2 * B * N * N * dqk                     # q @ k^T
             + 2 * B * N * N * dv)                     # p @ v
    transcendentals = (B * N * N + B * N * nb + B * N
                       + B * N * dtot * proj_passes)
    bias_bytes = (2 * nb - 1) * t * t * 2 if bias_resident else B * N * N * 2
    bytes_accessed = (2 * B * N * D * 2 + D * dtot * 2 + dtot * 4 + 4 * dqk * 4
                      + bias_bytes + B * N * dv * out_isz)

    return pl.pallas_call(
        kernel,
        out_shape=jax.ShapeDtypeStruct((B, N, dv), out_dtype),
        grid_spec=pltpu.PrefetchScalarGridSpec(
            num_scalar_prefetch=0,
            grid=(B, N // t, N // t),
            in_specs=[
                pl.BlockSpec((1, t, D), lambda b, q_i, k_i: (b, q_i, 0)),   # x (q rows)
                pl.BlockSpec((1, t, D), xkv_map),                           # x (kv rows)
                pl.BlockSpec((D, dtot), lambda b, q_i, k_i: (0, 0)),        # fused W
                pl.BlockSpec((1, dtot), lambda b, q_i, k_i: (0, 0)),        # fused bias
                pl.BlockSpec((2, dqk), lambda b, q_i, k_i: (0, 0)),         # gamma (scale folded)
                pl.BlockSpec((2, dqk), lambda b, q_i, k_i: (0, 0)),         # beta  (scale folded)
                bias_spec,                                                  # rel-pos bias tiles
            ],
            out_specs=pl.BlockSpec((1, t, dv), lambda b, q_i, k_i: (b, q_i, 0)),
            scratch_shapes=[
                pltpu.VMEM((t, dqk), jnp.bfloat16),   # resident q tile
                pltpu.VMEM((t, 1), jnp.float32),      # running max  m
                pltpu.VMEM((t, 1), jnp.float32),      # running sum  l
                pltpu.VMEM((t, dv), jnp.float32),     # running acc
                kv_scratch,                           # projected kv cache (or dummy)
            ],
        ),
        compiler_params=pltpu.CompilerParams(
            dimension_semantics=dims,
            vmem_limit_bytes=vmem_limit,
        ),
        cost_estimate=pl.CostEstimate(
            flops=flops, transcendentals=transcendentals, bytes_accessed=bytes_accessed),
    )(x_bf, x_bf, wf, bf, gamma_f, beta_f, bias_tiles)


# ---------------------- T5 relative position bias (host glue) ----------------

def t5_rel_pos_strip(seq_len, emb_weight, *, scale, num_buckets=32, max_distance=128):
    """Non-causal T5RelativePositionBias reduced to a (2*seq_len-1,) strip.
    strip[k] = bias for relative position j - i = k - (seq_len - 1)."""
    rel = jnp.arange(-(seq_len - 1), seq_len, dtype=jnp.int32)       # j - i
    n = -rel
    nb = num_buckets // 2
    ret = (n < 0).astype(jnp.int32) * nb
    n = jnp.abs(n)
    max_exact = nb // 2
    is_small = n < max_exact
    val_if_large = max_exact + (
        jnp.log(jnp.maximum(n, 1).astype(jnp.float32) / max_exact)
        / math.log(max_distance / max_exact) * (nb - max_exact)).astype(jnp.int32)
    val_if_large = jnp.minimum(val_if_large, nb - 1)
    bucket = ret + jnp.where(is_small, n, val_if_large)              # (2N-1,) int32
    return emb_weight[bucket, 0] * scale


# ---------------------------- pure-JAX reference -----------------------------

def reference(x, wqk, bqk, gamma, beta, wv, bv, rel_bias):
    D = x.shape[-1]
    qk = x @ wqk + bqk[0]
    qk = qk * jax.nn.sigmoid(qk)
    v = x @ wv + bv[0]
    v = v * jax.nn.sigmoid(v)
    q = qk * gamma[0] + beta[0]
    k = qk * gamma[1] + beta[1]
    sim = jnp.einsum('bid,bjd->bij', q, k) * (D ** -0.5) + rel_bias
    attn = jax.nn.softmax(sim, axis=-1)
    return jnp.einsum('bij,bjd->bid', attn, v)


# ----------------------------------- main ------------------------------------

if __name__ == "__main__":
    # Small but MXU/lane-friendly shapes; N=512 with block=256 -> grid (2, 2, 2),
    # which exercises the kv-cache reuse (qi > 0) and the multi-step online softmax.
    B, N, D = 2, 512, 128
    DIM_QK, DIM_V = 128, 128
    NUM_BUCKETS, MAX_DIST = 32, 128

    key = jax.random.PRNGKey(0)
    ks = jax.random.split(key, 8)

    x = jax.random.normal(ks[0], (B, N, D), dtype=jnp.float32)

    # Deterministic parameter init (shapes follow the module's __init__).
    wqk = jax.random.normal(ks[1], (D, DIM_QK), dtype=jnp.float32) * 0.1
    bqk = jax.random.normal(ks[2], (1, DIM_QK), dtype=jnp.float32) * 0.1
    wv = jax.random.normal(ks[3], (D, DIM_V), dtype=jnp.float32) * 0.1
    bv = jax.random.normal(ks[4], (1, DIM_V), dtype=jnp.float32) * 0.1
    # OffsetScale: gamma ~ normal(std=0.02), beta zeros (module init).
    gamma = jax.random.normal(ks[5], (2, DIM_QK), dtype=jnp.float32) * 0.02
    beta = jnp.zeros((2, DIM_QK), dtype=jnp.float32)
    # T5RelativePositionBias embedding table (num_buckets, 1); module uses scale=dim_qk**0.5.
    rel_emb = jax.random.normal(ks[6], (NUM_BUCKETS, 1), dtype=jnp.float32)

    strip = t5_rel_pos_strip(N, rel_emb, scale=DIM_QK ** 0.5,
                             num_buckets=NUM_BUCKETS, max_distance=MAX_DIST)

    out = single_headed_attention(x, wqk, bqk, gamma, beta, wv, bv, strip, block=256)
    out = jax.block_until_ready(out)

    pos = jnp.arange(N, dtype=jnp.int32)
    rel_bias = strip[(pos[None, :] - pos[:, None]) + (N - 1)]        # full (N, N) for ref
    ref = reference(x, wqk, bqk, gamma, beta, wv, bv, rel_bias)

    assert out.shape == (B, N, DIM_V)
    # Kernel uses bf16 MXU operands, bf16 bias tiles and a bf16 kv cache (f32
    # accumulation), so compare against the f32 reference at bf16-level tolerance.
    assert jnp.allclose(out, ref, rtol=2e-2, atol=2e-2), (
        f"mismatch vs reference (max abs err {float(jnp.max(jnp.abs(out - ref)))})")

    # TODO(synk): causal masking and the LaplacianAttnFn variant (non-default module
    # config) are not implemented in the kernel; defaults (causal=False, softmax) only.
    print("KERNEL_OK")
</pallas_src>

<mosaic_0001>
module attributes {stable_mosaic.version = 11 : i64} {
  func.func @_flash_single_head_kernel(%arg0: i32, %arg1: i32, %arg2: i32, %arg3: memref<1x256x128xbf16, #tpu.memory_space<vmem>>, %arg4: memref<1x256x128xbf16, #tpu.memory_space<vmem>>, %arg5: memref<128x256xbf16, #tpu.memory_space<vmem>>, %arg6: memref<1x256xf32, #tpu.memory_space<vmem>>, %arg7: memref<2x128xf32, #tpu.memory_space<vmem>>, %arg8: memref<2x128xf32, #tpu.memory_space<vmem>>, %arg9: memref<3x256x256xbf16, #tpu.memory_space<vmem>>, %arg10: memref<1x256x128xf32, #tpu.memory_space<vmem>>, %arg11: memref<256x128xbf16, #tpu.memory_space<vmem>>, %arg12: memref<256x1xf32, #tpu.memory_space<vmem>>, %arg13: memref<256x1xf32, #tpu.memory_space<vmem>>, %arg14: memref<256x128xf32, #tpu.memory_space<vmem>>, %arg15: memref<2x256x256xbf16, #tpu.memory_space<vmem>>) attributes {dimension_semantics = [#tpu.dimension_semantics<parallel>, #tpu.dimension_semantics<arbitrary>, #tpu.dimension_semantics<arbitrary>], iteration_bounds = array<i64: 2, 2, 2>, scalar_prefetch = 0 : i64, scratch_operands = 5 : i64, tpu.core_type = #tpu.core_type<tc>, window_params = [{transform_indices = @transform_0, window_bounds = array<i64: 1, 256, 128>}, {transform_indices = @transform_1, window_bounds = array<i64: 1, 256, 128>}, {pipeline_mode = #tpu.pipeline_mode<synchronous>, transform_indices = @transform_2, window_bounds = array<i64: 128, 256>}, {pipeline_mode = #tpu.pipeline_mode<synchronous>, transform_indices = @transform_3, window_bounds = array<i64: 1, 256>}, {pipeline_mode = #tpu.pipeline_mode<synchronous>, transform_indices = @transform_4, window_bounds = array<i64: 2, 128>}, {pipeline_mode = #tpu.pipeline_mode<synchronous>, transform_indices = @transform_5, window_bounds = array<i64: 2, 128>}, {pipeline_mode = #tpu.pipeline_mode<synchronous>, transform_indices = @transform_6, window_bounds = array<i64: 3, 256, 256>}, {transform_indices = @transform_7, window_bounds = array<i64: 1, 256, 128>}]} {
    %c0_i32 = arith.constant 0 : i32
    %0 = arith.cmpi eq, %arg2, %c0_i32 : i32
    %1 = arith.extui %0 : i1 to i32
    %c0_i32_0 = arith.constant 0 : i32
    %2 = arith.cmpi ne, %1, %c0_i32_0 : i32
    scf.if %2 {
      %cst_28 = arith.constant 0xFF800000 : f32
      %54 = vector.broadcast %cst_28 : f32 to vector<256x1xf32>
      %c0_29 = arith.constant 0 : index
      %c0_30 = arith.constant 0 : index
      %55 = vector.load %arg12[%c0_29, %c0_30] : memref<256x1xf32, #tpu.memory_space<vmem>>, vector<256x1xf32>
      tpu.vector_store %arg12[%c0_29, %c0_30], %54 {strides = array<i32>} : memref<256x1xf32, #tpu.memory_space<vmem>>, vector<256x1xf32>,
      %cst_31 = arith.constant 0.000000e+00 : f32
      %56 = vector.broadcast %cst_31 : f32 to vector<256x1xf32>
      %c0_32 = arith.constant 0 : index
      %c0_33 = arith.constant 0 : index
      %57 = vector.load %arg13[%c0_32, %c0_33] : memref<256x1xf32, #tpu.memory_space<vmem>>, vector<256x1xf32>
      tpu.vector_store %arg13[%c0_32, %c0_33], %56 {strides = array<i32>} : memref<256x1xf32, #tpu.memory_space<vmem>>, vector<256x1xf32>,
      %cst_34 = arith.constant 0.000000e+00 : f32
      %58 = vector.broadcast %cst_34 : f32 to vector<256x128xf32>
      %c0_35 = arith.constant 0 : index
      %c0_36 = arith.constant 0 : index
      %59 = vector.load %arg14[%c0_35, %c0_36] : memref<256x128xf32, #tpu.memory_space<vmem>>, vector<256x128xf32>
      tpu.vector_store %arg14[%c0_35, %c0_36], %58 {strides = array<i32>} : memref<256x128xf32, #tpu.memory_space<vmem>>, vector<256x128xf32>,
      %c0_37 = arith.constant 0 : index
      %c0_38 = arith.constant 0 : index
      %c0_39 = arith.constant 0 : index
      %60 = vector.load %arg3[%c0_37, %c0_38, %c0_39] : memref<1x256x128xbf16, #tpu.memory_space<vmem>>, vector<1x256x128xbf16>
      %61 = vector.shape_cast %60 : vector<1x256x128xbf16> to vector<256x128xbf16>
      %c0_40 = arith.constant 0 : index
      %c0_41 = arith.constant 0 : index
      %62 = vector.load %arg5[%c0_40, %c0_41] : memref<128x256xbf16, #tpu.memory_space<vmem>>, vector<128x256xbf16>
      %cst_42 = arith.constant dense<0.000000e+00> : vector<256x256xf32>
      %63 = tpu.matmul %61, %62, %cst_42 {dimension_numbers = #tpu.dot_dimension_numbers<[1], [0], [0], [1], [0, 0, 1, 1], [], []>} : vector<256x128xbf16>, vector<128x256xbf16>, vector<256x256xf32> -> vector<256x256xf32>
      %c0_43 = arith.constant 0 : index
      %c0_44 = arith.constant 0 : index
      %64 = vector.load %arg6[%c0_43, %c0_44] : memref<1x256xf32, #tpu.memory_space<vmem>>, vector<1x256xf32>
      %65 = vector.broadcast %64 : vector<1x256xf32> to vector<256x256xf32>
      %66 = arith.addf %63, %65 : vector<256x256xf32>
      %67 = arith.negf %66 : vector<256x256xf32>
      %68 = math.exp %67 : vector<256x256xf32>
      %cst_45 = arith.constant 1.000000e+00 : f32
      %69 = vector.broadcast %cst_45 : f32 to vector<256x256xf32>
      %70 = arith.addf %69, %68 : vector<256x256xf32>
      %71 = arith.divf %69, %70 : vector<256x256xf32>
      %72 = arith.mulf %66, %71 : vector<256x256xf32>
      %73 = vector.extract_strided_slice %72 {offsets = [0, 0], sizes = [256, 128], strides = [1, 1]} : vector<256x256xf32> to vector<256x128xf32>
      %c0_46 = arith.constant 0 : index
      %c0_47 = arith.constant 0 : index
      %74 = vector.load %arg7[%c0_46, %c0_47] : memref<2x128xf32, #tpu.memory_space<vmem>>, vector<1x128xf32>
      %75 = vector.broadcast %74 : vector<1x128xf32> to vector<256x128xf32>
      %76 = arith.mulf %73, %75 : vector<256x128xf32>
      %c0_48 = arith.constant 0 : index
      %c0_49 = arith.constant 0 : index
      %77 = vector.load %arg8[%c0_48, %c0_49] : memref<2x128xf32, #tpu.memory_space<vmem>>, vector<1x128xf32>
      %78 = vector.broadcast %77 : vector<1x128xf32> to vector<256x128xf32>
      %79 = arith.addf %76, %78 : vector<256x128xf32>
      %80 = arith.truncf %79 : vector<256x128xf32> to vector<256x128xbf16>
      %c0_50 = arith.constant 0 : index
      %c0_51 = arith.constant 0 : index
      %81 = vector.load %arg11[%c0_50, %c0_51] : memref<256x128xbf16, #tpu.memory_space<vmem>>, vector<256x128xbf16>
      tpu.vector_store %arg11[%c0_50, %c0_51], %80 {strides = array<i32>} : memref<256x128xbf16, #tpu.memory_space<vmem>>, vector<256x128xbf16>,
    } else {
    }
    %c0_i32_1 = arith.constant 0 : i32
    %3 = arith.cmpi eq, %arg1, %c0_i32_1 : i32
    %4 = arith.extui %3 : i1 to i32
    %c0_i32_2 = arith.constant 0 : i32
    %5 = arith.cmpi ne, %4, %c0_i32_2 : i32
    scf.if %5 {
      %c0_28 = arith.constant 0 : index
      %c0_29 = arith.constant 0 : index
      %c0_30 = arith.constant 0 : index
      %54 = vector.load %arg4[%c0_28, %c0_29, %c0_30] : memref<1x256x128xbf16, #tpu.memory_space<vmem>>, vector<1x256x128xbf16>
      %55 = vector.shape_cast %54 : vector<1x256x128xbf16> to vector<256x128xbf16>
      %c0_31 = arith.constant 0 : index
      %c0_32 = arith.constant 0 : index
      %56 = vector.load %arg5[%c0_31, %c0_32] : memref<128x256xbf16, #tpu.memory_space<vmem>>, vector<128x256xbf16>
      %cst_33 = arith.constant dense<0.000000e+00> : vector<256x256xf32>
      %57 = tpu.matmul %55, %56, %cst_33 {dimension_numbers = #tpu.dot_dimension_numbers<[1], [0], [0], [1], [0, 0, 1, 1], [], []>} : vector<256x128xbf16>, vector<128x256xbf16>, vector<256x256xf32> -> vector<256x256xf32>
      %c0_34 = arith.constant 0 : index
      %c0_35 = arith.constant 0 : index
      %58 = vector.load %arg6[%c0_34, %c0_35] : memref<1x256xf32, #tpu.memory_space<vmem>>, vector<1x256xf32>
      %59 = vector.broadcast %58 : vector<1x256xf32> to vector<256x256xf32>
      %60 = arith.addf %57, %59 : vector<256x256xf32>
      %61 = arith.negf %60 : vector<256x256xf32>
      %62 = math.exp %61 : vector<256x256xf32>
      %cst_36 = arith.constant 1.000000e+00 : f32
      %63 = vector.broadcast %cst_36 : f32 to vector<256x256xf32>
      %64 = arith.addf %63, %62 : vector<256x256xf32>
      %65 = arith.divf %63, %64 : vector<256x256xf32>
      %66 = arith.mulf %60, %65 : vector<256x256xf32>
      %67 = arith.truncf %66 : vector<256x256xf32> to vector<256x256xbf16>
      %68 = arith.index_cast %arg2 : i32 to index
      %c0_37 = arith.constant 0 : index
      %c0_38 = arith.constant 0 : index
      %69 = vector.load %arg15[%68, %c0_37, %c0_38] : memref<2x256x256xbf16, #tpu.memory_space<vmem>>, vector<1x256x256xbf16>
      %70 = vector.shape_cast %69 : vector<1x256x256xbf16> to vector<256x256xbf16>
      %71 = vector.shape_cast %67 : vector<256x256xbf16> to vector<1x256x256xbf16>
      tpu.vector_store %arg15[%68, %c0_37, %c0_38], %71 {strides = array<i32>} : memref<2x256x256xbf16, #tpu.memory_space<vmem>>, vector<1x256x256xbf16>,
    } else {
    }
    %6 = arith.index_cast %arg2 : i32 to index
    %c0 = arith.constant 0 : index
    %c0_3 = arith.constant 0 : index
    %7 = vector.load %arg15[%6, %c0, %c0_3] : memref<2x256x256xbf16, #tpu.memory_space<vmem>>, vector<1x256x256xbf16>
    %8 = vector.shape_cast %7 : vector<1x256x256xbf16> to vector<256x256xbf16>
    %9 = vector.extract_strided_slice %8 {offsets = [0, 0], sizes = [256, 128], strides = [1, 1]} : vector<256x256xbf16> to vector<256x128xbf16>
    %c1 = arith.constant 1 : index
    %c0_4 = arith.constant 0 : index
    %10 = vector.load %arg7[%c1, %c0_4] : memref<2x128xf32, #tpu.memory_space<vmem>>, vector<1x128xf32>
    %11 = arith.extf %9 : vector<256x128xbf16> to vector<256x128xf32>
    %12 = vector.broadcast %10 : vector<1x128xf32> to vector<256x128xf32>
    %13 = arith.mulf %11, %12 : vector<256x128xf32>
    %c1_5 = arith.constant 1 : index
    %c0_6 = arith.constant 0 : index
    %14 = vector.load %arg8[%c1_5, %c0_6] : memref<2x128xf32, #tpu.memory_space<vmem>>, vector<1x128xf32>
    %15 = vector.broadcast %14 : vector<1x128xf32> to vector<256x128xf32>
    %16 = arith.addf %13, %15 : vector<256x128xf32>
    %17 = arith.truncf %16 : vector<256x128xf32> to vector<256x128xbf16>
    %18 = vector.extract_strided_slice %8 {offsets = [0, 128], sizes = [256, 128], strides = [1, 1]} : vector<256x256xbf16> to vector<256x128xbf16>
    %19 = arith.subi %arg2, %arg1 : i32
    %c1_i32 = arith.constant 1 : i32
    %20 = arith.addi %19, %c1_i32 : i32
    %21 = arith.index_cast %20 : i32 to index
    %c0_7 = arith.constant 0 : index
    %c0_8 = arith.constant 0 : index
    %22 = vector.load %arg9[%21, %c0_7, %c0_8] : memref<3x256x256xbf16, #tpu.memory_space<vmem>>, vector<1x256x256xbf16>
    %23 = vector.shape_cast %22 : vector<1x256x256xbf16> to vector<256x256xbf16>
    %c0_9 = arith.constant 0 : index
    %c0_10 = arith.constant 0 : index
    %24 = vector.load %arg11[%c0_9, %c0_10] : memref<256x128xbf16, #tpu.memory_space<vmem>>, vector<256x128xbf16>
    %cst = arith.constant dense<0.000000e+00> : vector<256x256xf32>
    %25 = tpu.matmul %24, %17, %cst {dimension_numbers = #tpu.dot_dimension_numbers<[1], [1], [0], [0], [0, 0, 1, 0], [], []>} : vector<256x128xbf16>, vector<256x128xbf16>, vector<256x256xf32> -> vector<256x256xf32>
    %26 = arith.extf %23 : vector<256x256xbf16> to vector<256x256xf32>
    %27 = arith.addf %25, %26 : vector<256x256xf32>
    %c0_11 = arith.constant 0 : index
    %c0_12 = arith.constant 0 : index
    %28 = vector.load %arg12[%c0_11, %c0_12] : memref<256x1xf32, #tpu.memory_space<vmem>>, vector<256x1xf32>
    %cst_13 = arith.constant dense<0xFF800000> : vector<256xf32>
    %29 = vector.multi_reduction <maximumf>, %27, %cst_13 [1] : vector<256x256xf32> to vector<256xf32>
    %30 = vector.shape_cast %29 : vector<256xf32> to vector<256x1xf32>
    %31 = arith.maximumf %28, %30 : vector<256x1xf32>
    %32 = arith.subf %28, %31 : vector<256x1xf32>
    %33 = math.exp %32 : vector<256x1xf32>
    %34 = vector.broadcast %31 : vector<256x1xf32> to vector<256x256xf32>
    %35 = arith.subf %27, %34 : vector<256x256xf32>
    %36 = math.exp %35 : vector<256x256xf32>
    %cst_14 = arith.constant dense<0.000000e+00> : vector<256xf32>
    %37 = vector.multi_reduction <add>, %36, %cst_14 [1] : vector<256x256xf32> to vector<256xf32>
    %38 = vector.shape_cast %37 : vector<256xf32> to vector<256x1xf32>
    %39 = arith.truncf %36 : vector<256x256xf32> to vector<256x256xbf16>
    %c0_15 = arith.constant 0 : index
    %c0_16 = arith.constant 0 : index
    %40 = vector.load %arg13[%c0_15, %c0_16] : memref<256x1xf32, #tpu.memory_space<vmem>>, vector<256x1xf32>
    %41 = arith.mulf %33, %40 : vector<256x1xf32>
    %42 = arith.addf %41, %38 : vector<256x1xf32>
    %c0_17 = arith.constant 0 : index
    %c0_18 = arith.constant 0 : index
    %43 = vector.load %arg13[%c0_17, %c0_18] : memref<256x1xf32, #tpu.memory_space<vmem>>, vector<256x1xf32>
    tpu.vector_store %arg13[%c0_17, %c0_18], %42 {strides = array<i32>} : memref<256x1xf32, #tpu.memory_space<vmem>>, vector<256x1xf32>,
    %c0_19 = arith.constant 0 : index
    %c0_20 = arith.constant 0 : index
    %44 = vector.load %arg14[%c0_19, %c0_20] : memref<256x128xf32, #tpu.memory_space<vmem>>, vector<256x128xf32>
    %45 = vector.broadcast %33 : vector<256x1xf32> to vector<256x128xf32>
    %46 = arith.mulf %45, %44 : vector<256x128xf32>
    %cst_21 = arith.constant dense<0.000000e+00> : vector<256x128xf32>
    %47 = tpu.matmul %39, %18, %cst_21 {dimension_numbers = #tpu.dot_dimension_numbers<[1], [0], [0], [1], [0, 0, 1, 1], [], []>} : vector<256x256xbf16>, vector<256x128xbf16>, vector<256x128xf32> -> vector<256x128xf32>
    %48 = arith.addf %46, %47 : vector<256x128xf32>
    %c0_22 = arith.constant 0 : index
    %c0_23 = arith.constant 0 : index
    %49 = vector.load %arg14[%c0_22, %c0_23] : memref<256x128xf32, #tpu.memory_space<vmem>>, vector<256x128xf32>
    tpu.vector_store %arg14[%c0_22, %c0_23], %48 {strides = array<i32>} : memref<256x128xf32, #tpu.memory_space<vmem>>, vector<256x128xf32>,
    %c0_24 = arith.constant 0 : index
    %c0_25 = arith.constant 0 : index
    %50 = vector.load %arg12[%c0_24, %c0_25] : memref<256x1xf32, #tpu.memory_space<vmem>>, vector<256x1xf32>
    tpu.vector_store %arg12[%c0_24, %c0_25], %31 {strides = array<i32>} : memref<256x1xf32, #tpu.memory_space<vmem>>, vector<256x1xf32>,
    %c1_i32_26 = arith.constant 1 : i32
    %51 = arith.cmpi eq, %arg2, %c1_i32_26 : i32
    %52 = arith.extui %51 : i1 to i32
    %c0_i32_27 = arith.constant 0 : i32
    %53 = arith.cmpi ne, %52, %c0_i32_27 : i32
    scf.if %53 {
      %c0_28 = arith.constant 0 : index
      %c0_29 = arith.constant 0 : index
      %54 = vector.load %arg13[%c0_28, %c0_29] : memref<256x1xf32, #tpu.memory_space<vmem>>, vector<256x1xf32>
      %55 = tpu.reciprocal %54 {approx = true} : vector<256x1xf32> -> vector<256x1xf32>
      %c0_30 = arith.constant 0 : index
      %c0_31 = arith.constant 0 : index
      %56 = vector.load %arg14[%c0_30, %c0_31] : memref<256x128xf32, #tpu.memory_space<vmem>>, vector<256x128xf32>
      %57 = vector.broadcast %55 : vector<256x1xf32> to vector<256x128xf32>
      %58 = arith.mulf %56, %57 : vector<256x128xf32>
      %c0_32 = arith.constant 0 : index
      %c0_33 = arith.constant 0 : index
      %c0_34 = arith.constant 0 : index
      %59 = vector.load %arg10[%c0_32, %c0_33, %c0_34] : memref<1x256x128xf32, #tpu.memory_space<vmem>>, vector<1x256x128xf32>
      %60 = vector.shape_cast %59 : vector<1x256x128xf32> to vector<256x128xf32>
      %61 = vector.shape_cast %58 : vector<256x128xf32> to vector<1x256x128xf32>
      tpu.vector_store %arg10[%c0_32, %c0_33, %c0_34], %61 {strides = array<i32>} : memref<1x256x128xf32, #tpu.memory_space<vmem>>, vector<1x256x128xf32>,
    } else {
    }
    return
  }
  func.func @transform_0(%arg0: i32, %arg1: i32, %arg2: i32) -> (i32, i32, i32) {
    %c0_i32 = arith.constant 0 : i32
    %c0_i32_0 = arith.constant 0 : i32
    return %arg0, %arg1, %c0_i32 : i32, i32, i32
  }
  func.func @transform_1(%arg0: i32, %arg1: i32, %arg2: i32) -> (i32, i32, i32) {
    %c0_i32 = arith.constant 0 : i32
    %0 = arith.cmpi eq, %arg1, %c0_i32 : i32
    %c0_i32_0 = arith.constant 0 : i32
    %1 = arith.select %0, %arg2, %c0_i32_0 : i32
    %c0_i32_1 = arith.constant 0 : i32
    %c0_i32_2 = arith.constant 0 : i32
    return %arg0, %1, %c0_i32_1 : i32, i32, i32
  }
  func.func @transform_2(%arg0: i32, %arg1: i32, %arg2: i32) -> (i32, i32) {
    %c0_i32 = arith.constant 0 : i32
    %c0_i32_0 = arith.constant 0 : i32
    %c0_i32_1 = arith.constant 0 : i32
    return %c0_i32, %c0_i32_0 : i32, i32
  }
  func.func @transform_3(%arg0: i32, %arg1: i32, %arg2: i32) -> (i32, i32) {
    %c0_i32 = arith.constant 0 : i32
    %c0_i32_0 = arith.constant 0 : i32
    %c0_i32_1 = arith.constant 0 : i32
    return %c0_i32, %c0_i32_0 : i32, i32
  }
  func.func @transform_4(%arg0: i32, %arg1: i32, %arg2: i32) -> (i32, i32) {
    %c0_i32 = arith.constant 0 : i32
    %c0_i32_0 = arith.constant 0 : i32
    %c0_i32_1 = arith.constant 0 : i32
    return %c0_i32, %c0_i32_0 : i32, i32
  }
  func.func @transform_5(%arg0: i32, %arg1: i32, %arg2: i32) -> (i32, i32) {
    %c0_i32 = arith.constant 0 : i32
    %c0_i32_0 = arith.constant 0 : i32
    %c0_i32_1 = arith.constant 0 : i32
    return %c0_i32, %c0_i32_0 : i32, i32
  }
  func.func @transform_6(%arg0: i32, %arg1: i32, %arg2: i32) -> (i32, i32, i32) {
    %c0_i32 = arith.constant 0 : i32
    %c0_i32_0 = arith.constant 0 : i32
    %c0_i32_1 = arith.constant 0 : i32
    %c0_i32_2 = arith.constant 0 : i32
    return %c0_i32, %c0_i32_0, %c0_i32_1 : i32, i32, i32
  }
  func.func @transform_7(%arg0: i32, %arg1: i32, %arg2: i32) -> (i32, i32, i32) {
    %c0_i32 = arith.constant 0 : i32
    %c0_i32_0 = arith.constant 0 : i32
    return %arg0, %arg1, %c0_i32 : i32, i32, i32
  }
}

</mosaic_0001>

<llo_original>
// kernel: tpu_custom_call.1
$region0: #{tpu_custom_call.1}
  #allocation0 [shape = 'u32[]', space=smem, size = 0x4, offset = 0x4, fixed_abs, tag = 'smem constant byte address 0x4 - core index']
  #allocation1 [shape = 'u32[144,128]{1,0:T(1,128)}', space=vmem, size = 0x12000, scoped, tag = 'internal scratch']
  #allocation2 [shape = 'bf16[256,128]{1,0:T(16,128)(2,1)}', space=vmem, size = 0x10000, scoped, tag = 'scratch operand']
  #allocation3 [shape = 'f32[256,1]{1,0:T(8,128)}', space=vmem, size = 0x20000, scoped, tag = 'scratch operand']
  #allocation4 [shape = 'f32[256,1]{1,0:T(8,128)}', space=vmem, size = 0x20000, scoped, tag = 'scratch operand']
  #allocation5 [shape = 'f32[256,128]{1,0:T(8,128)}', space=vmem, size = 0x20000, scoped, tag = 'scratch operand']
  #allocation6 [shape = 'bf16[2,256,256]{2,1,0:T(16,128)(2,1)}', space=vmem, size = 0x40000, scoped, tag = 'scratch operand']
  %s0 = inlined_call_operand.hbm [shape: bf16[2,512,128], index: 0, kind: input, shape index: {}]
  %s1 = inlined_call_operand.hbm [shape: bf16[2,512,128], index: 1, kind: input, shape index: {}]
  %s2 = inlined_call_operand.hbm [shape: bf16[128,256], index: 2, kind: input, shape index: {}]
  %s3 = inlined_call_operand.vmem [shape: f32[1,256], index: 3, kind: input, shape index: {}]
  %s4 = inlined_call_operand.vmem [shape: f32[2,128], index: 4, kind: input, shape index: {}]
  %s5 = inlined_call_operand.vmem [shape: f32[2,128], index: 5, kind: input, shape index: {}]
  %s6 = inlined_call_operand.hbm [shape: bf16[3,256,256], index: 6, kind: input, shape index: {}]
  %s7 = inlined_call_operand.hbm [shape: f32[2,512,128], index: 7, kind: output, shape index: {}]
  %s8 = sld [smem:[#allocation0]]
  $region89: #{tpu_custom_call.1} parent=0
    _
  %s10 = ssub.s32 1, %s8
  %s11 = scalar_select 0, %s10, %s8
  $region1: #{tpu_custom_call.1} parent=0
    #allocation7 [shape = 'u8[131072]{0}', space=vmem, size = 0x20000, scoped, tag = 'input window, operand 0']
    #allocation8 [shape = 's32[2]{0}', space=sflag, size = 0x8, scoped, tag = 'scoped memory for tpu_custom_call.1']
    #allocation9 [shape = 's32[2]{0}', space=sflag, size = 0x8, scoped, tag = 'scoped memory for tpu_custom_call.1']
    #allocation10 [shape = 'u8[131072]{0}', space=vmem, size = 0x20000, scoped, tag = 'input window, operand 1']
    #allocation11 [shape = 's32[2]{0}', space=sflag, size = 0x8, scoped, tag = 'scoped memory for tpu_custom_call.1']
    #allocation12 [shape = 'u8[65536]{0}', space=vmem, size = 0x10000, scoped, tag = 'input window, operand 2, single buffered']
    #allocation13 [shape = 'u8[393216]{0}', space=vmem, size = 0x60000, scoped, tag = 'input window, operand 6, single buffered']
    #allocation14 [shape = 's32[1]{0}', space=sflag, size = 0x4, scoped, tag = 'scoped memory for tpu_custom_call.1']
    #allocation15 [shape = 'u8[262144]{0}', space=vmem, size = 0x40000, scoped, tag = 'output window, operand 0']
    %12 = vsyncpa [#allocation8], 0
    %s13 = scalar_lea.sflag [#allocation8], 1
    %14 = vsyncpa %s13, 0
    %15 = vsyncpa [#allocation11], 0
    %s16 = scalar_lea.sflag [#allocation11], 1
    %17 = vsyncpa %s16, 0
    %18 = vsyncpa [#allocation14], 0
    %19 = vsyncpa [#allocation9], 0
    %s20 = scalar_lea.sflag [#allocation9], 1
    %21 = vsyncpa %s20, 0
    loop: start=0, step=1, limit=10
    $region2: #{tpu_custom_call.1} parent=1 // loop_pre_header
      _
    $region3: #{tpu_custom_call.1} parent=1 // loop_header
      %s23 = sphi 0, %s27
      %p24 = scmp.ge.s32.totalorder %s23, 10
      %s30 = sphi 0, %s49
      %s31 = sphi 0, %s45
      %s32 = sphi 0, %s41
      %s33 = sphi 0, %s30
      %s34 = sphi 0, %s31
      %s35 = sphi 0, %s32
      %s36 = sphi 0, %s33
      %s37 = sphi 0, %s34
      %s38 = sphi 0, %s35
      %s54 = sphi 0, %s56
      %s57 = sphi 0, %s54
      %s58 = sphi 0, %s57
      %s74 = sphi 0, %s58
      %s86 = sphi 0, %s88
      %s89 = sphi 0, %s86
      %s90 = sphi 0, %s89
      %s106 = sphi 0, %s90
      %s110 = sphi 0, %s110
      %s112 = sphi 0, %s110
      %s113 = sphi 0, %s112
      %s127 = sphi 0, %s113
      %s131 = sphi 0, %s131
      %s133 = sphi 0, %s131
      %s134 = sphi 0, %s133
      %s148 = sphi 0, %s134
      %s152 = sphi 0, %s152
      %s154 = sphi 0, %s152
      %s155 = sphi 0, %s154
      %s169 = sphi 0, %s155
      %s173 = sphi 0, %s173
      %s175 = sphi 0, %s173
      %s176 = sphi 0, %s175
      %s190 = sphi 0, %s176
      %s194 = sphi 0, %s194
      %s196 = sphi 0, %s194
      %s197 = sphi 0, %s196
      %s211 = sphi 0, %s197
      %s219 = sphi 0, %s221
      %s222 = sphi 0, %s219
      %s223 = sphi 0, %s222
      %s239 = sphi 0, %s223
    $region4: #{tpu_custom_call.1} parent=1 // loop_header_branch
      %26 = sbr.rel (%p24) target = $region8
    $region5: #{tpu_custom_call.1} parent=1 // loop_body
      %s28 = ssub.s32 %s23, 1
      %s29 = ssub.s32 %s23, 2
      %s39 = sadd.s32 1, %s32
      %p40 = scmp.ge.s32.totalorder %s39, 2
      %s41 = scalar_select %p40, 0, %s39
      %s42 = sadd.s32 1, %s31
      %s43 = scalar_select %p40, %s42, %s31
      %p44 = scmp.ge.s32.totalorder %s43, 2
      %s45 = scalar_select %p44, 0, %s43
      %s46 = sadd.s32 1, %s30
      %s47 = scalar_select %p44, %s46, %s30
      %p48 = scmp.ge.s32.totalorder %s47, 2
      %s49 = scalar_select %p48, 0, %s47
      %s50 = ssub.s32 %s30, %s49
      %s51 = ssub.s32 %s31, %s45
      %s52 = sor.u32 %s50, %s51
      %p53 = scmp.eq.s32.totalorder %s52, 0
      %s55 = sadd.s32 %s54, 1
      %s56 = scalar_select %p53, %s54, %s55
      %p59 = pneg %p53
      %p60 = scmp.eq.s32.totalorder %s23, 7
      %p61 = por %p59, %p60
      %p62 = scmp.ne.s32.totalorder %s54, %s57
      %p63 = scmp.eq.s32.totalorder %s23, 0
      %p64 = por %p62, %p63
      %p65 = scmp.ne.s32.totalorder %s54, %s57
      %p66 = scmp.eq.s32.totalorder %s28, 7
      %p67 = por %p65, %p66
      %p68 = scmp.ne.s32.totalorder %s57, %s58
      %p69 = scmp.eq.s32.totalorder %s28, 0
      %p70 = por %p68, %p69
      %p71 = scmp.ne.s32.totalorder %s57, %s58
      %p72 = scmp.eq.s32.totalorder %s29, 7
      %p73 = por %p71, %p72
      %p75 = scmp.ne.s32.totalorder %s58, %s74
      %p76 = scmp.eq.s32.totalorder %s29, 0
      %p77 = por %p75, %p76
      %p78 = scmp.eq.s32.totalorder %s31, 0
      %s79 = scalar_select %p78, %s32, 0
      %p80 = scmp.eq.s32.totalorder %s45, 0
      %s81 = scalar_select %p80, %s41, 0
      %s82 = ssub.s32 %s30, %s49
      %s83 = ssub.s32 %s79, %s81
      %s84 = sor.u32 %s82, %s83
      %p85 = scmp.eq.s32.totalorder %s84, 0
      %s87 = sadd.s32 %s86, 1
      %s88 = scalar_select %p85, %s86, %s87
      %p91 = pneg %p85
      %p92 = scmp.eq.s32.totalorder %s23, 7
      %p93 = por %p91, %p92
      %p94 = scmp.ne.s32.totalorder %s86, %s89
      %p95 = scmp.eq.s32.totalorder %s23, 0
      %p96 = por %p94, %p95
      %p97 = scmp.ne.s32.totalorder %s86, %s89
      %p98 = scmp.eq.s32.totalorder %s28, 7
      %p99 = por %p97, %p98
      %p100 = scmp.ne.s32.totalorder %s89, %s90
      %p101 = scmp.eq.s32.totalorder %s28, 0
      %p102 = por %p100, %p101
      %p103 = scmp.ne.s32.totalorder %s89, %s90
      %p104 = scmp.eq.s32.totalorder %s29, 7
      %p105 = por %p103, %p104
      %p107 = scmp.ne.s32.totalorder %s90, %s106
      %p108 = scmp.eq.s32.totalorder %s29, 0
      %p109 = por %p107, %p108
      %s111 = sadd.s32 %s110, 1
      %p114 = scmp.eq.s32.totalorder %s23, 7
      %p115 = scmp.ne.s32.totalorder %s110, %s112
      %p116 = scmp.eq.s32.totalorder %s23, 0
      %p117 = por %p115, %p116
      %p118 = scmp.ne.s32.totalorder %s110, %s112
      %p119 = scmp.eq.s32.totalorder %s28, 7
      %p120 = por %p118, %p119
      %p121 = scmp.ne.s32.totalorder %s112, %s113
      %p122 = scmp.eq.s32.totalorder %s28, 0
      %p123 = por %p121, %p122
      %p124 = scmp.ne.s32.totalorder %s112, %s113
      %p125 = scmp.eq.s32.totalorder %s29, 7
      %p126 = por %p124, %p125
      %p128 = scmp.ne.s32.totalorder %s113, %s127
      %p129 = scmp.eq.s32.totalorder %s29, 0
      %p130 = por %p128, %p129
      %s132 = sadd.s32 %s131, 1
      %p135 = scmp.eq.s32.totalorder %s23, 7
      %p136 = scmp.ne.s32.totalorder %s131, %s133
      %p137 = scmp.eq.s32.totalorder %s23, 0
      %p138 = por %p136, %p137
      %p139 = scmp.ne.s32.totalorder %s131, %s133
      %p140 = scmp.eq.s32.totalorder %s28, 7
      %p141 = por %p139, %p140
      %p142 = scmp.ne.s32.totalorder %s133, %s134
      %p143 = scmp.eq.s32.totalorder %s28, 0
      %p144 = por %p142, %p143
      %p145 = scmp.ne.s32.totalorder %s133, %s134
      %p146 = scmp.eq.s32.totalorder %s29, 7
      %p147 = por %p145, %p146
      %p149 = scmp.ne.s32.totalorder %s134, %s148
      %p150 = scmp.eq.s32.totalorder %s29, 0
      %p151 = por %p149, %p150
      %s153 = sadd.s32 %s152, 1
      %p156 = scmp.eq.s32.totalorder %s23, 7
      %p157 = scmp.ne.s32.totalorder %s152, %s154
      %p158 = scmp.eq.s32.totalorder %s23, 0
      %p159 = por %p157, %p158
      %p160 = scmp.ne.s32.totalorder %s152, %s154
      %p161 = scmp.eq.s32.totalorder %s28, 7
      %p162 = por %p160, %p161
      %p163 = scmp.ne.s32.totalorder %s154, %s155
      %p164 = scmp.eq.s32.totalorder %s28, 0
      %p165 = por %p163, %p164
      %p166 = scmp.ne.s32.totalorder %s154, %s155
      %p167 = scmp.eq.s32.totalorder %s29, 7
      %p168 = por %p166, %p167
      %p170 = scmp.ne.s32.totalorder %s155, %s169
      %p171 = scmp.eq.s32.totalorder %s29, 0
      %p172 = por %p170, %p171
      %s174 = sadd.s32 %s173, 1
      %p177 = scmp.eq.s32.totalorder %s23, 7
      %p178 = scmp.ne.s32.totalorder %s173, %s175
      %p179 = scmp.eq.s32.totalorder %s23, 0
      %p180 = por %p178, %p179
      %p181 = scmp.ne.s32.totalorder %s173, %s175
      %p182 = scmp.eq.s32.totalorder %s28, 7
      %p183 = por %p181, %p182
      %p184 = scmp.ne.s32.totalorder %s175, %s176
      %p185 = scmp.eq.s32.totalorder %s28, 0
      %p186 = por %p184, %p185
      %p187 = scmp.ne.s32.totalorder %s175, %s176
      %p188 = scmp.eq.s32.totalorder %s29, 7
      %p189 = por %p187, %p188
      %p191 = scmp.ne.s32.totalorder %s176, %s190
      %p192 = scmp.eq.s32.totalorder %s29, 0
      %p193 = por %p191, %p192
      %s195 = sadd.s32 %s194, 1
      %p198 = scmp.eq.s32.totalorder %s23, 7
      %p199 = scmp.ne.s32.totalorder %s194, %s196
      %p200 = scmp.eq.s32.totalorder %s23, 0
      %p201 = por %p199, %p200
      %p202 = scmp.ne.s32.totalorder %s194, %s196
      %p203 = scmp.eq.s32.totalorder %s28, 7
      %p204 = por %p202, %p203
      %p205 = scmp.ne.s32.totalorder %s196, %s197
      %p206 = scmp.eq.s32.totalorder %s28, 0
      %p207 = por %p205, %p206
      %p208 = scmp.ne.s32.totalorder %s196, %s197
      %p209 = scmp.eq.s32.totalorder %s29, 7
      %p210 = por %p208, %p209
      %p212 = scmp.ne.s32.totalorder %s197, %s211
      %p213 = scmp.eq.s32.totalorder %s29, 0
      %p214 = por %p212, %p213
      %s215 = ssub.s32 %s30, %s49
      %s216 = ssub.s32 %s31, %s45
      %s217 = sor.u32 %s215, %s216
      %p218 = scmp.eq.s32.totalorder %s217, 0
      %s220 = sadd.s32 %s219, 1
      %s221 = scalar_select %p218, %s219, %s220
      %p224 = pneg %p218
      %p225 = scmp.eq.s32.totalorder %s23, 7
      %p226 = por %p224, %p225
      %p227 = scmp.ne.s32.totalorder %s219, %s222
      %p228 = scmp.eq.s32.totalorder %s23, 0
      %p229 = por %p227, %p228
      %p230 = scmp.ne.s32.totalorder %s219, %s222
      %p231 = scmp.eq.s32.totalorder %s28, 7
      %p232 = por %p230, %p231
      %p233 = scmp.ne.s32.totalorder %s222, %s223
      %p234 = scmp.eq.s32.totalorder %s28, 0
      %p235 = por %p233, %p234
      %p236 = scmp.ne.s32.totalorder %s222, %s223
      %p237 = scmp.eq.s32.totalorder %s29, 7
      %p238 = por %p236, %p237
      %p240 = scmp.ne.s32.totalorder %s223, %s239
      %p241 = scmp.eq.s32.totalorder %s29, 0
      %p242 = por %p240, %p241
      %p243 = scmp.le.s32.totalorder 1, %s23
      %p244 = scmp.lt.s32.totalorder %s23, 9
      %p245 = pnand %p243, %p244
      %p246 = pneg %p245
      // Predicated region
      $region9: #{tpu_custom_call.1} parent=5 // pred_check
        _
      $region10: #{tpu_custom_call.1} parent=5 // pred_check_branch
        %248 = sbr.rel (%p245) target = $region12
      $region11: #{tpu_custom_call.1} parent=5 // pred_region
        %s249 = ssub.s32 %s23, 1
        // Predicated region
        $region13: #{tpu_custom_call.1} parent=11 // pred_check
          %p250 = pneg %p123
        $region14: #{tpu_custom_call.1} parent=11 // pred_check_branch
          %252 = sbr.rel (%p250) target = $region16
        $region15: #{tpu_custom_call.1} parent=11 // pred_region
          %s254 = ssub.s32 2048, 2048
          %255 = vsyncadd [#allocation11], %s254
          %s256 = sshll.u32 [#allocation12], 4
          %s257 = int_to_ptr.vmem [resolvable:$true] %s256
          %262 = dma.hbm_to_vmem [thread:$0]  %s2, 2048, %s257, [#allocation11], 128, 128, 8
        $region16: #{tpu_custom_call.1} parent=11 // pred_fallthru
          _
        // Predicated region
        $region17: #{tpu_custom_call.1} parent=11 // pred_check
          %p263 = pneg %p144
        $region18: #{tpu_custom_call.1} parent=11 // pred_check_branch
          %265 = sbr.rel (%p263) target = $region20
        $region19: #{tpu_custom_call.1} parent=11 // pred_region
          _
        $region20: #{tpu_custom_call.1} parent=11 // pred_fallthru
          _
        // Predicated region
        $region21: #{tpu_custom_call.1} parent=11 // pred_check
          %p266 = pneg %p165
        $region22: #{tpu_custom_call.1} parent=11 // pred_check_branch
          %268 = sbr.rel (%p266) target = $region24
        $region23: #{tpu_custom_call.1} parent=11 // pred_region
          _
        $region24: #{tpu_custom_call.1} parent=11 // pred_fallthru
          _
        // Predicated region
        $region25: #{tpu_custom_call.1} parent=11 // pred_check
          %p269 = pneg %p186
        $region26: #{tpu_custom_call.1} parent=11 // pred_check_branch
          %271 = sbr.rel (%p269) target = $region28
        $region27: #{tpu_custom_call.1} parent=11 // pred_region
          _
        $region28: #{tpu_custom_call.1} parent=11 // pred_fallthru
          _
        // Predicated region
        $region29: #{tpu_custom_call.1} parent=11 // pred_check
          %p272 = pneg %p207
        $region30: #{tpu_custom_call.1} parent=11 // pred_check_branch
          %274 = sbr.rel (%p272) target = $region32
        $region31: #{tpu_custom_call.1} parent=11 // pred_region
          %s276 = ssub.s32 12288, 12288
          %277 = vsyncadd [#allocation14], %s276
          %s278 = sshll.u32 [#allocation13], 4
          %s279 = int_to_ptr.vmem [resolvable:$true] %s278
          %284 = dma.hbm_to_vmem [thread:$0]  %s6, 12288, %s279, [#allocation14], 128, 128, 8
        $region32: #{tpu_custom_call.1} parent=11 // pred_fallthru
          _
      $region12: #{tpu_custom_call.1} parent=5 // pred_fallthru
        _
      %p285 = scmp.lt.s32.totalorder %s23, 8
      // Predicated region
      $region33: #{tpu_custom_call.1} parent=5 // pred_check
        %p286 = pneg %p285
      $region34: #{tpu_custom_call.1} parent=5 // pred_check_branch
        %288 = sbr.rel (%p286) target = $region36
      $region35: #{tpu_custom_call.1} parent=5 // pred_region
        // Predicated region
        $region37: #{tpu_custom_call.1} parent=35 // pred_check
          %p289 = pneg %p64
        $region38: #{tpu_custom_call.1} parent=35 // pred_check_branch
          %291 = sbr.rel (%p289) target = $region40
        $region39: #{tpu_custom_call.1} parent=35 // pred_region
          %s292 = sand.u32 %s54, 1
          %s293 = scalar_lea.sflag [#allocation8], %s292
          %s294 = sand.u32 %s54, 1
          %s295 = smul.addr %s294, 128
          %s296 = scalar_lea.vmem [#allocation7], %s295
          %s297 = smul.u32 32, %s31
          %s299 = ssub.s32 2048, 2048
          %300 = vsyncadd %s293, %s299
          %s301 = smul.addr %s30, 64
          %s302 = sadd.s32 %s297, %s301
          %s303 = smul.addr %s302, 64
          %s304 = scalar_lea.hbm %s0, %s303
          %s305 = sshll.u32 %s296, 4
          %s306 = int_to_ptr.vmem [resolvable:$true] %s305
          %311 = dma.hbm_to_vmem [thread:$0]  %s304, 2048, %s306, %s293, 64, 64, 4
        $region40: #{tpu_custom_call.1} parent=35 // pred_fallthru
          _
        // Predicated region
        $region41: #{tpu_custom_call.1} parent=35 // pred_check
          %p312 = pneg %p96
        $region42: #{tpu_custom_call.1} parent=35 // pred_check_branch
          %314 = sbr.rel (%p312) target = $region44
        $region43: #{tpu_custom_call.1} parent=35 // pred_region
          %s315 = sand.u32 %s23, 1
          %s316 = scalar_lea.sflag [#allocation11], %s315
          %s317 = sand.u32 %s86, 1
          %s318 = smul.addr %s317, 128
          %s319 = scalar_lea.vmem [#allocation10], %s318
          %p320 = scmp.eq.s32.totalorder %s31, 0
          %s321 = scalar_select %p320, %s32, 0
          %s322 = smul.u32 32, %s321
          %s324 = ssub.s32 2048, 2048
          %325 = vsyncadd %s316, %s324
          %s326 = smul.addr %s30, 64
          %s327 = sadd.s32 %s322, %s326
          %s328 = smul.addr %s327, 64
          %s329 = scalar_lea.hbm %s1, %s328
          %s330 = sshll.u32 %s319, 4
          %s331 = int_to_ptr.vmem [resolvable:$true] %s330
          %336 = dma.hbm_to_vmem [thread:$0]  %s329, 2048, %s331, %s316, 64, 64, 4
        $region44: #{tpu_custom_call.1} parent=35 // pred_fallthru
          _
      $region36: #{tpu_custom_call.1} parent=5 // pred_fallthru
        _
      %p337 = scmp.le.s32.totalorder 1, %s23
      %p338 = scmp.lt.s32.totalorder %s23, 9
      %p339 = pnand %p337, %p338
      %p340 = pneg %p339
      // Predicated region
      $region45: #{tpu_custom_call.1} parent=5 // pred_check
        _
      $region46: #{tpu_custom_call.1} parent=5 // pred_check_branch
        %342 = sbr.rel (%p339) target = $region48
      $region47: #{tpu_custom_call.1} parent=5 // pred_region
        %s343 = ssub.s32 %s23, 1
        %s344 = sand.u32 %s57, 1
        %s345 = scalar_lea.sflag [#allocation8], %s344
        %s346 = sand.u32 %s57, 1
        %s347 = smul.addr %s346, 128
        %s348 = scalar_lea.vmem [#allocation7], %s347
        // Predicated region
        $region49: #{tpu_custom_call.1} parent=47 // pred_check
          %p349 = pneg %p70
        $region50: #{tpu_custom_call.1} parent=47 // pred_check_branch
          %351 = sbr.rel (%p349) target = $region52
        $region51: #{tpu_custom_call.1} parent=47 // pred_region
          %352 = dma.done %s345, 2048
        $region52: #{tpu_custom_call.1} parent=47 // pred_fallthru
          _
        %s353 = sand.u32 %s28, 1
        %s354 = scalar_lea.sflag [#allocation11], %s353
        %s355 = sand.u32 %s89, 1
        %s356 = smul.addr %s355, 128
        %s357 = scalar_lea.vmem [#allocation10], %s356
        // Predicated region
        $region53: #{tpu_custom_call.1} parent=47 // pred_check
          %p358 = pneg %p102
        $region54: #{tpu_custom_call.1} parent=47 // pred_check_branch
          %360 = sbr.rel (%p358) target = $region56
        $region55: #{tpu_custom_call.1} parent=47 // pred_region
          %361 = dma.done %s354, 2048
        $region56: #{tpu_custom_call.1} parent=47 // pred_fallthru
          _
        // Predicated region
        $region57: #{tpu_custom_call.1} parent=47 // pred_check
          %p362 = pneg %p123
        $region58: #{tpu_custom_call.1} parent=47 // pred_check_branch
          %364 = sbr.rel (%p362) target = $region60
        $region59: #{tpu_custom_call.1} parent=47 // pred_region
          %365 = dma.done [#allocation11], 2048
        $region60: #{tpu_custom_call.1} parent=47 // pred_fallthru
          _
        // Predicated region
        $region61: #{tpu_custom_call.1} parent=47 // pred_check
          %p366 = pneg %p207
        $region62: #{tpu_custom_call.1} parent=47 // pred_check_branch
          %368 = sbr.rel (%p366) target = $region64
        $region63: #{tpu_custom_call.1} parent=47 // pred_region
          %369 = dma.done [#allocation14], 12288
        $region64: #{tpu_custom_call.1} parent=47 // pred_fallthru
          _
        %s370 = sand.u32 %s57, 1
        %s371 = scalar_lea.sflag [#allocation8], %s370
        %s372 = sand.u32 %s57, 1
        %s373 = smul.addr %s372, 128
        %s374 = scalar_lea.vmem [#allocation7], %s373
        %p375 = pneg %p70
        %p376 = pneg %p67
        %s377 = sand.u32 %s28, 1
        %s378 = scalar_lea.sflag [#allocation11], %s377
        %s379 = sand.u32 %s89, 1
        %s380 = smul.addr %s379, 128
        %s381 = scalar_lea.vmem [#allocation10], %s380
        %p382 = pneg %p102
        %p383 = pneg %p99
        %p384 = pneg %p123
        %p385 = pneg %p120
        %p386 = pneg %p144
        %p387 = pneg %p141
        %p388 = pneg %p165
        %p389 = pneg %p162
        %p390 = pneg %p186
        %p391 = pneg %p183
        %p392 = pneg %p207
        %p393 = pneg %p204
        %p394 = pneg %p235
        %p395 = pneg %p232
        %s396 = sand.u32 %s222, 1
        %s397 = scalar_lea.sflag [#allocation9], %s396
        %s398 = sand.u32 %s222, 1
        %s399 = smul.addr %s398, 256
        %s400 = scalar_lea.vmem [#allocation15], %s399
        %s401 = smul.u32 32, %s34
        %p402 = scmp.eq.s32.totalorder %s34, 0
        %s403 = scalar_select %p402, %s35, 0
        %s404 = smul.u32 32, %s403
        %s405 = smul.u32 32, %s34
        %p407 = scmp.eq.s32.totalorder %s35, 0
        // Predicated region
        $region65: #{tpu_custom_call.1} parent=47 // pred_check
          %p408 = pneg %p407
        $region66: #{tpu_custom_call.1} parent=47 // pred_check_branch
          %410 = sbr.rel (%p408) target = $region68
        $region67: #{tpu_custom_call.1} parent=47 // pred_region
          %vm411 = vcmask 7168
          %412 = vst.msk [vmem:[#allocation3] sm:$0xff] %vm411, -inf
          %413 = vst.msk [vmem:[#allocation3 + $0x8] sm:$0xff] %vm411, -inf
          %414 = vst.msk [vmem:[#allocation3 + $0x10] sm:$0xff] %vm411, -inf
          %415 = vst.msk [vmem:[#allocation3 + $0x18] sm:$0xff] %vm411, -inf
          %416 = vst.msk [vmem:[#allocation3 + $0x20] sm:$0xff] %vm411, -inf
          %417 = vst.msk [vmem:[#allocation3 + $0x28] sm:$0xff] %vm411, -inf
          %418 = vst.msk [vmem:[#allocation3 + $0x30] sm:$0xff] %vm411, -inf
          %419 = vst.msk [vmem:[#allocation3 + $0x38] sm:$0xff] %vm411, -inf
          %420 = vst.msk [vmem:[#allocation3 + $0x40] sm:$0xff] %vm411, -inf
          %421 = vst.msk [vmem:[#allocation3 + $0x48] sm:$0xff] %vm411, -inf
          %422 = vst.msk [vmem:[#allocation3 + $0x50] sm:$0xff] %vm411, -inf
          %423 = vst.msk [vmem:[#allocation3 + $0x58] sm:$0xff] %vm411, -inf
          %424 = vst.msk [vmem:[#allocation3 + $0x60] sm:$0xff] %vm411, -inf
          %425 = vst.msk [vmem:[#allocation3 + $0x68] sm:$0xff] %vm411, -inf
          %426 = vst.msk [vmem:[#allocation3 + $0x70] sm:$0xff] %vm411, -inf
          %427 = vst.msk [vmem:[#allocation3 + $0x78] sm:$0xff] %vm411, -inf
          %428 = vst.msk [vmem:[#allocation3 + $0x80] sm:$0xff] %vm411, -inf
          %429 = vst.msk [vmem:[#allocation3 + $0x88] sm:$0xff] %vm411, -inf
          %430 = vst.msk [vmem:[#allocation3 + $0x90] sm:$0xff] %vm411, -inf
          %431 = vst.msk [vmem:[#allocation3 + $0x98] sm:$0xff] %vm411, -inf
          %432 = vst.msk [vmem:[#allocation3 + $0xa0] sm:$0xff] %vm411, -inf
          %433 = vst.msk [vmem:[#allocation3 + $0xa8] sm:$0xff] %vm411, -inf
          %434 = vst.msk [vmem:[#allocation3 + $0xb0] sm:$0xff] %vm411, -inf
          %435 = vst.msk [vmem:[#allocation3 + $0xb8] sm:$0xff] %vm411, -inf
          %436 = vst.msk [vmem:[#allocation3 + $0xc0] sm:$0xff] %vm411, -inf
          %437 = vst.msk [vmem:[#allocation3 + $0xc8] sm:$0xff] %vm411, -inf
          %438 = vst.msk [vmem:[#allocation3 + $0xd0] sm:$0xff] %vm411, -inf
          %439 = vst.msk [vmem:[#allocation3 + $0xd8] sm:$0xff] %vm411, -inf
          %440 = vst.msk [vmem:[#allocation3 + $0xe0] sm:$0xff] %vm411, -inf
          %441 = vst.msk [vmem:[#allocation3 + $0xe8] sm:$0xff] %vm411, -inf
          %442 = vst.msk [vmem:[#allocation3 + $0xf0] sm:$0xff] %vm411, -inf
          %443 = vst.msk [vmem:[#allocation3 + $0xf8] sm:$0xff] %vm411, -inf
          %444 = vst.msk [vmem:[#allocation4] sm:$0xff] %vm411, 0.0
          %445 = vst.msk [vmem:[#allocation4 + $0x8] sm:$0xff] %vm411, 0.0
          %446 = vst.msk [vmem:[#allocation4 + $0x10] sm:$0xff] %vm411, 0.0
          %447 = vst.msk [vmem:[#allocation4 + $0x18] sm:$0xff] %vm411, 0.0
          %448 = vst.msk [vmem:[#allocation4 + $0x20] sm:$0xff] %vm411, 0.0
          %449 = vst.msk [vmem:[#allocation4 + $0x28] sm:$0xff] %vm411, 0.0
          %450 = vst.msk [vmem:[#allocation4 + $0x30] sm:$0xff] %vm411, 0.0
          %451 = vst.msk [vmem:[#allocation4 + $0x38] sm:$0xff] %vm411, 0.0
          %452 = vst.msk [vmem:[#allocation4 + $0x40] sm:$0xff] %vm411, 0.0
          %453 = vst.msk [vmem:[#allocation4 + $0x48] sm:$0xff] %vm411, 0.0
          %454 = vst.msk [vmem:[#allocation4 + $0x50] sm:$0xff] %vm411, 0.0
          %455 = vst.msk [vmem:[#allocation4 + $0x58] sm:$0xff] %vm411, 0.0
          %456 = vst.msk [vmem:[#allocation4 + $0x60] sm:$0xff] %vm411, 0.0
          %457 = vst.msk [vmem:[#allocation4 + $0x68] sm:$0xff] %vm411, 0.0
          %458 = vst.msk [vmem:[#allocation4 + $0x70] sm:$0xff] %vm411, 0.0
          %459 = vst.msk [vmem:[#allocation4 + $0x78] sm:$0xff] %vm411, 0.0
          %460 = vst.msk [vmem:[#allocation4 + $0x80] sm:$0xff] %vm411, 0.0
          %461 = vst.msk [vmem:[#allocation4 + $0x88] sm:$0xff] %vm411, 0.0
          %462 = vst.msk [vmem:[#allocation4 + $0x90] sm:$0xff] %vm411, 0.0
          %463 = vst.msk [vmem:[#allocation4 + $0x98] sm:$0xff] %vm411, 0.0
          %464 = vst.msk [vmem:[#allocation4 + $0xa0] sm:$0xff] %vm411, 0.0
          %465 = vst.msk [vmem:[#allocation4 + $0xa8] sm:$0xff] %vm411, 0.0
          %466 = vst.msk [vmem:[#allocation4 + $0xb0] sm:$0xff] %vm411, 0.0
          %467 = vst.msk [vmem:[#allocation4 + $0xb8] sm:$0xff] %vm411, 0.0
          %468 = vst.msk [vmem:[#allocation4 + $0xc0] sm:$0xff] %vm411, 0.0
          %469 = vst.msk [vmem:[#allocation4 + $0xc8] sm:$0xff] %vm411, 0.0
          %470 = vst.msk [vmem:[#allocation4 + $0xd0] sm:$0xff] %vm411, 0.0
          %471 = vst.msk [vmem:[#allocation4 + $0xd8] sm:$0xff] %vm411, 0.0
          %472 = vst.msk [vmem:[#allocation4 + $0xe0] sm:$0xff] %vm411, 0.0
          %473 = vst.msk [vmem:[#allocation4 + $0xe8] sm:$0xff] %vm411, 0.0
          %474 = vst.msk [vmem:[#allocation4 + $0xf0] sm:$0xff] %vm411, 0.0
          %475 = vst.msk [vmem:[#allocation4 + $0xf8] sm:$0xff] %vm411, 0.0
          %476 = vst [vmem:[#allocation5] sm:$0xff] 0.0
          %477 = vst [vmem:[#allocation5 + $0x8] sm:$0xff] 0.0
          %478 = vst [vmem:[#allocation5 + $0x10] sm:$0xff] 0.0
          %479 = vst [vmem:[#allocation5 + $0x18] sm:$0xff] 0.0
          %480 = vst [vmem:[#allocation5 + $0x20] sm:$0xff] 0.0
          %481 = vst [vmem:[#allocation5 + $0x28] sm:$0xff] 0.0
          %482 = vst [vmem:[#allocation5 + $0x30] sm:$0xff] 0.0
          %483 = vst [vmem:[#allocation5 + $0x38] sm:$0xff] 0.0
          %484 = vst [vmem:[#allocation5 + $0x40] sm:$0xff] 0.0
          %485 = vst [vmem:[#allocation5 + $0x48] sm:$0xff] 0.0
          %486 = vst [vmem:[#allocation5 + $0x50] sm:$0xff] 0.0
          %487 = vst [vmem:[#allocation5 + $0x58] sm:$0xff] 0.0
          %488 = vst [vmem:[#allocation5 + $0x60] sm:$0xff] 0.0
          %489 = vst [vmem:[#allocation5 + $0x68] sm:$0xff] 0.0
          %490 = vst [vmem:[#allocation5 + $0x70] sm:$0xff] 0.0
          %491 = vst [vmem:[#allocation5 + $0x78] sm:$0xff] 0.0
          %492 = vst [vmem:[#allocation5 + $0x80] sm:$0xff] 0.0
          %493 = vst [vmem:[#allocation5 + $0x88] sm:$0xff] 0.0
          %494 = vst [vmem:[#allocation5 + $0x90] sm:$0xff] 0.0
          %495 = vst [vmem:[#allocation5 + $0x98] sm:$0xff] 0.0
          %496 = vst [vmem:[#allocation5 + $0xa0] sm:$0xff] 0.0
          %497 = vst [vmem:[#allocation5 + $0xa8] sm:$0xff] 0.0
          %498 = vst [vmem:[#allocation5 + $0xb0] sm:$0xff] 0.0
          %499 = vst [vmem:[#allocation5 + $0xb8] sm:$0xff] 0.0
          %500 = vst [vmem:[#allocation5 + $0xc0] sm:$0xff] 0.0
          %501 = vst [vmem:[#allocation5 + $0xc8] sm:$0xff] 0.0
          %502 = vst [vmem:[#allocation5 + $0xd0] sm:$0xff] 0.0
          %503 = vst [vmem:[#allocation5 + $0xd8] sm:$0xff] 0.0
          %504 = vst [vmem:[#allocation5 + $0xe0] sm:$0xff] 0.0
          %505 = vst [vmem:[#allocation5 + $0xe8] sm:$0xff] 0.0
          %506 = vst [vmem:[#allocation5 + $0xf0] sm:$0xff] 0.0
          %507 = vst [vmem:[#allocation5 + $0xf8] sm:$0xff] 0.0
          %v508 = vld [vmem:[%s348] sm:$0xf]
          %v509 = vld [vmem:[%s348 + $0x4] sm:$0xf]
          %v510 = vld [vmem:[%s348 + $0x8] sm:$0xf]
          %v511 = vld [vmem:[%s348 + $0xc] sm:$0xf]
          %v512 = vld [vmem:[%s348 + $0x10] sm:$0xf]
          %v513 = vld [vmem:[%s348 + $0x14] sm:$0xf]
          %v514 = vld [vmem:[%s348 + $0x18] sm:$0xf]
          %v515 = vld [vmem:[%s348 + $0x1c] sm:$0xf]
          %v516 = vld [vmem:[%s348 + $0x20] sm:$0xf]
          %v517 = vld [vmem:[%s348 + $0x24] sm:$0xf]
          %v518 = vld [vmem:[%s348 + $0x28] sm:$0xf]
          %v519 = vld [vmem:[%s348 + $0x2c] sm:$0xf]
          %v520 = vld [vmem:[%s348 + $0x30] sm:$0xf]
          %v521 = vld [vmem:[%s348 + $0x34] sm:$0xf]
          %v522 = vld [vmem:[%s348 + $0x38] sm:$0xf]
          %v523 = vld [vmem:[%s348 + $0x3c] sm:$0xf]
          %v524 = vld [vmem:[%s348 + $0x40] sm:$0xf]
          %v525 = vld [vmem:[%s348 + $0x44] sm:$0xf]
          %v526 = vld [vmem:[%s348 + $0x48] sm:$0xf]
          %v527 = vld [vmem:[%s348 + $0x4c] sm:$0xf]
          %v528 = vld [vmem:[%s348 + $0x50] sm:$0xf]
          %v529 = vld [vmem:[%s348 + $0x54] sm:$0xf]
          %v530 = vld [vmem:[%s348 + $0x58] sm:$0xf]
          %v531 = vld [vmem:[%s348 + $0x5c] sm:$0xf]
          %v532 = vld [vmem:[%s348 + $0x60] sm:$0xf]
          %v533 = vld [vmem:[%s348 + $0x64] sm:$0xf]
          %v534 = vld [vmem:[%s348 + $0x68] sm:$0xf]
          %v535 = vld [vmem:[%s348 + $0x6c] sm:$0xf]
          %v536 = vld [vmem:[%s348 + $0x70] sm:$0xf]
          %v537 = vld [vmem:[%s348 + $0x74] sm:$0xf]
          %v538 = vld [vmem:[%s348 + $0x78] sm:$0xf]
          %v539 = vld [vmem:[%s348 + $0x7c] sm:$0xf]
          %v540 = vld [vmem:[#allocation12] sm:$0xff]
          %v541 = vld [vmem:[#allocation12 + $0x8] sm:$0xff]
          %v542 = vld [vmem:[#allocation12 + $0x10] sm:$0xff]
          %v543 = vld [vmem:[#allocation12 + $0x18] sm:$0xff]
          %v544 = vld [vmem:[#allocation12 + $0x20] sm:$0xff]
          %v545 = vld [vmem:[#allocation12 + $0x28] sm:$0xff]
          %v546 = vld [vmem:[#allocation12 + $0x30] sm:$0xff]
          %v547 = vld [vmem:[#allocation12 + $0x38] sm:$0xff]
          %v548 = vld [vmem:[#allocation12 + $0x40] sm:$0xff]
          %v549 = vld [vmem:[#allocation12 + $0x48] sm:$0xff]
          %v550 = vld [vmem:[#allocation12 + $0x50] sm:$0xff]
          %v551 = vld [vmem:[#allocation12 + $0x58] sm:$0xff]
          %v552 = vld [vmem:[#allocation12 + $0x60] sm:$0xff]
          %v553 = vld [vmem:[#allocation12 + $0x68] sm:$0xff]
          %v554 = vld [vmem:[#allocation12 + $0x70] sm:$0xff]
          %v555 = vld [vmem:[#allocation12 + $0x78] sm:$0xff]
          %v556 = vld [vmem:[%s3] sm:$0x3]
          %v558 = vlaneseq
          %v559 = vshrl.u32 %v558, 7
          %v560 = vsub.s32 0, %v559
          %v561 = vrot.slane %v556, %v560
          %v595 = vunpack.c.l.b16 %v508
          %v596 = vunpack.c.l.b16 %v509
          %v597 = vunpack.c.l.b16 %v510
          %v598 = vunpack.c.l.b16 %v511
          %v599 = vunpack.c.l.b16 %v512
          %v600 = vunpack.c.l.b16 %v513
          %v601 = vunpack.c.l.b16 %v514
          %v602 = vunpack.c.l.b16 %v515
          %v603 = vunpack.c.l.b16 %v516
          %v604 = vunpack.c.l.b16 %v517
          %v605 = vunpack.c.l.b16 %v518
          %v606 = vunpack.c.l.b16 %v519
          %v607 = vunpack.c.l.b16 %v520
          %v608 = vunpack.c.l.b16 %v521
          %v609 = vunpack.c.l.b16 %v522
          %v610 = vunpack.c.l.b16 %v523
          %v611 = vunpack.c.l.b16 %v524
          %v612 = vunpack.c.l.b16 %v525
          %v613 = vunpack.c.l.b16 %v526
          %v614 = vunpack.c.l.b16 %v527
          %v615 = vunpack.c.l.b16 %v528
          %v616 = vunpack.c.l.b16 %v529
          %v617 = vunpack.c.l.b16 %v530
          %v618 = vunpack.c.l.b16 %v531
          %v619 = vunpack.c.l.b16 %v532
          %v620 = vunpack.c.l.b16 %v533
          %v621 = vunpack.c.l.b16 %v534
          %v622 = vunpack.c.l.b16 %v535
          %v623 = vunpack.c.l.b16 %v536
          %v624 = vunpack.c.l.b16 %v537
          %v625 = vunpack.c.l.b16 %v538
          %v626 = vunpack.c.l.b16 %v539
          %v627 = vpack.c.b16 %v596, %v595
          %v628 = vpack.c.b16 %v598, %v597
          %v629 = vpack.c.b16 %v600, %v599
          %v630 = vpack.c.b16 %v602, %v601
          %v631 = vpack.c.b16 %v604, %v603
          %v632 = vpack.c.b16 %v606, %v605
          %v633 = vpack.c.b16 %v608, %v607
          %v634 = vpack.c.b16 %v610, %v609
          %v635 = vpack.c.b16 %v612, %v611
          %v636 = vpack.c.b16 %v614, %v613
          %v637 = vpack.c.b16 %v616, %v615
          %v638 = vpack.c.b16 %v618, %v617
          %v639 = vpack.c.b16 %v620, %v619
          %v640 = vpack.c.b16 %v622, %v621
          %v641 = vpack.c.b16 %v624, %v623
          %v642 = vpack.c.b16 %v626, %v625
          %v675 = vunpack.c.l.b16 %v540
          %v676 = vunpack.c.h.b16 %v540
          %v677 = vunpack.c.l.b16 %v541
          %v678 = vunpack.c.h.b16 %v541
          %v679 = vunpack.c.l.b16 %v542
          %v680 = vunpack.c.h.b16 %v542
          %v681 = vunpack.c.l.b16 %v543
          %v682 = vunpack.c.h.b16 %v543
          %v683 = vunpack.c.l.b16 %v544
          %v684 = vunpack.c.h.b16 %v544
          %v685 = vunpack.c.l.b16 %v545
          %v686 = vunpack.c.h.b16 %v545
          %v687 = vunpack.c.l.b16 %v546
          %v688 = vunpack.c.h.b16 %v546
          %v689 = vunpack.c.l.b16 %v547
          %v690 = vunpack.c.h.b16 %v547
          %v691 = vunpack.c.l.b16 %v548
          %v692 = vunpack.c.h.b16 %v548
          %v693 = vunpack.c.l.b16 %v549
          %v694 = vunpack.c.h.b16 %v549
          %v695 = vunpack.c.l.b16 %v550
          %v696 = vunpack.c.h.b16 %v550
          %v697 = vunpack.c.l.b16 %v551
          %v698 = vunpack.c.h.b16 %v551
          %v699 = vunpack.c.l.b16 %v552
          %v700 = vunpack.c.h.b16 %v552
          %v701 = vunpack.c.l.b16 %v553
          %v702 = vunpack.c.h.b16 %v553
          %v703 = vunpack.c.l.b16 %v554
          %v704 = vunpack.c.h.b16 %v554
          %v705 = vunpack.c.l.b16 %v555
          %v706 = vunpack.c.h.b16 %v555
          %v707 = vpack.c.b16 %v677, %v675
          %v708 = vpack.c.b16 %v678, %v676
          %v709 = vpack.c.b16 %v681, %v679
          %v710 = vpack.c.b16 %v682, %v680
          %v711 = vpack.c.b16 %v685, %v683
          %v712 = vpack.c.b16 %v686, %v684
          %v713 = vpack.c.b16 %v689, %v687
          %v714 = vpack.c.b16 %v690, %v688
          %v715 = vpack.c.b16 %v693, %v691
          %v716 = vpack.c.b16 %v694, %v692
          %v717 = vpack.c.b16 %v697, %v695
          %v718 = vpack.c.b16 %v698, %v696
          %v719 = vpack.c.b16 %v701, %v699
          %v720 = vpack.c.b16 %v702, %v700
          %v721 = vpack.c.b16 %v705, %v703
          %v722 = vpack.c.b16 %v706, %v704
          %739 = vmatprep.subr.bf16.mxu0 %v708
          %740 = vmatpush1.bf16.msra.mxu0 %v707
          %741 = vmatprep.subr.bf16.mxu0 %v710
          %742 = vmatpush1.bf16.msra.mxu0 %v709
          %743 = vmatprep.subr.bf16.mxu0 %v712
          %744 = vmatpush1.bf16.msra.mxu0 %v711
          %745 = vmatprep.subr.bf16.mxu0 %v714
          %746 = vmatpush1.bf16.msra.mxu0 %v713
          %747 = vmatprep.subr.bf16.mxu0 %v716
          %748 = vmatpush1.bf16.msra.mxu0 %v715
          %749 = vmatprep.subr.bf16.mxu0 %v718
          %750 = vmatpush1.bf16.msra.mxu0 %v717
          %751 = vmatprep.subr.bf16.mxu0 %v720
          %752 = vmatpush1.bf16.msra.mxu0 %v719
          %753 = vmatprep.subr.bf16.mxu0 %v722
          %754 = vmatpush1.bf16.msra.mxu0 %v721
          %755 = vmatprep.subr.bf16.mxu0 0
          %756 = vmatpush1.bf16.msra.mxu0 0
          %757 = vmatprep.subr.bf16.mxu0 0
          %758 = vmatpush1.bf16.msra.mxu0 0
          %759 = vmatprep.subr.bf16.mxu0 0
          %760 = vmatpush1.bf16.msra.mxu0 0
          %761 = vmatprep.subr.bf16.mxu0 0
          %762 = vmatpush1.bf16.msra.mxu0 0
          %763 = vmatprep.subr.bf16.mxu0 0
          %764 = vmatpush1.bf16.msra.mxu0 0
          %765 = vmatprep.subr.bf16.mxu0 0
          %766 = vmatpush1.bf16.msra.mxu0 0
          %767 = vmatprep.subr.bf16.mxu0 0
          %768 = vmatpush1.bf16.msra.mxu0 0
          %769 = vmatprep.subr.bf16.mxu0 0
          %770 = vmatpush1.bf16.msra.mxu0 0
          %771 = vmatprep.mubr.bf16.mxu0 0
          %772 = vmatmul.mubr.bf16.gmra.mrb[0].mxu0 %v627
          %v773 = vpop.f32.mrb[0].mxu0
          %v774 = vadd.f32 %v561, %v773
          %v775 = vpop.f32.mrb[0].mxu0
          %v776 = vpop.f32.mrb[0].mxu0
          %v777 = vadd.f32 %v561, %v776
          %v778 = vpop.f32.mrb[0].mxu0
          %779 = vmatprep.mubr.bf16.mxu0 0
          %780 = vmatmul.mubr.bf16.gmra.mrb[0].mxu0 %v628
          %v781 = vpop.f32.mrb[0].mxu0
          %v782 = vadd.f32 %v561, %v781
          %v783 = vpop.f32.mrb[0].mxu0
          %v784 = vpop.f32.mrb[0].mxu0
          %v785 = vadd.f32 %v561, %v784
          %v786 = vpop.f32.mrb[0].mxu0
          %787 = vmatprep.mubr.bf16.mxu0 0
          %788 = vmatmul.mubr.bf16.gmra.mrb[0].mxu0 %v629
          %v789 = vpop.f32.mrb[0].mxu0
          %v790 = vadd.f32 %v561, %v789
          %v791 = vpop.f32.mrb[0].mxu0
          %v792 = vpop.f32.mrb[0].mxu0
          %v793 = vadd.f32 %v561, %v792
          %v794 = vpop.f32.mrb[0].mxu0
          %795 = vmatprep.mubr.bf16.mxu0 0
          %796 = vmatmul.mubr.bf16.gmra.mrb[0].mxu0 %v630
          %v797 = vpop.f32.mrb[0].mxu0
          %v798 = vadd.f32 %v561, %v797
          %v799 = vpop.f32.mrb[0].mxu0
          %v800 = vpop.f32.mrb[0].mxu0
          %v801 = vadd.f32 %v561, %v800
          %v802 = vpop.f32.mrb[0].mxu0
          %803 = vmatprep.mubr.bf16.mxu0 0
          %804 = vmatmul.mubr.bf16.gmra.mrb[0].mxu0 %v631
          %v805 = vpop.f32.mrb[0].mxu0
          %v806 = vadd.f32 %v561, %v805
          %v807 = vpop.f32.mrb[0].mxu0
          %v808 = vpop.f32.mrb[0].mxu0
          %v809 = vadd.f32 %v561, %v808
          %v810 = vpop.f32.mrb[0].mxu0
          %811 = vmatprep.mubr.bf16.mxu0 0
          %812 = vmatmul.mubr.bf16.gmra.mrb[0].mxu0 %v632
          %v813 = vpop.f32.mrb[0].mxu0
          %v814 = vadd.f32 %v561, %v813
          %v815 = vpop.f32.mrb[0].mxu0
          %v816 = vpop.f32.mrb[0].mxu0
          %v817 = vadd.f32 %v561, %v816
          %v818 = vpop.f32.mrb[0].mxu0
          %819 = vmatprep.mubr.bf16.mxu0 0
          %820 = vmatmul.mubr.bf16.gmra.mrb[0].mxu0 %v633
          %v821 = vpop.f32.mrb[0].mxu0
          %v822 = vadd.f32 %v561, %v821
          %v823 = vpop.f32.mrb[0].mxu0
          %v824 = vpop.f32.mrb[0].mxu0
          %v825 = vadd.f32 %v561, %v824
          %v826 = vpop.f32.mrb[0].mxu0
          %827 = vmatprep.mubr.bf16.mxu0 0
          %828 = vmatmul.mubr.bf16.gmra.mrb[0].mxu0 %v634
          %v829 = vpop.f32.mrb[0].mxu0
          %v830 = vadd.f32 %v561, %v829
          %v831 = vpop.f32.mrb[0].mxu0
          %v832 = vpop.f32.mrb[0].mxu0
          %v833 = vadd.f32 %v561, %v832
          %v834 = vpop.f32.mrb[0].mxu0
          %835 = vmatprep.mubr.bf16.mxu0 0
          %836 = vmatmul.mubr.bf16.gmra.mrb[0].mxu0 %v635
          %v837 = vpop.f32.mrb[0].mxu0
          %v838 = vadd.f32 %v561, %v837
          %v839 = vpop.f32.mrb[0].mxu0
          %v840 = vpop.f32.mrb[0].mxu0
          %v841 = vadd.f32 %v561, %v840
          %v842 = vpop.f32.mrb[0].mxu0
          %843 = vmatprep.mubr.bf16.mxu0 0
          %844 = vmatmul.mubr.bf16.gmra.mrb[0].mxu0 %v636
          %v845 = vpop.f32.mrb[0].mxu0
          %v846 = vadd.f32 %v561, %v845
          %v847 = vpop.f32.mrb[0].mxu0
          %v848 = vpop.f32.mrb[0].mxu0
          %v849 = vadd.f32 %v561, %v848
          %v850 = vpop.f32.mrb[0].mxu0
          %851 = vmatprep.mubr.bf16.mxu0 0
          %852 = vmatmul.mubr.bf16.gmra.mrb[0].mxu0 %v637
          %v853 = vpop.f32.mrb[0].mxu0
          %v854 = vadd.f32 %v561, %v853
          %v855 = vpop.f32.mrb[0].mxu0
          %v856 = vpop.f32.mrb[0].mxu0
          %v857 = vadd.f32 %v561, %v856
          %v858 = vpop.f32.mrb[0].mxu0
          %859 = vmatprep.mubr.bf16.mxu0 0
          %860 = vmatmul.mubr.bf16.gmra.mrb[0].mxu0 %v638
          %v861 = vpop.f32.mrb[0].mxu0
          %v862 = vadd.f32 %v561, %v861
          %v863 = vpop.f32.mrb[0].mxu0
          %v864 = vpop.f32.mrb[0].mxu0
          %v865 = vadd.f32 %v561, %v864
          %v866 = vpop.f32.mrb[0].mxu0
          %867 = vmatprep.mubr.bf16.mxu0 0
          %868 = vmatmul.mubr.bf16.gmra.mrb[0].mxu0 %v639
          %v869 = vpop.f32.mrb[0].mxu0
          %v870 = vadd.f32 %v561, %v869
          %v871 = vpop.f32.mrb[0].mxu0
          %v872 = vpop.f32.mrb[0].mxu0
          %v873 = vadd.f32 %v561, %v872
          %v874 = vpop.f32.mrb[0].mxu0
          %875 = vmatprep.mubr.bf16.mxu0 0
          %876 = vmatmul.mubr.bf16.gmra.mrb[0].mxu0 %v640
          %v877 = vpop.f32.mrb[0].mxu0
          %v878 = vadd.f32 %v561, %v877
          %v879 = vpop.f32.mrb[0].mxu0
          %v880 = vpop.f32.mrb[0].mxu0
          %v881 = vadd.f32 %v561, %v880
          %v882 = vpop.f32.mrb[0].mxu0
          %883 = vmatprep.mubr.bf16.mxu0 0
          %884 = vmatmul.mubr.bf16.gmra.mrb[0].mxu0 %v641
          %v885 = vpop.f32.mrb[0].mxu0
          %v886 = vadd.f32 %v561, %v885
          %v887 = vpop.f32.mrb[0].mxu0
          %v888 = vpop.f32.mrb[0].mxu0
          %v889 = vadd.f32 %v561, %v888
          %v890 = vpop.f32.mrb[0].mxu0
          %891 = vmatprep.mubr.bf16.mxu0 0
          %892 = vmatmul.mubr.bf16.gmra.mrb[0].mxu0 %v642
          %v893 = vpop.f32.mrb[0].mxu0
          %v894 = vadd.f32 %v561, %v893
          %v895 = vpop.f32.mrb[0].mxu0
          %v896 = vpop.f32.mrb[0].mxu0
          %v897 = vadd.f32 %v561, %v896
          %v898 = vpop.f32.mrb[0].mxu0
          %899 = vdwg.mxu0
          %v900 = vxor.u32 %v774, 2147483648
          %v901 = vxor.u32 %v777, 2147483648
          %v902 = vxor.u32 %v782, 2147483648
          %v903 = vxor.u32 %v785, 2147483648
          %v904 = vxor.u32 %v790, 2147483648
          %v905 = vxor.u32 %v793, 2147483648
          %v906 = vxor.u32 %v798, 2147483648
          %v907 = vxor.u32 %v801, 2147483648
          %v908 = vxor.u32 %v806, 2147483648
          %v909 = vxor.u32 %v809, 2147483648
          %v910 = vxor.u32 %v814, 2147483648
          %v911 = vxor.u32 %v817, 2147483648
          %v912 = vxor.u32 %v822, 2147483648
          %v913 = vxor.u32 %v825, 2147483648
          %v914 = vxor.u32 %v830, 2147483648
          %v915 = vxor.u32 %v833, 2147483648
          %v916 = vxor.u32 %v838, 2147483648
          %v917 = vxor.u32 %v841, 2147483648
          %v918 = vxor.u32 %v846, 2147483648
          %v919 = vxor.u32 %v849, 2147483648
          %v920 = vxor.u32 %v854, 2147483648
          %v921 = vxor.u32 %v857, 2147483648
          %v922 = vxor.u32 %v862, 2147483648
          %v923 = vxor.u32 %v865, 2147483648
          %v924 = vxor.u32 %v870, 2147483648
          %v925 = vxor.u32 %v873, 2147483648
          %v926 = vxor.u32 %v878, 2147483648
          %v927 = vxor.u32 %v881, 2147483648
          %v928 = vxor.u32 %v886, 2147483648
          %v929 = vxor.u32 %v889, 2147483648
          %v930 = vxor.u32 %v894, 2147483648
          %v931 = vxor.u32 %v897, 2147483648
          %v932 = vmul.f32 %v900, 1.442695
          %v933 = vpow.pop %v932
          %v934 = vmul.f32 %v901, 1.442695
          %v935 = vpow.pop %v934
          %v936 = vmul.f32 %v902, 1.442695
          %v937 = vpow.pop %v936
          %v938 = vmul.f32 %v903, 1.442695
          %v939 = vpow.pop %v938
          %v940 = vmul.f32 %v904, 1.442695
          %v941 = vpow.pop %v940
          %v942 = vmul.f32 %v905, 1.442695
          %v943 = vpow.pop %v942
          %v944 = vmul.f32 %v906, 1.442695
          %v945 = vpow.pop %v944
          %v946 = vmul.f32 %v907, 1.442695
          %v947 = vpow.pop %v946
          %v948 = vmul.f32 %v908, 1.442695
          %v949 = vpow.pop %v948
          %v950 = vmul.f32 %v909, 1.442695
          %v951 = vpow.pop %v950
          %v952 = vmul.f32 %v910, 1.442695
          %v953 = vpow.pop %v952
          %v954 = vmul.f32 %v911, 1.442695
          %v955 = vpow.pop %v954
          %v956 = vmul.f32 %v912, 1.442695
          %v957 = vpow.pop %v956
          %v958 = vmul.f32 %v913, 1.442695
          %v959 = vpow.pop %v958
          %v960 = vmul.f32 %v914, 1.442695
          %v961 = vpow.pop %v960
          %v962 = vmul.f32 %v915, 1.442695
          %v963 = vpow.pop %v962
          %v964 = vmul.f32 %v916, 1.442695
          %v965 = vpow.pop %v964
          %v966 = vmul.f32 %v917, 1.442695
          %v967 = vpow.pop %v966
          %v968 = vmul.f32 %v918, 1.442695
          %v969 = vpow.pop %v968
          %v970 = vmul.f32 %v919, 1.442695
          %v971 = vpow.pop %v970
          %v972 = vmul.f32 %v920, 1.442695
          %v973 = vpow.pop %v972
          %v974 = vmul.f32 %v921, 1.442695
          %v975 = vpow.pop %v974
          %v976 = vmul.f32 %v922, 1.442695
          %v977 = vpow.pop %v976
          %v978 = vmul.f32 %v923, 1.442695
          %v979 = vpow.pop %v978
          %v980 = vmul.f32 %v924, 1.442695
          %v981 = vpow.pop %v980
          %v982 = vmul.f32 %v925, 1.442695
          %v983 = vpow.pop %v982
          %v984 = vmul.f32 %v926, 1.442695
          %v985 = vpow.pop %v984
          %v986 = vmul.f32 %v927, 1.442695
          %v987 = vpow.pop %v986
          %v988 = vmul.f32 %v928, 1.442695
          %v989 = vpow.pop %v988
          %v990 = vmul.f32 %v929, 1.442695
          %v991 = vpow.pop %v990
          %v992 = vmul.f32 %v930, 1.442695
          %v993 = vpow.pop %v992
          %v994 = vmul.f32 %v931, 1.442695
          %v995 = vpow.pop %v994
          %v996 = vadd.f32 %v933, 1.0
          %v997 = vadd.f32 %v935, 1.0
          %v998 = vadd.f32 %v937, 1.0
          %v999 = vadd.f32 %v939, 1.0
          %v1000 = vadd.f32 %v941, 1.0
          %v1001 = vadd.f32 %v943, 1.0
          %v1002 = vadd.f32 %v945, 1.0
          %v1003 = vadd.f32 %v947, 1.0
          %v1004 = vadd.f32 %v949, 1.0
          %v1005 = vadd.f32 %v951, 1.0
          %v1006 = vadd.f32 %v953, 1.0
          %v1007 = vadd.f32 %v955, 1.0
          %v1008 = vadd.f32 %v957, 1.0
          %v1009 = vadd.f32 %v959, 1.0
          %v1010 = vadd.f32 %v961, 1.0
          %v1011 = vadd.f32 %v963, 1.0
          %v1012 = vadd.f32 %v965, 1.0
          %v1013 = vadd.f32 %v967, 1.0
          %v1014 = vadd.f32 %v969, 1.0
          %v1015 = vadd.f32 %v971, 1.0
          %v1016 = vadd.f32 %v973, 1.0
          %v1017 = vadd.f32 %v975, 1.0
          %v1018 = vadd.f32 %v977, 1.0
          %v1019 = vadd.f32 %v979, 1.0
          %v1020 = vadd.f32 %v981, 1.0
          %v1021 = vadd.f32 %v983, 1.0
          %v1022 = vadd.f32 %v985, 1.0
          %v1023 = vadd.f32 %v987, 1.0
          %v1024 = vadd.f32 %v989, 1.0
          %v1025 = vadd.f32 %v991, 1.0
          %v1026 = vadd.f32 %v993, 1.0
          %v1027 = vadd.f32 %v995, 1.0
          %v1028 = vrcp.pop %v996
          %v1029 = vmul.f32 1.0, %v1028
          %v1030 = vrcp.pop %v997
          %v1031 = vmul.f32 1.0, %v1030
          %v1032 = vrcp.pop %v998
          %v1033 = vmul.f32 1.0, %v1032
          %v1034 = vrcp.pop %v999
          %v1035 = vmul.f32 1.0, %v1034
          %v1036 = vrcp.pop %v1000
          %v1037 = vmul.f32 1.0, %v1036
          %v1038 = vrcp.pop %v1001
          %v1039 = vmul.f32 1.0, %v1038
          %v1040 = vrcp.pop %v1002
          %v1041 = vmul.f32 1.0, %v1040
          %v1042 = vrcp.pop %v1003
          %v1043 = vmul.f32 1.0, %v1042
          %v1044 = vrcp.pop %v1004
          %v1045 = vmul.f32 1.0, %v1044
          %v1046 = vrcp.pop %v1005
          %v1047 = vmul.f32 1.0, %v1046
          %v1048 = vrcp.pop %v1006
          %v1049 = vmul.f32 1.0, %v1048
          %v1050 = vrcp.pop %v1007
          %v1051 = vmul.f32 1.0, %v1050
          %v1052 = vrcp.pop %v1008
          %v1053 = vmul.f32 1.0, %v1052
          %v1054 = vrcp.pop %v1009
          %v1055 = vmul.f32 1.0, %v1054
          %v1056 = vrcp.pop %v1010
          %v1057 = vmul.f32 1.0, %v1056
          %v1058 = vrcp.pop %v1011
          %v1059 = vmul.f32 1.0, %v1058
          %v1060 = vrcp.pop %v1012
          %v1061 = vmul.f32 1.0, %v1060
          %v1062 = vrcp.pop %v1013
          %v1063 = vmul.f32 1.0, %v1062
          %v1064 = vrcp.pop %v1014
          %v1065 = vmul.f32 1.0, %v1064
          %v1066 = vrcp.pop %v1015
          %v1067 = vmul.f32 1.0, %v1066
          %v1068 = vrcp.pop %v1016
          %v1069 = vmul.f32 1.0, %v1068
          %v1070 = vrcp.pop %v1017
          %v1071 = vmul.f32 1.0, %v1070
          %v1072 = vrcp.pop %v1018
          %v1073 = vmul.f32 1.0, %v1072
          %v1074 = vrcp.pop %v1019
          %v1075 = vmul.f32 1.0, %v1074
          %v1076 = vrcp.pop %v1020
          %v1077 = vmul.f32 1.0, %v1076
          %v1078 = vrcp.pop %v1021
          %v1079 = vmul.f32 1.0, %v1078
          %v1080 = vrcp.pop %v1022
          %v1081 = vmul.f32 1.0, %v1080
          %v1082 = vrcp.pop %v1023
          %v1083 = vmul.f32 1.0, %v1082
          %v1084 = vrcp.pop %v1024
          %v1085 = vmul.f32 1.0, %v1084
          %v1086 = vrcp.pop %v1025
          %v1087 = vmul.f32 1.0, %v1086
          %v1088 = vrcp.pop %v1026
          %v1089 = vmul.f32 1.0, %v1088
          %v1090 = vrcp.pop %v1027
          %v1091 = vmul.f32 1.0, %v1090
          %v1092 = vmul.f32 %v774, %v1029
          %v1093 = vmul.f32 %v777, %v1031
          %v1094 = vmul.f32 %v782, %v1033
          %v1095 = vmul.f32 %v785, %v1035
          %v1096 = vmul.f32 %v790, %v1037
          %v1097 = vmul.f32 %v793, %v1039
          %v1098 = vmul.f32 %v798, %v1041
          %v1099 = vmul.f32 %v801, %v1043
          %v1100 = vmul.f32 %v806, %v1045
          %v1101 = vmul.f32 %v809, %v1047
          %v1102 = vmul.f32 %v814, %v1049
          %v1103 = vmul.f32 %v817, %v1051
          %v1104 = vmul.f32 %v822, %v1053
          %v1105 = vmul.f32 %v825, %v1055
          %v1106 = vmul.f32 %v830, %v1057
          %v1107 = vmul.f32 %v833, %v1059
          %v1108 = vmul.f32 %v838, %v1061
          %v1109 = vmul.f32 %v841, %v1063
          %v1110 = vmul.f32 %v846, %v1065
          %v1111 = vmul.f32 %v849, %v1067
          %v1112 = vmul.f32 %v854, %v1069
          %v1113 = vmul.f32 %v857, %v1071
          %v1114 = vmul.f32 %v862, %v1073
          %v1115 = vmul.f32 %v865, %v1075
          %v1116 = vmul.f32 %v870, %v1077
          %v1117 = vmul.f32 %v873, %v1079
          %v1118 = vmul.f32 %v878, %v1081
          %v1119 = vmul.f32 %v881, %v1083
          %v1120 = vmul.f32 %v886, %v1085
          %v1121 = vmul.f32 %v889, %v1087
          %v1122 = vmul.f32 %v894, %v1089
          %v1123 = vmul.f32 %v897, %v1091
          %v1124 = vld [vmem:[%s4] sm:$0x1]
          %v1125 = vlaneseq
          %v1126 = vshrl.u32 %v1125, 7
          %v1127 = vsub.s32 0, %v1126
          %v1128 = vrot.slane %v1124, %v1127
          %v1129 = vmul.f32 %v1092, %v1128
          %v1130 = vmul.f32 %v1093, %v1128
          %v1131 = vmul.f32 %v1094, %v1128
          %v1132 = vmul.f32 %v1095, %v1128
          %v1133 = vmul.f32 %v1096, %v1128
          %v1134 = vmul.f32 %v1097, %v1128
          %v1135 = vmul.f32 %v1098, %v1128
          %v1136 = vmul.f32 %v1099, %v1128
          %v1137 = vmul.f32 %v1100, %v1128
          %v1138 = vmul.f32 %v1101, %v1128
          %v1139 = vmul.f32 %v1102, %v1128
          %v1140 = vmul.f32 %v1103, %v1128
          %v1141 = vmul.f32 %v1104, %v1128
          %v1142 = vmul.f32 %v1105, %v1128
          %v1143 = vmul.f32 %v1106, %v1128
          %v1144 = vmul.f32 %v1107, %v1128
          %v1145 = vmul.f32 %v1108, %v1128
          %v1146 = vmul.f32 %v1109, %v1128
          %v1147 = vmul.f32 %v1110, %v1128
          %v1148 = vmul.f32 %v1111, %v1128
          %v1149 = vmul.f32 %v1112, %v1128
          %v1150 = vmul.f32 %v1113, %v1128
          %v1151 = vmul.f32 %v1114, %v1128
          %v1152 = vmul.f32 %v1115, %v1128
          %v1153 = vmul.f32 %v1116, %v1128
          %v1154 = vmul.f32 %v1117, %v1128
          %v1155 = vmul.f32 %v1118, %v1128
          %v1156 = vmul.f32 %v1119, %v1128
          %v1157 = vmul.f32 %v1120, %v1128
          %v1158 = vmul.f32 %v1121, %v1128
          %v1159 = vmul.f32 %v1122, %v1128
          %v1160 = vmul.f32 %v1123, %v1128
          %v1161 = vld [vmem:[%s5] sm:$0x1]
          %v1162 = vlaneseq
          %v1163 = vshrl.u32 %v1162, 7
          %v1164 = vsub.s32 0, %v1163
          %v1165 = vrot.slane %v1161, %v1164
          %v1166 = vadd.f32 %v1129, %v1165
          %v1167 = vadd.f32 %v1130, %v1165
          %v1168 = vadd.f32 %v1131, %v1165
          %v1169 = vadd.f32 %v1132, %v1165
          %v1170 = vadd.f32 %v1133, %v1165
          %v1171 = vadd.f32 %v1134, %v1165
          %v1172 = vadd.f32 %v1135, %v1165
          %v1173 = vadd.f32 %v1136, %v1165
          %v1174 = vadd.f32 %v1137, %v1165
          %v1175 = vadd.f32 %v1138, %v1165
          %v1176 = vadd.f32 %v1139, %v1165
          %v1177 = vadd.f32 %v1140, %v1165
          %v1178 = vadd.f32 %v1141, %v1165
          %v1179 = vadd.f32 %v1142, %v1165
          %v1180 = vadd.f32 %v1143, %v1165
          %v1181 = vadd.f32 %v1144, %v1165
          %v1182 = vadd.f32 %v1145, %v1165
          %v1183 = vadd.f32 %v1146, %v1165
          %v1184 = vadd.f32 %v1147, %v1165
          %v1185 = vadd.f32 %v1148, %v1165
          %v1186 = vadd.f32 %v1149, %v1165
          %v1187 = vadd.f32 %v1150, %v1165
          %v1188 = vadd.f32 %v1151, %v1165
          %v1189 = vadd.f32 %v1152, %v1165
          %v1190 = vadd.f32 %v1153, %v1165
          %v1191 = vadd.f32 %v1154, %v1165
          %v1192 = vadd.f32 %v1155, %v1165
          %v1193 = vadd.f32 %v1156, %v1165
          %v1194 = vadd.f32 %v1157, %v1165
          %v1195 = vadd.f32 %v1158, %v1165
          %v1196 = vadd.f32 %v1159, %v1165
          %v1197 = vadd.f32 %v1160, %v1165
          %v1198 = vpack.c.bf16 %v1167, %v1166
          %v1199 = vpack.c.bf16 %v1169, %v1168
          %v1200 = vpack.c.bf16 %v1171, %v1170
          %v1201 = vpack.c.bf16 %v1173, %v1172
          %v1202 = vpack.c.bf16 %v1175, %v1174
          %v1203 = vpack.c.bf16 %v1177, %v1176
          %v1204 = vpack.c.bf16 %v1179, %v1178
          %v1205 = vpack.c.bf16 %v1181, %v1180
          %v1206 = vpack.c.bf16 %v1183, %v1182
          %v1207 = vpack.c.bf16 %v1185, %v1184
          %v1208 = vpack.c.bf16 %v1187, %v1186
          %v1209 = vpack.c.bf16 %v1189, %v1188
          %v1210 = vpack.c.bf16 %v1191, %v1190
          %v1211 = vpack.c.bf16 %v1193, %v1192
          %v1212 = vpack.c.bf16 %v1195, %v1194
          %v1213 = vpack.c.bf16 %v1197, %v1196
          %1214 = vst [vmem:[#allocation2] sm:$0xff] %v1198
          %1215 = vst [vmem:[#allocation2 + $0x8] sm:$0xff] %v1199
          %1216 = vst [vmem:[#allocation2 + $0x10] sm:$0xff] %v1200
          %1217 = vst [vmem:[#allocation2 + $0x18] sm:$0xff] %v1201
          %1218 = vst [vmem:[#allocation2 + $0x20] sm:$0xff] %v1202
          %1219 = vst [vmem:[#allocation2 + $0x28] sm:$0xff] %v1203
          %1220 = vst [vmem:[#allocation2 + $0x30] sm:$0xff] %v1204
          %1221 = vst [vmem:[#allocation2 + $0x38] sm:$0xff] %v1205
          %1222 = vst [vmem:[#allocation2 + $0x40] sm:$0xff] %v1206
          %1223 = vst [vmem:[#allocation2 + $0x48] sm:$0xff] %v1207
          %1224 = vst [vmem:[#allocation2 + $0x50] sm:$0xff] %v1208
          %1225 = vst [vmem:[#allocation2 + $0x58] sm:$0xff] %v1209
          %1226 = vst [vmem:[#allocation2 + $0x60] sm:$0xff] %v1210
          %1227 = vst [vmem:[#allocation2 + $0x68] sm:$0xff] %v1211
          %1228 = vst [vmem:[#allocation2 + $0x70] sm:$0xff] %v1212
          %1229 = vst [vmem:[#allocation2 + $0x78] sm:$0xff] %v1213
        $region68: #{tpu_custom_call.1} parent=47 // pred_fallthru
          _
        %p1230 = scmp.eq.s32.totalorder %s34, 0
        // Predicated region
        $region69: #{tpu_custom_call.1} parent=47 // pred_check
          %p1231 = pneg %p1230
        $region70: #{tpu_custom_call.1} parent=47 // pred_check_branch
          %1233 = sbr.rel (%p1231) target = $region72
        $region71: #{tpu_custom_call.1} parent=47 // pred_region
          %v1234 = vld [vmem:[%s357] sm:$0xf]
          %v1235 = vld [vmem:[%s357 + $0x4] sm:$0xf]
          %v1236 = vld [vmem:[%s357 + $0x8] sm:$0xf]
          %v1237 = vld [vmem:[%s357 + $0xc] sm:$0xf]
          %v1238 = vld [vmem:[%s357 + $0x10] sm:$0xf]
          %v1239 = vld [vmem:[%s357 + $0x14] sm:$0xf]
          %v1240 = vld [vmem:[%s357 + $0x18] sm:$0xf]
          %v1241 = vld [vmem:[%s357 + $0x1c] sm:$0xf]
          %v1242 = vld [vmem:[%s357 + $0x20] sm:$0xf]
          %v1243 = vld [vmem:[%s357 + $0x24] sm:$0xf]
          %v1244 = vld [vmem:[%s357 + $0x28] sm:$0xf]
          %v1245 = vld [vmem:[%s357 + $0x2c] sm:$0xf]
          %v1246 = vld [vmem:[%s357 + $0x30] sm:$0xf]
          %v1247 = vld [vmem:[%s357 + $0x34] sm:$0xf]
          %v1248 = vld [vmem:[%s357 + $0x38] sm:$0xf]
          %v1249 = vld [vmem:[%s357 + $0x3c] sm:$0xf]
          %v1250 = vld [vmem:[%s357 + $0x40] sm:$0xf]
          %v1251 = vld [vmem:[%s357 + $0x44] sm:$0xf]
          %v1252 = vld [vmem:[%s357 + $0x48] sm:$0xf]
          %v1253 = vld [vmem:[%s357 + $0x4c] sm:$0xf]
          %v1254 = vld [vmem:[%s357 + $0x50] sm:$0xf]
          %v1255 = vld [vmem:[%s357 + $0x54] sm:$0xf]
          %v1256 = vld [vmem:[%s357 + $0x58] sm:$0xf]
          %v1257 = vld [vmem:[%s357 + $0x5c] sm:$0xf]
          %v1258 = vld [vmem:[%s357 + $0x60] sm:$0xf]
          %v1259 = vld [vmem:[%s357 + $0x64] sm:$0xf]
          %v1260 = vld [vmem:[%s357 + $0x68] sm:$0xf]
          %v1261 = vld [vmem:[%s357 + $0x6c] sm:$0xf]
          %v1262 = vld [vmem:[%s357 + $0x70] sm:$0xf]
          %v1263 = vld [vmem:[%s357 + $0x74] sm:$0xf]
          %v1264 = vld [vmem:[%s357 + $0x78] sm:$0xf]
          %v1265 = vld [vmem:[%s357 + $0x7c] sm:$0xf]
          %v1266 = vld [vmem:[#allocation12] sm:$0xff]
          %v1267 = vld [vmem:[#allocation12 + $0x8] sm:$0xff]
          %v1268 = vld [vmem:[#allocation12 + $0x10] sm:$0xff]
          %v1269 = vld [vmem:[#allocation12 + $0x18] sm:$0xff]
          %v1270 = vld [vmem:[#allocation12 + $0x20] sm:$0xff]
          %v1271 = vld [vmem:[#allocation12 + $0x28] sm:$0xff]
          %v1272 = vld [vmem:[#allocation12 + $0x30] sm:$0xff]
          %v1273 = vld [vmem:[#allocation12 + $0x38] sm:$0xff]
          %v1274 = vld [vmem:[#allocation12 + $0x40] sm:$0xff]
          %v1275 = vld [vmem:[#allocation12 + $0x48] sm:$0xff]
          %v1276 = vld [vmem:[#allocation12 + $0x50] sm:$0xff]
          %v1277 = vld [vmem:[#allocation12 + $0x58] sm:$0xff]
          %v1278 = vld [vmem:[#allocation12 + $0x60] sm:$0xff]
          %v1279 = vld [vmem:[#allocation12 + $0x68] sm:$0xff]
          %v1280 = vld [vmem:[#allocation12 + $0x70] sm:$0xff]
          %v1281 = vld [vmem:[#allocation12 + $0x78] sm:$0xff]
          %v1282 = vld [vmem:[%s3] sm:$0x3]
          %v1284 = vlaneseq
          %v1285 = vshrl.u32 %v1284, 7
          %v1286 = vsub.s32 0, %v1285
          %v1287 = vrot.slane %v1282, %v1286
          %v1288 = vlaneseq
          %v1289 = vshrl.u32 %v1288, 7
          %v1290 = vsub.s32 1, %v1289
          %v1291 = vrot.slane %v1282, %v1290
          %v1326 = vunpack.c.l.b16 %v1234
          %v1327 = vunpack.c.l.b16 %v1235
          %v1328 = vunpack.c.l.b16 %v1236
          %v1329 = vunpack.c.l.b16 %v1237
          %v1330 = vunpack.c.l.b16 %v1238
          %v1331 = vunpack.c.l.b16 %v1239
          %v1332 = vunpack.c.l.b16 %v1240
          %v1333 = vunpack.c.l.b16 %v1241
          %v1334 = vunpack.c.l.b16 %v1242
          %v1335 = vunpack.c.l.b16 %v1243
          %v1336 = vunpack.c.l.b16 %v1244
          %v1337 = vunpack.c.l.b16 %v1245
          %v1338 = vunpack.c.l.b16 %v1246
          %v1339 = vunpack.c.l.b16 %v1247
          %v1340 = vunpack.c.l.b16 %v1248
          %v1341 = vunpack.c.l.b16 %v1249
          %v1342 = vunpack.c.l.b16 %v1250
          %v1343 = vunpack.c.l.b16 %v1251
          %v1344 = vunpack.c.l.b16 %v1252
          %v1345 = vunpack.c.l.b16 %v1253
          %v1346 = vunpack.c.l.b16 %v1254
          %v1347 = vunpack.c.l.b16 %v1255
          %v1348 = vunpack.c.l.b16 %v1256
          %v1349 = vunpack.c.l.b16 %v1257
          %v1350 = vunpack.c.l.b16 %v1258
          %v1351 = vunpack.c.l.b16 %v1259
          %v1352 = vunpack.c.l.b16 %v1260
          %v1353 = vunpack.c.l.b16 %v1261
          %v1354 = vunpack.c.l.b16 %v1262
          %v1355 = vunpack.c.l.b16 %v1263
          %v1356 = vunpack.c.l.b16 %v1264
          %v1357 = vunpack.c.l.b16 %v1265
          %v1358 = vpack.c.b16 %v1327, %v1326
          %v1359 = vpack.c.b16 %v1329, %v1328
          %v1360 = vpack.c.b16 %v1331, %v1330
          %v1361 = vpack.c.b16 %v1333, %v1332
          %v1362 = vpack.c.b16 %v1335, %v1334
          %v1363 = vpack.c.b16 %v1337, %v1336
          %v1364 = vpack.c.b16 %v1339, %v1338
          %v1365 = vpack.c.b16 %v1341, %v1340
          %v1366 = vpack.c.b16 %v1343, %v1342
          %v1367 = vpack.c.b16 %v1345, %v1344
          %v1368 = vpack.c.b16 %v1347, %v1346
          %v1369 = vpack.c.b16 %v1349, %v1348
          %v1370 = vpack.c.b16 %v1351, %v1350
          %v1371 = vpack.c.b16 %v1353, %v1352
          %v1372 = vpack.c.b16 %v1355, %v1354
          %v1373 = vpack.c.b16 %v1357, %v1356
          %v1406 = vunpack.c.l.b16 %v1266
          %v1407 = vunpack.c.h.b16 %v1266
          %v1408 = vunpack.c.l.b16 %v1267
          %v1409 = vunpack.c.h.b16 %v1267
          %v1410 = vunpack.c.l.b16 %v1268
          %v1411 = vunpack.c.h.b16 %v1268
          %v1412 = vunpack.c.l.b16 %v1269
          %v1413 = vunpack.c.h.b16 %v1269
          %v1414 = vunpack.c.l.b16 %v1270
          %v1415 = vunpack.c.h.b16 %v1270
          %v1416 = vunpack.c.l.b16 %v1271
          %v1417 = vunpack.c.h.b16 %v1271
          %v1418 = vunpack.c.l.b16 %v1272
          %v1419 = vunpack.c.h.b16 %v1272
          %v1420 = vunpack.c.l.b16 %v1273
          %v1421 = vunpack.c.h.b16 %v1273
          %v1422 = vunpack.c.l.b16 %v1274
          %v1423 = vunpack.c.h.b16 %v1274
          %v1424 = vunpack.c.l.b16 %v1275
          %v1425 = vunpack.c.h.b16 %v1275
          %v1426 = vunpack.c.l.b16 %v1276
          %v1427 = vunpack.c.h.b16 %v1276
          %v1428 = vunpack.c.l.b16 %v1277
          %v1429 = vunpack.c.h.b16 %v1277
          %v1430 = vunpack.c.l.b16 %v1278
          %v1431 = vunpack.c.h.b16 %v1278
          %v1432 = vunpack.c.l.b16 %v1279
          %v1433 = vunpack.c.h.b16 %v1279
          %v1434 = vunpack.c.l.b16 %v1280
          %v1435 = vunpack.c.h.b16 %v1280
          %v1436 = vunpack.c.l.b16 %v1281
          %v1437 = vunpack.c.h.b16 %v1281
          %v1438 = vpack.c.b16 %v1408, %v1406
          %v1439 = vpack.c.b16 %v1409, %v1407
          %v1440 = vpack.c.b16 %v1412, %v1410
          %v1441 = vpack.c.b16 %v1413, %v1411
          %v1442 = vpack.c.b16 %v1416, %v1414
          %v1443 = vpack.c.b16 %v1417, %v1415
          %v1444 = vpack.c.b16 %v1420, %v1418
          %v1445 = vpack.c.b16 %v1421, %v1419
          %v1446 = vpack.c.b16 %v1424, %v1422
          %v1447 = vpack.c.b16 %v1425, %v1423
          %v1448 = vpack.c.b16 %v1428, %v1426
          %v1449 = vpack.c.b16 %v1429, %v1427
          %v1450 = vpack.c.b16 %v1432, %v1430
          %v1451 = vpack.c.b16 %v1433, %v1431
          %v1452 = vpack.c.b16 %v1436, %v1434
          %v1453 = vpack.c.b16 %v1437, %v1435
          %1470 = vmatprep.subr.bf16.mxu0 %v1439
          %1471 = vmatpush1.bf16.msra.mxu0 %v1438
          %1472 = vmatprep.subr.bf16.mxu0 %v1441
          %1473 = vmatpush1.bf16.msra.mxu0 %v1440
          %1474 = vmatprep.subr.bf16.mxu0 %v1443
          %1475 = vmatpush1.bf16.msra.mxu0 %v1442
          %1476 = vmatprep.subr.bf16.mxu0 %v1445
          %1477 = vmatpush1.bf16.msra.mxu0 %v1444
          %1478 = vmatprep.subr.bf16.mxu0 %v1447
          %1479 = vmatpush1.bf16.msra.mxu0 %v1446
          %1480 = vmatprep.subr.bf16.mxu0 %v1449
          %1481 = vmatpush1.bf16.msra.mxu0 %v1448
          %1482 = vmatprep.subr.bf16.mxu0 %v1451
          %1483 = vmatpush1.bf16.msra.mxu0 %v1450
          %1484 = vmatprep.subr.bf16.mxu0 %v1453
          %1485 = vmatpush1.bf16.msra.mxu0 %v1452
          %1486 = vmatprep.subr.bf16.mxu0 0
          %1487 = vmatpush1.bf16.msra.mxu0 0
          %1488 = vmatprep.subr.bf16.mxu0 0
          %1489 = vmatpush1.bf16.msra.mxu0 0
          %1490 = vmatprep.subr.bf16.mxu0 0
          %1491 = vmatpush1.bf16.msra.mxu0 0
          %1492 = vmatprep.subr.bf16.mxu0 0
          %1493 = vmatpush1.bf16.msra.mxu0 0
          %1494 = vmatprep.subr.bf16.mxu0 0
          %1495 = vmatpush1.bf16.msra.mxu0 0
          %1496 = vmatprep.subr.bf16.mxu0 0
          %1497 = vmatpush1.bf16.msra.mxu0 0
          %1498 = vmatprep.subr.bf16.mxu0 0
          %1499 = vmatpush1.bf16.msra.mxu0 0
          %1500 = vmatprep.subr.bf16.mxu0 0
          %1501 = vmatpush1.bf16.msra.mxu0 0
          %1502 = vmatprep.mubr.bf16.mxu0 0
          %1503 = vmatmul.mubr.bf16.gmra.mrb[0].mxu0 %v1358
          %v1504 = vpop.f32.mrb[0].mxu0
          %v1505 = vadd.f32 %v1287, %v1504
          %v1506 = vpop.f32.mrb[0].mxu0
          %v1507 = vadd.f32 %v1291, %v1506
          %v1508 = vpop.f32.mrb[0].mxu0
          %v1509 = vadd.f32 %v1287, %v1508
          %v1510 = vpop.f32.mrb[0].mxu0
          %v1511 = vadd.f32 %v1291, %v1510
          %1512 = vmatprep.mubr.bf16.mxu0 0
          %1513 = vmatmul.mubr.bf16.gmra.mrb[0].mxu0 %v1359
          %v1514 = vpop.f32.mrb[0].mxu0
          %v1515 = vadd.f32 %v1287, %v1514
          %v1516 = vpop.f32.mrb[0].mxu0
          %v1517 = vadd.f32 %v1291, %v1516
          %v1518 = vpop.f32.mrb[0].mxu0
          %v1519 = vadd.f32 %v1287, %v1518
          %v1520 = vpop.f32.mrb[0].mxu0
          %v1521 = vadd.f32 %v1291, %v1520
          %1522 = vmatprep.mubr.bf16.mxu0 0
          %1523 = vmatmul.mubr.bf16.gmra.mrb[0].mxu0 %v1360
          %v1524 = vpop.f32.mrb[0].mxu0
          %v1525 = vadd.f32 %v1287, %v1524
          %v1526 = vpop.f32.mrb[0].mxu0
          %v1527 = vadd.f32 %v1291, %v1526
          %v1528 = vpop.f32.mrb[0].mxu0
          %v1529 = vadd.f32 %v1287, %v1528
          %v1530 = vpop.f32.mrb[0].mxu0
          %v1531 = vadd.f32 %v1291, %v1530
          %1532 = vmatprep.mubr.bf16.mxu0 0
          %1533 = vmatmul.mubr.bf16.gmra.mrb[0].mxu0 %v1361
          %v1534 = vpop.f32.mrb[0].mxu0
          %v1535 = vadd.f32 %v1287, %v1534
          %v1536 = vpop.f32.mrb[0].mxu0
          %v1537 = vadd.f32 %v1291, %v1536
          %v1538 = vpop.f32.mrb[0].mxu0
          %v1539 = vadd.f32 %v1287, %v1538
          %v1540 = vpop.f32.mrb[0].mxu0
          %v1541 = vadd.f32 %v1291, %v1540
          %1542 = vmatprep.mubr.bf16.mxu0 0
          %1543 = vmatmul.mubr.bf16.gmra.mrb[0].mxu0 %v1362
          %v1544 = vpop.f32.mrb[0].mxu0
          %v1545 = vadd.f32 %v1287, %v1544
          %v1546 = vpop.f32.mrb[0].mxu0
          %v1547 = vadd.f32 %v1291, %v1546
          %v1548 = vpop.f32.mrb[0].mxu0
          %v1549 = vadd.f32 %v1287, %v1548
          %v1550 = vpop.f32.mrb[0].mxu0
          %v1551 = vadd.f32 %v1291, %v1550
          %1552 = vmatprep.mubr.bf16.mxu0 0
          %1553 = vmatmul.mubr.bf16.gmra.mrb[0].mxu0 %v1363
          %v1554 = vpop.f32.mrb[0].mxu0
          %v1555 = vadd.f32 %v1287, %v1554
          %v1556 = vpop.f32.mrb[0].mxu0
          %v1557 = vadd.f32 %v1291, %v1556
          %v1558 = vpop.f32.mrb[0].mxu0
          %v1559 = vadd.f32 %v1287, %v1558
          %v1560 = vpop.f32.mrb[0].mxu0
          %v1561 = vadd.f32 %v1291, %v1560
          %1562 = vmatprep.mubr.bf16.mxu0 0
          %1563 = vmatmul.mubr.bf16.gmra.mrb[0].mxu0 %v1364
          %v1564 = vpop.f32.mrb[0].mxu0
          %v1565 = vadd.f32 %v1287, %v1564
          %v1566 = vpop.f32.mrb[0].mxu0
          %v1567 = vadd.f32 %v1291, %v1566
          %v1568 = vpop.f32.mrb[0].mxu0
          %v1569 = vadd.f32 %v1287, %v1568
          %v1570 = vpop.f32.mrb[0].mxu0
          %v1571 = vadd.f32 %v1291, %v1570
          %1572 = vmatprep.mubr.bf16.mxu0 0
          %1573 = vmatmul.mubr.bf16.gmra.mrb[0].mxu0 %v1365
          %v1574 = vpop.f32.mrb[0].mxu0
          %v1575 = vadd.f32 %v1287, %v1574
          %v1576 = vpop.f32.mrb[0].mxu0
          %v1577 = vadd.f32 %v1291, %v1576
          %v1578 = vpop.f32.mrb[0].mxu0
          %v1579 = vadd.f32 %v1287, %v1578
          %v1580 = vpop.f32.mrb[0].mxu0
          %v1581 = vadd.f32 %v1291, %v1580
          %1582 = vmatprep.mubr.bf16.mxu0 0
          %1583 = vmatmul.mubr.bf16.gmra.mrb[0].mxu0 %v1366
          %v1584 = vpop.f32.mrb[0].mxu0
          %v1585 = vadd.f32 %v1287, %v1584
          %v1586 = vpop.f32.mrb[0].mxu0
          %v1587 = vadd.f32 %v1291, %v1586
          %v1588 = vpop.f32.mrb[0].mxu0
          %v1589 = vadd.f32 %v1287, %v1588
          %v1590 = vpop.f32.mrb[0].mxu0
          %v1591 = vadd.f32 %v1291, %v1590
          %1592 = vmatprep.mubr.bf16.mxu0 0
          %1593 = vmatmul.mubr.bf16.gmra.mrb[0].mxu0 %v1367
          %v1594 = vpop.f32.mrb[0].mxu0
          %v1595 = vadd.f32 %v1287, %v1594
          %v1596 = vpop.f32.mrb[0].mxu0
          %v1597 = vadd.f32 %v1291, %v1596
          %v1598 = vpop.f32.mrb[0].mxu0
          %v1599 = vadd.f32 %v1287, %v1598
          %v1600 = vpop.f32.mrb[0].mxu0
          %v1601 = vadd.f32 %v1291, %v1600
          %1602 = vmatprep.mubr.bf16.mxu0 0
          %1603 = vmatmul.mubr.bf16.gmra.mrb[0].mxu0 %v1368
          %v1604 = vpop.f32.mrb[0].mxu0
          %v1605 = vadd.f32 %v1287, %v1604
          %v1606 = vpop.f32.mrb[0].mxu0
          %v1607 = vadd.f32 %v1291, %v1606
          %v1608 = vpop.f32.mrb[0].mxu0
          %v1609 = vadd.f32 %v1287, %v1608
          %v1610 = vpop.f32.mrb[0].mxu0
          %v1611 = vadd.f32 %v1291, %v1610
          %1612 = vmatprep.mubr.bf16.mxu0 0
          %1613 = vmatmul.mubr.bf16.gmra.mrb[0].mxu0 %v1369
          %v1614 = vpop.f32.mrb[0].mxu0
          %v1615 = vadd.f32 %v1287, %v1614
          %v1616 = vpop.f32.mrb[0].mxu0
          %v1617 = vadd.f32 %v1291, %v1616
          %v1618 = vpop.f32.mrb[0].mxu0
          %v1619 = vadd.f32 %v1287, %v1618
          %v1620 = vpop.f32.mrb[0].mxu0
          %v1621 = vadd.f32 %v1291, %v1620
          %1622 = vmatprep.mubr.bf16.mxu0 0
          %1623 = vmatmul.mubr.bf16.gmra.mrb[0].mxu0 %v1370
          %v1624 = vpop.f32.mrb[0].mxu0
          %v1625 = vadd.f32 %v1287, %v1624
          %v1626 = vpop.f32.mrb[0].mxu0
          %v1627 = vadd.f32 %v1291, %v1626
          %v1628 = vpop.f32.mrb[0].mxu0
          %v1629 = vadd.f32 %v1287, %v1628
          %v1630 = vpop.f32.mrb[0].mxu0
          %v1631 = vadd.f32 %v1291, %v1630
          %1632 = vmatprep.mubr.bf16.mxu0 0
          %1633 = vmatmul.mubr.bf16.gmra.mrb[0].mxu0 %v1371
          %v1634 = vpop.f32.mrb[0].mxu0
          %v1635 = vadd.f32 %v1287, %v1634
          %v1636 = vpop.f32.mrb[0].mxu0
          %v1637 = vadd.f32 %v1291, %v1636
          %v1638 = vpop.f32.mrb[0].mxu0
          %v1639 = vadd.f32 %v1287, %v1638
          %v1640 = vpop.f32.mrb[0].mxu0
          %v1641 = vadd.f32 %v1291, %v1640
          %1642 = vmatprep.mubr.bf16.mxu0 0
          %1643 = vmatmul.mubr.bf16.gmra.mrb[0].mxu0 %v1372
          %v1644 = vpop.f32.mrb[0].mxu0
          %v1645 = vadd.f32 %v1287, %v1644
          %v1646 = vpop.f32.mrb[0].mxu0
          %v1647 = vadd.f32 %v1291, %v1646
          %v1648 = vpop.f32.mrb[0].mxu0
          %v1649 = vadd.f32 %v1287, %v1648
          %v1650 = vpop.f32.mrb[0].mxu0
          %v1651 = vadd.f32 %v1291, %v1650
          %1652 = vmatprep.mubr.bf16.mxu0 0
          %1653 = vmatmul.mubr.bf16.gmra.mrb[0].mxu0 %v1373
          %v1654 = vpop.f32.mrb[0].mxu0
          %v1655 = vadd.f32 %v1287, %v1654
          %v1656 = vpop.f32.mrb[0].mxu0
          %v1657 = vadd.f32 %v1291, %v1656
          %v1658 = vpop.f32.mrb[0].mxu0
          %v1659 = vadd.f32 %v1287, %v1658
          %v1660 = vpop.f32.mrb[0].mxu0
          %v1661 = vadd.f32 %v1291, %v1660
          %1662 = vdwg.mxu0
          %v1663 = vxor.u32 %v1505, 2147483648
          %v1664 = vxor.u32 %v1507, 2147483648
          %v1665 = vxor.u32 %v1509, 2147483648
          %v1666 = vxor.u32 %v1511, 2147483648
          %v1667 = vxor.u32 %v1515, 2147483648
          %v1668 = vxor.u32 %v1517, 2147483648
          %v1669 = vxor.u32 %v1519, 2147483648
          %v1670 = vxor.u32 %v1521, 2147483648
          %v1671 = vxor.u32 %v1525, 2147483648
          %v1672 = vxor.u32 %v1527, 2147483648
          %v1673 = vxor.u32 %v1529, 2147483648
          %v1674 = vxor.u32 %v1531, 2147483648
          %v1675 = vxor.u32 %v1535, 2147483648
          %v1676 = vxor.u32 %v1537, 2147483648
          %v1677 = vxor.u32 %v1539, 2147483648
          %v1678 = vxor.u32 %v1541, 2147483648
          %v1679 = vxor.u32 %v1545, 2147483648
          %v1680 = vxor.u32 %v1547, 2147483648
          %v1681 = vxor.u32 %v1549, 2147483648
          %v1682 = vxor.u32 %v1551, 2147483648
          %v1683 = vxor.u32 %v1555, 2147483648
          %v1684 = vxor.u32 %v1557, 2147483648
          %v1685 = vxor.u32 %v1559, 2147483648
          %v1686 = vxor.u32 %v1561, 2147483648
          %v1687 = vxor.u32 %v1565, 2147483648
          %v1688 = vxor.u32 %v1567, 2147483648
          %v1689 = vxor.u32 %v1569, 2147483648
          %v1690 = vxor.u32 %v1571, 2147483648
          %v1691 = vxor.u32 %v1575, 2147483648
          %v1692 = vxor.u32 %v1577, 2147483648
          %v1693 = vxor.u32 %v1579, 2147483648
          %v1694 = vxor.u32 %v1581, 2147483648
          %v1695 = vxor.u32 %v1585, 2147483648
          %v1696 = vxor.u32 %v1587, 2147483648
          %v1697 = vxor.u32 %v1589, 2147483648
          %v1698 = vxor.u32 %v1591, 2147483648
          %v1699 = vxor.u32 %v1595, 2147483648
          %v1700 = vxor.u32 %v1597, 2147483648
          %v1701 = vxor.u32 %v1599, 2147483648
          %v1702 = vxor.u32 %v1601, 2147483648
          %v1703 = vxor.u32 %v1605, 2147483648
          %v1704 = vxor.u32 %v1607, 2147483648
          %v1705 = vxor.u32 %v1609, 2147483648
          %v1706 = vxor.u32 %v1611, 2147483648
          %v1707 = vxor.u32 %v1615, 2147483648
          %v1708 = vxor.u32 %v1617, 2147483648
          %v1709 = vxor.u32 %v1619, 2147483648
          %v1710 = vxor.u32 %v1621, 2147483648
          %v1711 = vxor.u32 %v1625, 2147483648
          %v1712 = vxor.u32 %v1627, 2147483648
          %v1713 = vxor.u32 %v1629, 2147483648
          %v1714 = vxor.u32 %v1631, 2147483648
          %v1715 = vxor.u32 %v1635, 2147483648
          %v1716 = vxor.u32 %v1637, 2147483648
          %v1717 = vxor.u32 %v1639, 2147483648
          %v1718 = vxor.u32 %v1641, 2147483648
          %v1719 = vxor.u32 %v1645, 2147483648
          %v1720 = vxor.u32 %v1647, 2147483648
          %v1721 = vxor.u32 %v1649, 2147483648
          %v1722 = vxor.u32 %v1651, 2147483648
          %v1723 = vxor.u32 %v1655, 2147483648
          %v1724 = vxor.u32 %v1657, 2147483648
          %v1725 = vxor.u32 %v1659, 2147483648
          %v1726 = vxor.u32 %v1661, 2147483648
          %v1727 = vmul.f32 %v1663, 1.442695
          %v1728 = vpow.pop %v1727
          %v1729 = vmul.f32 %v1664, 1.442695
          %v1730 = vpow.pop %v1729
          %v1731 = vmul.f32 %v1665, 1.442695
          %v1732 = vpow.pop %v1731
          %v1733 = vmul.f32 %v1666, 1.442695
          %v1734 = vpow.pop %v1733
          %v1735 = vmul.f32 %v1667, 1.442695
          %v1736 = vpow.pop %v1735
          %v1737 = vmul.f32 %v1668, 1.442695
          %v1738 = vpow.pop %v1737
          %v1739 = vmul.f32 %v1669, 1.442695
          %v1740 = vpow.pop %v1739
          %v1741 = vmul.f32 %v1670, 1.442695
          %v1742 = vpow.pop %v1741
          %v1743 = vmul.f32 %v1671, 1.442695
          %v1744 = vpow.pop %v1743
          %v1745 = vmul.f32 %v1672, 1.442695
          %v1746 = vpow.pop %v1745
          %v1747 = vmul.f32 %v1673, 1.442695
          %v1748 = vpow.pop %v1747
          %v1749 = vmul.f32 %v1674, 1.442695
          %v1750 = vpow.pop %v1749
          %v1751 = vmul.f32 %v1675, 1.442695
          %v1752 = vpow.pop %v1751
          %v1753 = vmul.f32 %v1676, 1.442695
          %v1754 = vpow.pop %v1753
          %v1755 = vmul.f32 %v1677, 1.442695
          %v1756 = vpow.pop %v1755
          %v1757 = vmul.f32 %v1678, 1.442695
          %v1758 = vpow.pop %v1757
          %v1759 = vmul.f32 %v1679, 1.442695
          %v1760 = vpow.pop %v1759
          %v1761 = vmul.f32 %v1680, 1.442695
          %v1762 = vpow.pop %v1761
          %v1763 = vmul.f32 %v1681, 1.442695
          %v1764 = vpow.pop %v1763
          %v1765 = vmul.f32 %v1682, 1.442695
          %v1766 = vpow.pop %v1765
          %v1767 = vmul.f32 %v1683, 1.442695
          %v1768 = vpow.pop %v1767
          %v1769 = vmul.f32 %v1684, 1.442695
          %v1770 = vpow.pop %v1769
          %v1771 = vmul.f32 %v1685, 1.442695
          %v1772 = vpow.pop %v1771
          %v1773 = vmul.f32 %v1686, 1.442695
          %v1774 = vpow.pop %v1773
          %v1775 = vmul.f32 %v1687, 1.442695
          %v1776 = vpow.pop %v1775
          %v1777 = vmul.f32 %v1688, 1.442695
          %v1778 = vpow.pop %v1777
          %v1779 = vmul.f32 %v1689, 1.442695
          %v1780 = vpow.pop %v1779
          %v1781 = vmul.f32 %v1690, 1.442695
          %v1782 = vpow.pop %v1781
          %v1783 = vmul.f32 %v1691, 1.442695
          %v1784 = vpow.pop %v1783
          %v1785 = vmul.f32 %v1692, 1.442695
          %v1786 = vpow.pop %v1785
          %v1787 = vmul.f32 %v1693, 1.442695
          %v1788 = vpow.pop %v1787
          %v1789 = vmul.f32 %v1694, 1.442695
          %v1790 = vpow.pop %v1789
          %v1791 = vmul.f32 %v1695, 1.442695
          %v1792 = vpow.pop %v1791
          %v1793 = vmul.f32 %v1696, 1.442695
          %v1794 = vpow.pop %v1793
          %v1795 = vmul.f32 %v1697, 1.442695
          %v1796 = vpow.pop %v1795
          %v1797 = vmul.f32 %v1698, 1.442695
          %v1798 = vpow.pop %v1797
          %v1799 = vmul.f32 %v1699, 1.442695
          %v1800 = vpow.pop %v1799
          %v1801 = vmul.f32 %v1700, 1.442695
          %v1802 = vpow.pop %v1801
          %v1803 = vmul.f32 %v1701, 1.442695
          %v1804 = vpow.pop %v1803
          %v1805 = vmul.f32 %v1702, 1.442695
          %v1806 = vpow.pop %v1805
          %v1807 = vmul.f32 %v1703, 1.442695
          %v1808 = vpow.pop %v1807
          %v1809 = vmul.f32 %v1704, 1.442695
          %v1810 = vpow.pop %v1809
          %v1811 = vmul.f32 %v1705, 1.442695
          %v1812 = vpow.pop %v1811
          %v1813 = vmul.f32 %v1706, 1.442695
          %v1814 = vpow.pop %v1813
          %v1815 = vmul.f32 %v1707, 1.442695
          %v1816 = vpow.pop %v1815
          %v1817 = vmul.f32 %v1708, 1.442695
          %v1818 = vpow.pop %v1817
          %v1819 = vmul.f32 %v1709, 1.442695
          %v1820 = vpow.pop %v1819
          %v1821 = vmul.f32 %v1710, 1.442695
          %v1822 = vpow.pop %v1821
          %v1823 = vmul.f32 %v1711, 1.442695
          %v1824 = vpow.pop %v1823
          %v1825 = vmul.f32 %v1712, 1.442695
          %v1826 = vpow.pop %v1825
          %v1827 = vmul.f32 %v1713, 1.442695
          %v1828 = vpow.pop %v1827
          %v1829 = vmul.f32 %v1714, 1.442695
          %v1830 = vpow.pop %v1829
          %v1831 = vmul.f32 %v1715, 1.442695
          %v1832 = vpow.pop %v1831
          %v1833 = vmul.f32 %v1716, 1.442695
          %v1834 = vpow.pop %v1833
          %v1835 = vmul.f32 %v1717, 1.442695
          %v1836 = vpow.pop %v1835
          %v1837 = vmul.f32 %v1718, 1.442695
          %v1838 = vpow.pop %v1837
          %v1839 = vmul.f32 %v1719, 1.442695
          %v1840 = vpow.pop %v1839
          %v1841 = vmul.f32 %v1720, 1.442695
          %v1842 = vpow.pop %v1841
          %v1843 = vmul.f32 %v1721, 1.442695
          %v1844 = vpow.pop %v1843
          %v1845 = vmul.f32 %v1722, 1.442695
          %v1846 = vpow.pop %v1845
          %v1847 = vmul.f32 %v1723, 1.442695
          %v1848 = vpow.pop %v1847
          %v1849 = vmul.f32 %v1724, 1.442695
          %v1850 = vpow.pop %v1849
          %v1851 = vmul.f32 %v1725, 1.442695
          %v1852 = vpow.pop %v1851
          %v1853 = vmul.f32 %v1726, 1.442695
          %v1854 = vpow.pop %v1853
          %v1855 = vadd.f32 %v1728, 1.0
          %v1856 = vadd.f32 %v1730, 1.0
          %v1857 = vadd.f32 %v1732, 1.0
          %v1858 = vadd.f32 %v1734, 1.0
          %v1859 = vadd.f32 %v1736, 1.0
          %v1860 = vadd.f32 %v1738, 1.0
          %v1861 = vadd.f32 %v1740, 1.0
          %v1862 = vadd.f32 %v1742, 1.0
          %v1863 = vadd.f32 %v1744, 1.0
          %v1864 = vadd.f32 %v1746, 1.0
          %v1865 = vadd.f32 %v1748, 1.0
          %v1866 = vadd.f32 %v1750, 1.0
          %v1867 = vadd.f32 %v1752, 1.0
          %v1868 = vadd.f32 %v1754, 1.0
          %v1869 = vadd.f32 %v1756, 1.0
          %v1870 = vadd.f32 %v1758, 1.0
          %v1871 = vadd.f32 %v1760, 1.0
          %v1872 = vadd.f32 %v1762, 1.0
          %v1873 = vadd.f32 %v1764, 1.0
          %v1874 = vadd.f32 %v1766, 1.0
          %v1875 = vadd.f32 %v1768, 1.0
          %v1876 = vadd.f32 %v1770, 1.0
          %v1877 = vadd.f32 %v1772, 1.0
          %v1878 = vadd.f32 %v1774, 1.0
          %v1879 = vadd.f32 %v1776, 1.0
          %v1880 = vadd.f32 %v1778, 1.0
          %v1881 = vadd.f32 %v1780, 1.0
          %v1882 = vadd.f32 %v1782, 1.0
          %v1883 = vadd.f32 %v1784, 1.0
          %v1884 = vadd.f32 %v1786, 1.0
          %v1885 = vadd.f32 %v1788, 1.0
          %v1886 = vadd.f32 %v1790, 1.0
          %v1887 = vadd.f32 %v1792, 1.0
          %v1888 = vadd.f32 %v1794, 1.0
          %v1889 = vadd.f32 %v1796, 1.0
          %v1890 = vadd.f32 %v1798, 1.0
          %v1891 = vadd.f32 %v1800, 1.0
          %v1892 = vadd.f32 %v1802, 1.0
          %v1893 = vadd.f32 %v1804, 1.0
          %v1894 = vadd.f32 %v1806, 1.0
          %v1895 = vadd.f32 %v1808, 1.0
          %v1896 = vadd.f32 %v1810, 1.0
          %v1897 = vadd.f32 %v1812, 1.0
          %v1898 = vadd.f32 %v1814, 1.0
          %v1899 = vadd.f32 %v1816, 1.0
          %v1900 = vadd.f32 %v1818, 1.0
          %v1901 = vadd.f32 %v1820, 1.0
          %v1902 = vadd.f32 %v1822, 1.0
          %v1903 = vadd.f32 %v1824, 1.0
          %v1904 = vadd.f32 %v1826, 1.0
          %v1905 = vadd.f32 %v1828, 1.0
          %v1906 = vadd.f32 %v1830, 1.0
          %v1907 = vadd.f32 %v1832, 1.0
          %v1908 = vadd.f32 %v1834, 1.0
          %v1909 = vadd.f32 %v1836, 1.0
          %v1910 = vadd.f32 %v1838, 1.0
          %v1911 = vadd.f32 %v1840, 1.0
          %v1912 = vadd.f32 %v1842, 1.0
          %v1913 = vadd.f32 %v1844, 1.0
          %v1914 = vadd.f32 %v1846, 1.0
          %v1915 = vadd.f32 %v1848, 1.0
          %v1916 = vadd.f32 %v1850, 1.0
          %v1917 = vadd.f32 %v1852, 1.0
          %v1918 = vadd.f32 %v1854, 1.0
          %v1919 = vrcp.pop %v1855
          %v1920 = vmul.f32 1.0, %v1919
          %v1921 = vrcp.pop %v1856
          %v1922 = vmul.f32 1.0, %v1921
          %v1923 = vrcp.pop %v1857
          %v1924 = vmul.f32 1.0, %v1923
          %v1925 = vrcp.pop %v1858
          %v1926 = vmul.f32 1.0, %v1925
          %v1927 = vrcp.pop %v1859
          %v1928 = vmul.f32 1.0, %v1927
          %v1929 = vrcp.pop %v1860
          %v1930 = vmul.f32 1.0, %v1929
          %v1931 = vrcp.pop %v1861
          %v1932 = vmul.f32 1.0, %v1931
          %v1933 = vrcp.pop %v1862
          %v1934 = vmul.f32 1.0, %v1933
          %v1935 = vrcp.pop %v1863
          %v1936 = vmul.f32 1.0, %v1935
          %v1937 = vrcp.pop %v1864
          %v1938 = vmul.f32 1.0, %v1937
          %v1939 = vrcp.pop %v1865
          %v1940 = vmul.f32 1.0, %v1939
          %v1941 = vrcp.pop %v1866
          %v1942 = vmul.f32 1.0, %v1941
          %v1943 = vrcp.pop %v1867
          %v1944 = vmul.f32 1.0, %v1943
          %v1945 = vrcp.pop %v1868
          %v1946 = vmul.f32 1.0, %v1945
          %v1947 = vrcp.pop %v1869
          %v1948 = vmul.f32 1.0, %v1947
          %v1949 = vrcp.pop %v1870
          %v1950 = vmul.f32 1.0, %v1949
          %v1951 = vrcp.pop %v1871
          %v1952 = vmul.f32 1.0, %v1951
          %v1953 = vrcp.pop %v1872
          %v1954 = vmul.f32 1.0, %v1953
          %v1955 = vrcp.pop %v1873
          %v1956 = vmul.f32 1.0, %v1955
          %v1957 = vrcp.pop %v1874
          %v1958 = vmul.f32 1.0, %v1957
          %v1959 = vrcp.pop %v1875
          %v1960 = vmul.f32 1.0, %v1959
          %v1961 = vrcp.pop %v1876
          %v1962 = vmul.f32 1.0, %v1961
          %v1963 = vrcp.pop %v1877
          %v1964 = vmul.f32 1.0, %v1963
          %v1965 = vrcp.pop %v1878
          %v1966 = vmul.f32 1.0, %v1965
          %v1967 = vrcp.pop %v1879
          %v1968 = vmul.f32 1.0, %v1967
          %v1969 = vrcp.pop %v1880
          %v1970 = vmul.f32 1.0, %v1969
          %v1971 = vrcp.pop %v1881
          %v1972 = vmul.f32 1.0, %v1971
          %v1973 = vrcp.pop %v1882
          %v1974 = vmul.f32 1.0, %v1973
          %v1975 = vrcp.pop %v1883
          %v1976 = vmul.f32 1.0, %v1975
          %v1977 = vrcp.pop %v1884
          %v1978 = vmul.f32 1.0, %v1977
          %v1979 = vrcp.pop %v1885
          %v1980 = vmul.f32 1.0, %v1979
          %v1981 = vrcp.pop %v1886
          %v1982 = vmul.f32 1.0, %v1981
          %v1983 = vrcp.pop %v1887
          %v1984 = vmul.f32 1.0, %v1983
          %v1985 = vrcp.pop %v1888
          %v1986 = vmul.f32 1.0, %v1985
          %v1987 = vrcp.pop %v1889
          %v1988 = vmul.f32 1.0, %v1987
          %v1989 = vrcp.pop %v1890
          %v1990 = vmul.f32 1.0, %v1989
          %v1991 = vrcp.pop %v1891
          %v1992 = vmul.f32 1.0, %v1991
          %v1993 = vrcp.pop %v1892
          %v1994 = vmul.f32 1.0, %v1993
          %v1995 = vrcp.pop %v1893
          %v1996 = vmul.f32 1.0, %v1995
          %v1997 = vrcp.pop %v1894
          %v1998 = vmul.f32 1.0, %v1997
          %v1999 = vrcp.pop %v1895
          %v2000 = vmul.f32 1.0, %v1999
          %v2001 = vrcp.pop %v1896
          %v2002 = vmul.f32 1.0, %v2001
          %v2003 = vrcp.pop %v1897
          %v2004 = vmul.f32 1.0, %v2003
          %v2005 = vrcp.pop %v1898
          %v2006 = vmul.f32 1.0, %v2005
          %v2007 = vrcp.pop %v1899
          %v2008 = vmul.f32 1.0, %v2007
          %v2009 = vrcp.pop %v1900
          %v2010 = vmul.f32 1.0, %v2009
          %v2011 = vrcp.pop %v1901
          %v2012 = vmul.f32 1.0, %v2011
          %v2013 = vrcp.pop %v1902
          %v2014 = vmul.f32 1.0, %v2013
          %v2015 = vrcp.pop %v1903
          %v2016 = vmul.f32 1.0, %v2015
          %v2017 = vrcp.pop %v1904
          %v2018 = vmul.f32 1.0, %v2017
          %v2019 = vrcp.pop %v1905
          %v2020 = vmul.f32 1.0, %v2019
          %v2021 = vrcp.pop %v1906
          %v2022 = vmul.f32 1.0, %v2021
          %v2023 = vrcp.pop %v1907
          %v2024 = vmul.f32 1.0, %v2023
          %v2025 = vrcp.pop %v1908
          %v2026 = vmul.f32 1.0, %v2025
          %v2027 = vrcp.pop %v1909
          %v2028 = vmul.f32 1.0, %v2027
          %v2029 = vrcp.pop %v1910
          %v2030 = vmul.f32 1.0, %v2029
          %v2031 = vrcp.pop %v1911
          %v2032 = vmul.f32 1.0, %v2031
          %v2033 = vrcp.pop %v1912
          %v2034 = vmul.f32 1.0, %v2033
          %v2035 = vrcp.pop %v1913
          %v2036 = vmul.f32 1.0, %v2035
          %v2037 = vrcp.pop %v1914
          %v2038 = vmul.f32 1.0, %v2037
          %v2039 = vrcp.pop %v1915
          %v2040 = vmul.f32 1.0, %v2039
          %v2041 = vrcp.pop %v1916
          %v2042 = vmul.f32 1.0, %v2041
          %v2043 = vrcp.pop %v1917
          %v2044 = vmul.f32 1.0, %v2043
          %v2045 = vrcp.pop %v1918
          %v2046 = vmul.f32 1.0, %v2045
          %v2047 = vmul.f32 %v1505, %v1920
          %v2048 = vmul.f32 %v1507, %v1922
          %v2049 = vmul.f32 %v1509, %v1924
          %v2050 = vmul.f32 %v1511, %v1926
          %v2051 = vmul.f32 %v1515, %v1928
          %v2052 = vmul.f32 %v1517, %v1930
          %v2053 = vmul.f32 %v1519, %v1932
          %v2054 = vmul.f32 %v1521, %v1934
          %v2055 = vmul.f32 %v1525, %v1936
          %v2056 = vmul.f32 %v1527, %v1938
          %v2057 = vmul.f32 %v1529, %v1940
          %v2058 = vmul.f32 %v1531, %v1942
          %v2059 = vmul.f32 %v1535, %v1944
          %v2060 = vmul.f32 %v1537, %v1946
          %v2061 = vmul.f32 %v1539, %v1948
          %v2062 = vmul.f32 %v1541, %v1950
          %v2063 = vmul.f32 %v1545, %v1952
          %v2064 = vmul.f32 %v1547, %v1954
          %v2065 = vmul.f32 %v1549, %v1956
          %v2066 = vmul.f32 %v1551, %v1958
          %v2067 = vmul.f32 %v1555, %v1960
          %v2068 = vmul.f32 %v1557, %v1962
          %v2069 = vmul.f32 %v1559, %v1964
          %v2070 = vmul.f32 %v1561, %v1966
          %v2071 = vmul.f32 %v1565, %v1968
          %v2072 = vmul.f32 %v1567, %v1970
          %v2073 = vmul.f32 %v1569, %v1972
          %v2074 = vmul.f32 %v1571, %v1974
          %v2075 = vmul.f32 %v1575, %v1976
          %v2076 = vmul.f32 %v1577, %v1978
          %v2077 = vmul.f32 %v1579, %v1980
          %v2078 = vmul.f32 %v1581, %v1982
          %v2079 = vmul.f32 %v1585, %v1984
          %v2080 = vmul.f32 %v1587, %v1986
          %v2081 = vmul.f32 %v1589, %v1988
          %v2082 = vmul.f32 %v1591, %v1990
          %v2083 = vmul.f32 %v1595, %v1992
          %v2084 = vmul.f32 %v1597, %v1994
          %v2085 = vmul.f32 %v1599, %v1996
          %v2086 = vmul.f32 %v1601, %v1998
          %v2087 = vmul.f32 %v1605, %v2000
          %v2088 = vmul.f32 %v1607, %v2002
          %v2089 = vmul.f32 %v1609, %v2004
          %v2090 = vmul.f32 %v1611, %v2006
          %v2091 = vmul.f32 %v1615, %v2008
          %v2092 = vmul.f32 %v1617, %v2010
          %v2093 = vmul.f32 %v1619, %v2012
          %v2094 = vmul.f32 %v1621, %v2014
          %v2095 = vmul.f32 %v1625, %v2016
          %v2096 = vmul.f32 %v1627, %v2018
          %v2097 = vmul.f32 %v1629, %v2020
          %v2098 = vmul.f32 %v1631, %v2022
          %v2099 = vmul.f32 %v1635, %v2024
          %v2100 = vmul.f32 %v1637, %v2026
          %v2101 = vmul.f32 %v1639, %v2028
          %v2102 = vmul.f32 %v1641, %v2030
          %v2103 = vmul.f32 %v1645, %v2032
          %v2104 = vmul.f32 %v1647, %v2034
          %v2105 = vmul.f32 %v1649, %v2036
          %v2106 = vmul.f32 %v1651, %v2038
          %v2107 = vmul.f32 %v1655, %v2040
          %v2108 = vmul.f32 %v1657, %v2042
          %v2109 = vmul.f32 %v1659, %v2044
          %v2110 = vmul.f32 %v1661, %v2046
          %v2111 = vpack.c.bf16 %v2049, %v2047
          %v2112 = vpack.c.bf16 %v2050, %v2048
          %v2113 = vpack.c.bf16 %v2053, %v2051
          %v2114 = vpack.c.bf16 %v2054, %v2052
          %v2115 = vpack.c.bf16 %v2057, %v2055
          %v2116 = vpack.c.bf16 %v2058, %v2056
          %v2117 = vpack.c.bf16 %v2061, %v2059
          %v2118 = vpack.c.bf16 %v2062, %v2060
          %v2119 = vpack.c.bf16 %v2065, %v2063
          %v2120 = vpack.c.bf16 %v2066, %v2064
          %v2121 = vpack.c.bf16 %v2069, %v2067
          %v2122 = vpack.c.bf16 %v2070, %v2068
          %v2123 = vpack.c.bf16 %v2073, %v2071
          %v2124 = vpack.c.bf16 %v2074, %v2072
          %v2125 = vpack.c.bf16 %v2077, %v2075
          %v2126 = vpack.c.bf16 %v2078, %v2076
          %v2127 = vpack.c.bf16 %v2081, %v2079
          %v2128 = vpack.c.bf16 %v2082, %v2080
          %v2129 = vpack.c.bf16 %v2085, %v2083
          %v2130 = vpack.c.bf16 %v2086, %v2084
          %v2131 = vpack.c.bf16 %v2089, %v2087
          %v2132 = vpack.c.bf16 %v2090, %v2088
          %v2133 = vpack.c.bf16 %v2093, %v2091
          %v2134 = vpack.c.bf16 %v2094, %v2092
          %v2135 = vpack.c.bf16 %v2097, %v2095
          %v2136 = vpack.c.bf16 %v2098, %v2096
          %v2137 = vpack.c.bf16 %v2101, %v2099
          %v2138 = vpack.c.bf16 %v2102, %v2100
          %v2139 = vpack.c.bf16 %v2105, %v2103
          %v2140 = vpack.c.bf16 %v2106, %v2104
          %v2141 = vpack.c.bf16 %v2109, %v2107
          %v2142 = vpack.c.bf16 %v2110, %v2108
          %s2143 = smul.u32 %s35, 32
          %s2144 = smul.addr %s2143, 8
          %s2145 = scalar_lea.vmem [#allocation6], %s2144
          %2146 = vst [vmem:[%s2145] sm:$0xff] %v2111
          %2147 = vst [vmem:[%s2145 + $0x8] sm:$0xff] %v2112
          %2148 = vst [vmem:[%s2145 + $0x10] sm:$0xff] %v2113
          %2149 = vst [vmem:[%s2145 + $0x18] sm:$0xff] %v2114
          %2150 = vst [vmem:[%s2145 + $0x20] sm:$0xff] %v2115
          %2151 = vst [vmem:[%s2145 + $0x28] sm:$0xff] %v2116
          %2152 = vst [vmem:[%s2145 + $0x30] sm:$0xff] %v2117
          %2153 = vst [vmem:[%s2145 + $0x38] sm:$0xff] %v2118
          %2154 = vst [vmem:[%s2145 + $0x40] sm:$0xff] %v2119
          %2155 = vst [vmem:[%s2145 + $0x48] sm:$0xff] %v2120
          %2156 = vst [vmem:[%s2145 + $0x50] sm:$0xff] %v2121
          %2157 = vst [vmem:[%s2145 + $0x58] sm:$0xff] %v2122
          %2158 = vst [vmem:[%s2145 + $0x60] sm:$0xff] %v2123
          %2159 = vst [vmem:[%s2145 + $0x68] sm:$0xff] %v2124
          %2160 = vst [vmem:[%s2145 + $0x70] sm:$0xff] %v2125
          %2161 = vst [vmem:[%s2145 + $0x78] sm:$0xff] %v2126
          %2162 = vst [vmem:[%s2145 + $0x80] sm:$0xff] %v2127
          %2163 = vst [vmem:[%s2145 + $0x88] sm:$0xff] %v2128
          %2164 = vst [vmem:[%s2145 + $0x90] sm:$0xff] %v2129
          %2165 = vst [vmem:[%s2145 + $0x98] sm:$0xff] %v2130
          %2166 = vst [vmem:[%s2145 + $0xa0] sm:$0xff] %v2131
          %2167 = vst [vmem:[%s2145 + $0xa8] sm:$0xff] %v2132
          %2168 = vst [vmem:[%s2145 + $0xb0] sm:$0xff] %v2133
          %2169 = vst [vmem:[%s2145 + $0xb8] sm:$0xff] %v2134
          %2170 = vst [vmem:[%s2145 + $0xc0] sm:$0xff] %v2135
          %2171 = vst [vmem:[%s2145 + $0xc8] sm:$0xff] %v2136
          %2172 = vst [vmem:[%s2145 + $0xd0] sm:$0xff] %v2137
          %2173 = vst [vmem:[%s2145 + $0xd8] sm:$0xff] %v2138
          %2174 = vst [vmem:[%s2145 + $0xe0] sm:$0xff] %v2139
          %2175 = vst [vmem:[%s2145 + $0xe8] sm:$0xff] %v2140
          %2176 = vst [vmem:[%s2145 + $0xf0] sm:$0xff] %v2141
          %2177 = vst [vmem:[%s2145 + $0xf8] sm:$0xff] %v2142
        $region72: #{tpu_custom_call.1} parent=47 // pred_fallthru
          _
        %s2178 = smul.u32 %s35, 32
        %s2179 = smul.addr %s2178, 8
        %s2180 = scalar_lea.vmem [#allocation6], %s2179
        %v2181 = vld [vmem:[%s2180] sm:$0xff]
        %v2182 = vld [vmem:[%s2180 + $0x8] sm:$0xff]
        %v2183 = vld [vmem:[%s2180 + $0x10] sm:$0xff]
        %v2184 = vld [vmem:[%s2180 + $0x18] sm:$0xff]
        %v2185 = vld [vmem:[%s2180 + $0x20] sm:$0xff]
        %v2186 = vld [vmem:[%s2180 + $0x28] sm:$0xff]
        %v2187 = vld [vmem:[%s2180 + $0x30] sm:$0xff]
        %v2188 = vld [vmem:[%s2180 + $0x38] sm:$0xff]
        %v2189 = vld [vmem:[%s2180 + $0x40] sm:$0xff]
        %v2190 = vld [vmem:[%s2180 + $0x48] sm:$0xff]
        %v2191 = vld [vmem:[%s2180 + $0x50] sm:$0xff]
        %v2192 = vld [vmem:[%s2180 + $0x58] sm:$0xff]
        %v2193 = vld [vmem:[%s2180 + $0x60] sm:$0xff]
        %v2194 = vld [vmem:[%s2180 + $0x68] sm:$0xff]
        %v2195 = vld [vmem:[%s2180 + $0x70] sm:$0xff]
        %v2196 = vld [vmem:[%s2180 + $0x78] sm:$0xff]
        %v2197 = vld [vmem:[%s2180 + $0x80] sm:$0xff]
        %v2198 = vld [vmem:[%s2180 + $0x88] sm:$0xff]
        %v2199 = vld [vmem:[%s2180 + $0x90] sm:$0xff]
        %v2200 = vld [vmem:[%s2180 + $0x98] sm:$0xff]
        %v2201 = vld [vmem:[%s2180 + $0xa0] sm:$0xff]
        %v2202 = vld [vmem:[%s2180 + $0xa8] sm:$0xff]
        %v2203 = vld [vmem:[%s2180 + $0xb0] sm:$0xff]
        %v2204 = vld [vmem:[%s2180 + $0xb8] sm:$0xff]
        %v2205 = vld [vmem:[%s2180 + $0xc0] sm:$0xff]
        %v2206 = vld [vmem:[%s2180 + $0xc8] sm:$0xff]
        %v2207 = vld [vmem:[%s2180 + $0xd0] sm:$0xff]
        %v2208 = vld [vmem:[%s2180 + $0xd8] sm:$0xff]
        %v2209 = vld [vmem:[%s2180 + $0xe0] sm:$0xff]
        %v2210 = vld [vmem:[%s2180 + $0xe8] sm:$0xff]
        %v2211 = vld [vmem:[%s2180 + $0xf0] sm:$0xff]
        %v2212 = vld [vmem:[%s2180 + $0xf8] sm:$0xff]
        %v2213 = vld [vmem:[%s4 + $0x1] sm:$0x1]
        %v2214 = vunpack.c.l.bf16 %v2181
        %v2215 = vunpack.c.h.bf16 %v2181
        %v2216 = vunpack.c.l.bf16 %v2183
        %v2217 = vunpack.c.h.bf16 %v2183
        %v2218 = vunpack.c.l.bf16 %v2185
        %v2219 = vunpack.c.h.bf16 %v2185
        %v2220 = vunpack.c.l.bf16 %v2187
        %v2221 = vunpack.c.h.bf16 %v2187
        %v2222 = vunpack.c.l.bf16 %v2189
        %v2223 = vunpack.c.h.bf16 %v2189
        %v2224 = vunpack.c.l.bf16 %v2191
        %v2225 = vunpack.c.h.bf16 %v2191
        %v2226 = vunpack.c.l.bf16 %v2193
        %v2227 = vunpack.c.h.bf16 %v2193
        %v2228 = vunpack.c.l.bf16 %v2195
        %v2229 = vunpack.c.h.bf16 %v2195
        %v2230 = vunpack.c.l.bf16 %v2197
        %v2231 = vunpack.c.h.bf16 %v2197
        %v2232 = vunpack.c.l.bf16 %v2199
        %v2233 = vunpack.c.h.bf16 %v2199
        %v2234 = vunpack.c.l.bf16 %v2201
        %v2235 = vunpack.c.h.bf16 %v2201
        %v2236 = vunpack.c.l.bf16 %v2203
        %v2237 = vunpack.c.h.bf16 %v2203
        %v2238 = vunpack.c.l.bf16 %v2205
        %v2239 = vunpack.c.h.bf16 %v2205
        %v2240 = vunpack.c.l.bf16 %v2207
        %v2241 = vunpack.c.h.bf16 %v2207
        %v2242 = vunpack.c.l.bf16 %v2209
        %v2243 = vunpack.c.h.bf16 %v2209
        %v2244 = vunpack.c.l.bf16 %v2211
        %v2245 = vunpack.c.h.bf16 %v2211
        %v2246 = vlaneseq
        %v2247 = vshrl.u32 %v2246, 7
        %v2248 = vsub.s32 0, %v2247
        %v2249 = vrot.slane %v2213, %v2248
        %v2250 = vmul.f32 %v2214, %v2249
        %v2251 = vmul.f32 %v2215, %v2249
        %v2252 = vmul.f32 %v2216, %v2249
        %v2253 = vmul.f32 %v2217, %v2249
        %v2254 = vmul.f32 %v2218, %v2249
        %v2255 = vmul.f32 %v2219, %v2249
        %v2256 = vmul.f32 %v2220, %v2249
        %v2257 = vmul.f32 %v2221, %v2249
        %v2258 = vmul.f32 %v2222, %v2249
        %v2259 = vmul.f32 %v2223, %v2249
        %v2260 = vmul.f32 %v2224, %v2249
        %v2261 = vmul.f32 %v2225, %v2249
        %v2262 = vmul.f32 %v2226, %v2249
        %v2263 = vmul.f32 %v2227, %v2249
        %v2264 = vmul.f32 %v2228, %v2249
        %v2265 = vmul.f32 %v2229, %v2249
        %v2266 = vmul.f32 %v2230, %v2249
        %v2267 = vmul.f32 %v2231, %v2249
        %v2268 = vmul.f32 %v2232, %v2249
        %v2269 = vmul.f32 %v2233, %v2249
        %v2270 = vmul.f32 %v2234, %v2249
        %v2271 = vmul.f32 %v2235, %v2249
        %v2272 = vmul.f32 %v2236, %v2249
        %v2273 = vmul.f32 %v2237, %v2249
        %v2274 = vmul.f32 %v2238, %v2249
        %v2275 = vmul.f32 %v2239, %v2249
        %v2276 = vmul.f32 %v2240, %v2249
        %v2277 = vmul.f32 %v2241, %v2249
        %v2278 = vmul.f32 %v2242, %v2249
        %v2279 = vmul.f32 %v2243, %v2249
        %v2280 = vmul.f32 %v2244, %v2249
        %v2281 = vmul.f32 %v2245, %v2249
        %v2282 = vld [vmem:[%s5 + $0x1] sm:$0x1]
        %v2283 = vlaneseq
        %v2284 = vshrl.u32 %v2283, 7
        %v2285 = vsub.s32 0, %v2284
        %v2286 = vrot.slane %v2282, %v2285
        %v2287 = vadd.f32 %v2250, %v2286
        %v2288 = vadd.f32 %v2251, %v2286
        %v2289 = vadd.f32 %v2252, %v2286
        %v2290 = vadd.f32 %v2253, %v2286
        %v2291 = vadd.f32 %v2254, %v2286
        %v2292 = vadd.f32 %v2255, %v2286
        %v2293 = vadd.f32 %v2256, %v2286
        %v2294 = vadd.f32 %v2257, %v2286
        %v2295 = vadd.f32 %v2258, %v2286
        %v2296 = vadd.f32 %v2259, %v2286
        %v2297 = vadd.f32 %v2260, %v2286
        %v2298 = vadd.f32 %v2261, %v2286
        %v2299 = vadd.f32 %v2262, %v2286
        %v2300 = vadd.f32 %v2263, %v2286
        %v2301 = vadd.f32 %v2264, %v2286
        %v2302 = vadd.f32 %v2265, %v2286
        %v2303 = vadd.f32 %v2266, %v2286
        %v2304 = vadd.f32 %v2267, %v2286
        %v2305 = vadd.f32 %v2268, %v2286
        %v2306 = vadd.f32 %v2269, %v2286
        %v2307 = vadd.f32 %v2270, %v2286
        %v2308 = vadd.f32 %v2271, %v2286
        %v2309 = vadd.f32 %v2272, %v2286
        %v2310 = vadd.f32 %v2273, %v2286
        %v2311 = vadd.f32 %v2274, %v2286
        %v2312 = vadd.f32 %v2275, %v2286
        %v2313 = vadd.f32 %v2276, %v2286
        %v2314 = vadd.f32 %v2277, %v2286
        %v2315 = vadd.f32 %v2278, %v2286
        %v2316 = vadd.f32 %v2279, %v2286
        %v2317 = vadd.f32 %v2280, %v2286
        %v2318 = vadd.f32 %v2281, %v2286
        %v2319 = vpack.c.bf16 %v2288, %v2287
        %v2320 = vpack.c.bf16 %v2290, %v2289
        %v2321 = vpack.c.bf16 %v2292, %v2291
        %v2322 = vpack.c.bf16 %v2294, %v2293
        %v2323 = vpack.c.bf16 %v2296, %v2295
        %v2324 = vpack.c.bf16 %v2298, %v2297
        %v2325 = vpack.c.bf16 %v2300, %v2299
        %v2326 = vpack.c.bf16 %v2302, %v2301
        %v2327 = vpack.c.bf16 %v2304, %v2303
        %v2328 = vpack.c.bf16 %v2306, %v2305
        %v2329 = vpack.c.bf16 %v2308, %v2307
        %v2330 = vpack.c.bf16 %v2310, %v2309
        %v2331 = vpack.c.bf16 %v2312, %v2311
        %v2332 = vpack.c.bf16 %v2314, %v2313
        %v2333 = vpack.c.bf16 %v2316, %v2315
        %v2334 = vpack.c.bf16 %v2318, %v2317
        %s2335 = ssub.s32 %s35, %s34
        %s2336 = sadd.s32 %s2335, 1
        %s2337 = smul.u32 %s2336, 64
        %s2338 = smul.addr %s2337, 4
        %s2339 = scalar_lea.vmem [#allocation13], %s2338
        %v2340 = vld [vmem:[%s2339] sm:$0xff]
        %v2341 = vld [vmem:[%s2339 + $0x8] sm:$0xff]
        %v2342 = vld [vmem:[%s2339 + $0x10] sm:$0xff]
        %v2343 = vld [vmem:[%s2339 + $0x18] sm:$0xff]
        %v2344 = vld [vmem:[%s2339 + $0x20] sm:$0xff]
        %v2345 = vld [vmem:[%s2339 + $0x28] sm:$0xff]
        %v2346 = vld [vmem:[%s2339 + $0x30] sm:$0xff]
        %v2347 = vld [vmem:[%s2339 + $0x38] sm:$0xff]
        %v2348 = vld [vmem:[%s2339 + $0x40] sm:$0xff]
        %v2349 = vld [vmem:[%s2339 + $0x48] sm:$0xff]
        %v2350 = vld [vmem:[%s2339 + $0x50] sm:$0xff]
        %v2351 = vld [vmem:[%s2339 + $0x58] sm:$0xff]
        %v2352 = vld [vmem:[%s2339 + $0x60] sm:$0xff]
        %v2353 = vld [vmem:[%s2339 + $0x68] sm:$0xff]
        %v2354 = vld [vmem:[%s2339 + $0x70] sm:$0xff]
        %v2355 = vld [vmem:[%s2339 + $0x78] sm:$0xff]
        %v2356 = vld [vmem:[%s2339 + $0x80] sm:$0xff]
        %v2357 = vld [vmem:[%s2339 + $0x88] sm:$0xff]
        %v2358 = vld [vmem:[%s2339 + $0x90] sm:$0xff]
        %v2359 = vld [vmem:[%s2339 + $0x98] sm:$0xff]
        %v2360 = vld [vmem:[%s2339 + $0xa0] sm:$0xff]
        %v2361 = vld [vmem:[%s2339 + $0xa8] sm:$0xff]
        %v2362 = vld [vmem:[%s2339 + $0xb0] sm:$0xff]
        %v2363 = vld [vmem:[%s2339 + $0xb8] sm:$0xff]
        %v2364 = vld [vmem:[%s2339 + $0xc0] sm:$0xff]
        %v2365 = vld [vmem:[%s2339 + $0xc8] sm:$0xff]
        %v2366 = vld [vmem:[%s2339 + $0xd0] sm:$0xff]
        %v2367 = vld [vmem:[%s2339 + $0xd8] sm:$0xff]
        %v2368 = vld [vmem:[%s2339 + $0xe0] sm:$0xff]
        %v2369 = vld [vmem:[%s2339 + $0xe8] sm:$0xff]
        %v2370 = vld [vmem:[%s2339 + $0xf0] sm:$0xff]
        %v2371 = vld [vmem:[%s2339 + $0xf8] sm:$0xff]
        %v2372 = vld [vmem:[#allocation2] sm:$0xff]
        %v2373 = vld [vmem:[#allocation2 + $0x8] sm:$0xff]
        %v2374 = vld [vmem:[#allocation2 + $0x10] sm:$0xff]
        %v2375 = vld [vmem:[#allocation2 + $0x18] sm:$0xff]
        %v2376 = vld [vmem:[#allocation2 + $0x20] sm:$0xff]
        %v2377 = vld [vmem:[#allocation2 + $0x28] sm:$0xff]
        %v2378 = vld [vmem:[#allocation2 + $0x30] sm:$0xff]
        %v2379 = vld [vmem:[#allocation2 + $0x38] sm:$0xff]
        %v2380 = vld [vmem:[#allocation2 + $0x40] sm:$0xff]
        %v2381 = vld [vmem:[#allocation2 + $0x48] sm:$0xff]
        %v2382 = vld [vmem:[#allocation2 + $0x50] sm:$0xff]
        %v2383 = vld [vmem:[#allocation2 + $0x58] sm:$0xff]
        %v2384 = vld [vmem:[#allocation2 + $0x60] sm:$0xff]
        %v2385 = vld [vmem:[#allocation2 + $0x68] sm:$0xff]
        %v2386 = vld [vmem:[#allocation2 + $0x70] sm:$0xff]
        %v2387 = vld [vmem:[#allocation2 + $0x78] sm:$0xff]
        %v2388 = vunpack.c.l.bf16 %v2340
        %v2389 = vunpack.c.h.bf16 %v2340
        %v2390 = vunpack.c.l.bf16 %v2341
        %v2391 = vunpack.c.h.bf16 %v2341
        %v2392 = vunpack.c.l.bf16 %v2342
        %v2393 = vunpack.c.h.bf16 %v2342
        %v2394 = vunpack.c.l.bf16 %v2343
        %v2395 = vunpack.c.h.bf16 %v2343
        %v2396 = vunpack.c.l.bf16 %v2344
        %v2397 = vunpack.c.h.bf16 %v2344
        %v2398 = vunpack.c.l.bf16 %v2345
        %v2399 = vunpack.c.h.bf16 %v2345
        %v2400 = vunpack.c.l.bf16 %v2346
        %v2401 = vunpack.c.h.bf16 %v2346
        %v2402 = vunpack.c.l.bf16 %v2347
        %v2403 = vunpack.c.h.bf16 %v2347
        %v2404 = vunpack.c.l.bf16 %v2348
        %v2405 = vunpack.c.h.bf16 %v2348
        %v2406 = vunpack.c.l.bf16 %v2349
        %v2407 = vunpack.c.h.bf16 %v2349
        %v2408 = vunpack.c.l.bf16 %v2350
        %v2409 = vunpack.c.h.bf16 %v2350
        %v2410 = vunpack.c.l.bf16 %v2351
        %v2411 = vunpack.c.h.bf16 %v2351
        %v2412 = vunpack.c.l.bf16 %v2352
        %v2413 = vunpack.c.h.bf16 %v2352
        %v2414 = vunpack.c.l.bf16 %v2353
        %v2415 = vunpack.c.h.bf16 %v2353
        %v2416 = vunpack.c.l.bf16 %v2354
        %v2417 = vunpack.c.h.bf16 %v2354
        %v2418 = vunpack.c.l.bf16 %v2355
        %v2419 = vunpack.c.h.bf16 %v2355
        %v2420 = vunpack.c.l.bf16 %v2356
        %v2421 = vunpack.c.h.bf16 %v2356
        %v2422 = vunpack.c.l.bf16 %v2357
        %v2423 = vunpack.c.h.bf16 %v2357
        %v2424 = vunpack.c.l.bf16 %v2358
        %v2425 = vunpack.c.h.bf16 %v2358
        %v2426 = vunpack.c.l.bf16 %v2359
        %v2427 = vunpack.c.h.bf16 %v2359
        %v2428 = vunpack.c.l.bf16 %v2360
        %v2429 = vunpack.c.h.bf16 %v2360
        %v2430 = vunpack.c.l.bf16 %v2361
        %v2431 = vunpack.c.h.bf16 %v2361
        %v2432 = vunpack.c.l.bf16 %v2362
        %v2433 = vunpack.c.h.bf16 %v2362
        %v2434 = vunpack.c.l.bf16 %v2363
        %v2435 = vunpack.c.h.bf16 %v2363
        %v2436 = vunpack.c.l.bf16 %v2364
        %v2437 = vunpack.c.h.bf16 %v2364
        %v2438 = vunpack.c.l.bf16 %v2365
        %v2439 = vunpack.c.h.bf16 %v2365
        %v2440 = vunpack.c.l.bf16 %v2366
        %v2441 = vunpack.c.h.bf16 %v2366
        %v2442 = vunpack.c.l.bf16 %v2367
        %v2443 = vunpack.c.h.bf16 %v2367
        %v2444 = vunpack.c.l.bf16 %v2368
        %v2445 = vunpack.c.h.bf16 %v2368
        %v2446 = vunpack.c.l.bf16 %v2369
        %v2447 = vunpack.c.h.bf16 %v2369
        %v2448 = vunpack.c.l.bf16 %v2370
        %v2449 = vunpack.c.h.bf16 %v2370
        %v2450 = vunpack.c.l.bf16 %v2371
        %v2451 = vunpack.c.h.bf16 %v2371
        %2452 = vmatprep.subr.bf16.mxu0 0
        %2453 = vmatpush1.bf16.xpose.msra.mxu0 %v2319
        %2454 = vmatprep.subr.bf16.mxu0 0
        %2455 = vmatpush1.bf16.xpose.msra.mxu0 %v2320
        %2456 = vmatprep.subr.bf16.mxu0 0
        %2457 = vmatpush1.bf16.xpose.msra.mxu0 %v2321
        %2458 = vmatprep.subr.bf16.mxu0 0
        %2459 = vmatpush1.bf16.xpose.msra.mxu0 %v2322
        %2460 = vmatprep.subr.bf16.mxu0 0
        %2461 = vmatpush1.bf16.xpose.msra.mxu0 %v2323
        %2462 = vmatprep.subr.bf16.mxu0 0
        %2463 = vmatpush1.bf16.xpose.msra.mxu0 %v2324
        %2464 = vmatprep.subr.bf16.mxu0 0
        %2465 = vmatpush1.bf16.xpose.msra.mxu0 %v2325
        %2466 = vmatprep.subr.bf16.mxu0 0
        %2467 = vmatpush1.bf16.xpose.msra.mxu0 %v2326
        %2468 = vmatprep.subr.bf16.mxu0 0
        %2469 = vmatpush1.bf16.xpose.msra.mxu0 %v2327
        %2470 = vmatprep.subr.bf16.mxu0 0
        %2471 = vmatpush1.bf16.xpose.msra.mxu0 %v2328
        %2472 = vmatprep.subr.bf16.mxu0 0
        %2473 = vmatpush1.bf16.xpose.msra.mxu0 %v2329
        %2474 = vmatprep.subr.bf16.mxu0 0
        %2475 = vmatpush1.bf16.xpose.msra.mxu0 %v2330
        %2476 = vmatprep.subr.bf16.mxu0 0
        %2477 = vmatpush1.bf16.xpose.msra.mxu0 %v2331
        %2478 = vmatprep.subr.bf16.mxu0 0
        %2479 = vmatpush1.bf16.xpose.msra.mxu0 %v2332
        %2480 = vmatprep.subr.bf16.mxu0 0
        %2481 = vmatpush1.bf16.xpose.msra.mxu0 %v2333
        %2482 = vmatprep.subr.bf16.mxu0 0
        %2483 = vmatpush1.bf16.xpose.msra.mxu0 %v2334
        %2484 = vmatprep.mubr.bf16.mxu0 0
        %2485 = vmatmul.mubr.bf16.gmra.mrb[0].mxu0 %v2372
        %v2486 = vpop.f32.mrb[0].mxu0
        %v2487 = vadd.f32 %v2388, %v2486
        %v2488 = vpop.f32.mrb[0].mxu0
        %v2489 = vadd.f32 %v2389, %v2488
        %v2490 = vpop.f32.mrb[0].mxu0
        %v2491 = vadd.f32 %v2390, %v2490
        %v2492 = vpop.f32.mrb[0].mxu0
        %v2493 = vadd.f32 %v2391, %v2492
        %2494 = vmatprep.mubr.bf16.mxu0 0
        %2495 = vmatmul.mubr.bf16.gmra.mrb[0].mxu0 %v2373
        %v2496 = vpop.f32.mrb[0].mxu0
        %v2497 = vadd.f32 %v2392, %v2496
        %v2498 = vpop.f32.mrb[0].mxu0
        %v2499 = vadd.f32 %v2393, %v2498
        %v2500 = vpop.f32.mrb[0].mxu0
        %v2501 = vadd.f32 %v2394, %v2500
        %v2502 = vpop.f32.mrb[0].mxu0
        %v2503 = vadd.f32 %v2395, %v2502
        %2504 = vmatprep.mubr.bf16.mxu0 0
        %2505 = vmatmul.mubr.bf16.gmra.mrb[0].mxu0 %v2374
        %v2506 = vpop.f32.mrb[0].mxu0
        %v2507 = vadd.f32 %v2396, %v2506
        %v2508 = vpop.f32.mrb[0].mxu0
        %v2509 = vadd.f32 %v2397, %v2508
        %v2510 = vpop.f32.mrb[0].mxu0
        %v2511 = vadd.f32 %v2398, %v2510
        %v2512 = vpop.f32.mrb[0].mxu0
        %v2513 = vadd.f32 %v2399, %v2512
        %2514 = vmatprep.mubr.bf16.mxu0 0
        %2515 = vmatmul.mubr.bf16.gmra.mrb[0].mxu0 %v2375
        %v2516 = vpop.f32.mrb[0].mxu0
        %v2517 = vadd.f32 %v2400, %v2516
        %v2518 = vpop.f32.mrb[0].mxu0
        %v2519 = vadd.f32 %v2401, %v2518
        %v2520 = vpop.f32.mrb[0].mxu0
        %v2521 = vadd.f32 %v2402, %v2520
        %v2522 = vpop.f32.mrb[0].mxu0
        %v2523 = vadd.f32 %v2403, %v2522
        %2524 = vmatprep.mubr.bf16.mxu0 0
        %2525 = vmatmul.mubr.bf16.gmra.mrb[0].mxu0 %v2376
        %v2526 = vpop.f32.mrb[0].mxu0
        %v2527 = vadd.f32 %v2404, %v2526
        %v2528 = vpop.f32.mrb[0].mxu0
        %v2529 = vadd.f32 %v2405, %v2528
        %v2530 = vpop.f32.mrb[0].mxu0
        %v2531 = vadd.f32 %v2406, %v2530
        %v2532 = vpop.f32.mrb[0].mxu0
        %v2533 = vadd.f32 %v2407, %v2532
        %2534 = vmatprep.mubr.bf16.mxu0 0
        %2535 = vmatmul.mubr.bf16.gmra.mrb[0].mxu0 %v2377
        %v2536 = vpop.f32.mrb[0].mxu0
        %v2537 = vadd.f32 %v2408, %v2536
        %v2538 = vpop.f32.mrb[0].mxu0
        %v2539 = vadd.f32 %v2409, %v2538
        %v2540 = vpop.f32.mrb[0].mxu0
        %v2541 = vadd.f32 %v2410, %v2540
        %v2542 = vpop.f32.mrb[0].mxu0
        %v2543 = vadd.f32 %v2411, %v2542
        %2544 = vmatprep.mubr.bf16.mxu0 0
        %2545 = vmatmul.mubr.bf16.gmra.mrb[0].mxu0 %v2378
        %v2546 = vpop.f32.mrb[0].mxu0
        %v2547 = vadd.f32 %v2412, %v2546
        %v2548 = vpop.f32.mrb[0].mxu0
        %v2549 = vadd.f32 %v2413, %v2548
        %v2550 = vpop.f32.mrb[0].mxu0
        %v2551 = vadd.f32 %v2414, %v2550
        %v2552 = vpop.f32.mrb[0].mxu0
        %v2553 = vadd.f32 %v2415, %v2552
        %2554 = vmatprep.mubr.bf16.mxu0 0
        %2555 = vmatmul.mubr.bf16.gmra.mrb[0].mxu0 %v2379
        %v2556 = vpop.f32.mrb[0].mxu0
        %v2557 = vadd.f32 %v2416, %v2556
        %v2558 = vpop.f32.mrb[0].mxu0
        %v2559 = vadd.f32 %v2417, %v2558
        %v2560 = vpop.f32.mrb[0].mxu0
        %v2561 = vadd.f32 %v2418, %v2560
        %v2562 = vpop.f32.mrb[0].mxu0
        %v2563 = vadd.f32 %v2419, %v2562
        %2564 = vmatprep.mubr.bf16.mxu0 0
        %2565 = vmatmul.mubr.bf16.gmra.mrb[0].mxu0 %v2380
        %v2566 = vpop.f32.mrb[0].mxu0
        %v2567 = vadd.f32 %v2420, %v2566
        %v2568 = vpop.f32.mrb[0].mxu0
        %v2569 = vadd.f32 %v2421, %v2568
        %v2570 = vpop.f32.mrb[0].mxu0
        %v2571 = vadd.f32 %v2422, %v2570
        %v2572 = vpop.f32.mrb[0].mxu0
        %v2573 = vadd.f32 %v2423, %v2572
        %2574 = vmatprep.mubr.bf16.mxu0 0
        %2575 = vmatmul.mubr.bf16.gmra.mrb[0].mxu0 %v2381
        %v2576 = vpop.f32.mrb[0].mxu0
        %v2577 = vadd.f32 %v2424, %v2576
        %v2578 = vpop.f32.mrb[0].mxu0
        %v2579 = vadd.f32 %v2425, %v2578
        %v2580 = vpop.f32.mrb[0].mxu0
        %v2581 = vadd.f32 %v2426, %v2580
        %v2582 = vpop.f32.mrb[0].mxu0
        %v2583 = vadd.f32 %v2427, %v2582
        %2584 = vmatprep.mubr.bf16.mxu0 0
        %2585 = vmatmul.mubr.bf16.gmra.mrb[0].mxu0 %v2382
        %v2586 = vpop.f32.mrb[0].mxu0
        %v2587 = vadd.f32 %v2428, %v2586
        %v2588 = vpop.f32.mrb[0].mxu0
        %v2589 = vadd.f32 %v2429, %v2588
        %v2590 = vpop.f32.mrb[0].mxu0
        %v2591 = vadd.f32 %v2430, %v2590
        %v2592 = vpop.f32.mrb[0].mxu0
        %v2593 = vadd.f32 %v2431, %v2592
        %2594 = vmatprep.mubr.bf16.mxu0 0
        %2595 = vmatmul.mubr.bf16.gmra.mrb[0].mxu0 %v2383
        %v2596 = vpop.f32.mrb[0].mxu0
        %v2597 = vadd.f32 %v2432, %v2596
        %v2598 = vpop.f32.mrb[0].mxu0
        %v2599 = vadd.f32 %v2433, %v2598
        %v2600 = vpop.f32.mrb[0].mxu0
        %v2601 = vadd.f32 %v2434, %v2600
        %v2602 = vpop.f32.mrb[0].mxu0
        %v2603 = vadd.f32 %v2435, %v2602
        %2604 = vmatprep.mubr.bf16.mxu0 0
        %2605 = vmatmul.mubr.bf16.gmra.mrb[0].mxu0 %v2384
        %v2606 = vpop.f32.mrb[0].mxu0
        %v2607 = vadd.f32 %v2436, %v2606
        %v2608 = vpop.f32.mrb[0].mxu0
        %v2609 = vadd.f32 %v2437, %v2608
        %v2610 = vpop.f32.mrb[0].mxu0
        %v2611 = vadd.f32 %v2438, %v2610
        %v2612 = vpop.f32.mrb[0].mxu0
        %v2613 = vadd.f32 %v2439, %v2612
        %2614 = vmatprep.mubr.bf16.mxu0 0
        %2615 = vmatmul.mubr.bf16.gmra.mrb[0].mxu0 %v2385
        %v2616 = vpop.f32.mrb[0].mxu0
        %v2617 = vadd.f32 %v2440, %v2616
        %v2618 = vpop.f32.mrb[0].mxu0
        %v2619 = vadd.f32 %v2441, %v2618
        %v2620 = vpop.f32.mrb[0].mxu0
        %v2621 = vadd.f32 %v2442, %v2620
        %v2622 = vpop.f32.mrb[0].mxu0
        %v2623 = vadd.f32 %v2443, %v2622
        %2624 = vmatprep.mubr.bf16.mxu0 0
        %2625 = vmatmul.mubr.bf16.gmra.mrb[0].mxu0 %v2386
        %v2626 = vpop.f32.mrb[0].mxu0
        %v2627 = vadd.f32 %v2444, %v2626
        %v2628 = vpop.f32.mrb[0].mxu0
        %v2629 = vadd.f32 %v2445, %v2628
        %v2630 = vpop.f32.mrb[0].mxu0
        %v2631 = vadd.f32 %v2446, %v2630
        %v2632 = vpop.f32.mrb[0].mxu0
        %v2633 = vadd.f32 %v2447, %v2632
        %2634 = vmatprep.mubr.bf16.mxu0 0
        %2635 = vmatmul.mubr.bf16.gmra.mrb[0].mxu0 %v2387
        %v2636 = vpop.f32.mrb[0].mxu0
        %v2637 = vadd.f32 %v2448, %v2636
        %v2638 = vpop.f32.mrb[0].mxu0
        %v2639 = vadd.f32 %v2449, %v2638
        %v2640 = vpop.f32.mrb[0].mxu0
        %v2641 = vadd.f32 %v2450, %v2640
        %v2642 = vpop.f32.mrb[0].mxu0
        %v2643 = vadd.f32 %v2451, %v2642
        %2644 = vdwg.mxu0
        %v2645 = vld [vmem:[#allocation3] sm:$0xff]
        %v2646 = vld [vmem:[#allocation3 + $0x8] sm:$0xff]
        %v2647 = vld [vmem:[#allocation3 + $0x10] sm:$0xff]
        %v2648 = vld [vmem:[#allocation3 + $0x18] sm:$0xff]
        %v2649 = vld [vmem:[#allocation3 + $0x20] sm:$0xff]
        %v2650 = vld [vmem:[#allocation3 + $0x28] sm:$0xff]
        %v2651 = vld [vmem:[#allocation3 + $0x30] sm:$0xff]
        %v2652 = vld [vmem:[#allocation3 + $0x38] sm:$0xff]
        %v2653 = vld [vmem:[#allocation3 + $0x40] sm:$0xff]
        %v2654 = vld [vmem:[#allocation3 + $0x48] sm:$0xff]
        %v2655 = vld [vmem:[#allocation3 + $0x50] sm:$0xff]
        %v2656 = vld [vmem:[#allocation3 + $0x58] sm:$0xff]
        %v2657 = vld [vmem:[#allocation3 + $0x60] sm:$0xff]
        %v2658 = vld [vmem:[#allocation3 + $0x68] sm:$0xff]
        %v2659 = vld [vmem:[#allocation3 + $0x70] sm:$0xff]
        %v2660 = vld [vmem:[#allocation3 + $0x78] sm:$0xff]
        %v2661 = vld [vmem:[#allocation3 + $0x80] sm:$0xff]
        %v2662 = vld [vmem:[#allocation3 + $0x88] sm:$0xff]
        %v2663 = vld [vmem:[#allocation3 + $0x90] sm:$0xff]
        %v2664 = vld [vmem:[#allocation3 + $0x98] sm:$0xff]
        %v2665 = vld [vmem:[#allocation3 + $0xa0] sm:$0xff]
        %v2666 = vld [vmem:[#allocation3 + $0xa8] sm:$0xff]
        %v2667 = vld [vmem:[#allocation3 + $0xb0] sm:$0xff]
        %v2668 = vld [vmem:[#allocation3 + $0xb8] sm:$0xff]
        %v2669 = vld [vmem:[#allocation3 + $0xc0] sm:$0xff]
        %v2670 = vld [vmem:[#allocation3 + $0xc8] sm:$0xff]
        %v2671 = vld [vmem:[#allocation3 + $0xd0] sm:$0xff]
        %v2672 = vld [vmem:[#allocation3 + $0xd8] sm:$0xff]
        %v2673 = vld [vmem:[#allocation3 + $0xe0] sm:$0xff]
        %v2674 = vld [vmem:[#allocation3 + $0xe8] sm:$0xff]
        %v2675 = vld [vmem:[#allocation3 + $0xf0] sm:$0xff]
        %v2676 = vld [vmem:[#allocation3 + $0xf8] sm:$0xff]
        %v2677 = vmax.f32 %v2487, %v2489
        %2678 = vmax.xlane.f32.xlu0 %v2677
        %v2679 = vpop.xlane.xlu0 %2678
        %v2680 = vmax.f32 %v2491, %v2493
        %2681 = vmax.xlane.f32.xlu0 %v2680
        %v2682 = vpop.xlane.xlu0 %2681
        %v2683 = vmax.f32 %v2497, %v2499
        %2684 = vmax.xlane.f32.xlu0 %v2683
        %v2685 = vpop.xlane.xlu0 %2684
        %v2686 = vmax.f32 %v2501, %v2503
        %2687 = vmax.xlane.f32.xlu0 %v2686
        %v2688 = vpop.xlane.xlu0 %2687
        %v2689 = vmax.f32 %v2507, %v2509
        %2690 = vmax.xlane.f32.xlu0 %v2689
        %v2691 = vpop.xlane.xlu0 %2690
        %v2692 = vmax.f32 %v2511, %v2513
        %2693 = vmax.xlane.f32.xlu0 %v2692
        %v2694 = vpop.xlane.xlu0 %2693
        %v2695 = vmax.f32 %v2517, %v2519
        %2696 = vmax.xlane.f32.xlu0 %v2695
        %v2697 = vpop.xlane.xlu0 %2696
        %v2698 = vmax.f32 %v2521, %v2523
        %2699 = vmax.xlane.f32.xlu0 %v2698
        %v2700 = vpop.xlane.xlu0 %2699
        %v2701 = vmax.f32 %v2527, %v2529
        %2702 = vmax.xlane.f32.xlu0 %v2701
        %v2703 = vpop.xlane.xlu0 %2702
        %v2704 = vmax.f32 %v2531, %v2533
        %2705 = vmax.xlane.f32.xlu0 %v2704
        %v2706 = vpop.xlane.xlu0 %2705
        %v2707 = vmax.f32 %v2537, %v2539
        %2708 = vmax.xlane.f32.xlu0 %v2707
        %v2709 = vpop.xlane.xlu0 %2708
        %v2710 = vmax.f32 %v2541, %v2543
        %2711 = vmax.xlane.f32.xlu0 %v2710
        %v2712 = vpop.xlane.xlu0 %2711
        %v2713 = vmax.f32 %v2547, %v2549
        %2714 = vmax.xlane.f32.xlu0 %v2713
        %v2715 = vpop.xlane.xlu0 %2714
        %v2716 = vmax.f32 %v2551, %v2553
        %2717 = vmax.xlane.f32.xlu0 %v2716
        %v2718 = vpop.xlane.xlu0 %2717
        %v2719 = vmax.f32 %v2557, %v2559
        %2720 = vmax.xlane.f32.xlu0 %v2719
        %v2721 = vpop.xlane.xlu0 %2720
        %v2722 = vmax.f32 %v2561, %v2563
        %2723 = vmax.xlane.f32.xlu0 %v2722
        %v2724 = vpop.xlane.xlu0 %2723
        %v2725 = vmax.f32 %v2567, %v2569
        %2726 = vmax.xlane.f32.xlu0 %v2725
        %v2727 = vpop.xlane.xlu0 %2726
        %v2728 = vmax.f32 %v2571, %v2573
        %2729 = vmax.xlane.f32.xlu0 %v2728
        %v2730 = vpop.xlane.xlu0 %2729
        %v2731 = vmax.f32 %v2577, %v2579
        %2732 = vmax.xlane.f32.xlu0 %v2731
        %v2733 = vpop.xlane.xlu0 %2732
        %v2734 = vmax.f32 %v2581, %v2583
        %2735 = vmax.xlane.f32.xlu0 %v2734
        %v2736 = vpop.xlane.xlu0 %2735
        %v2737 = vmax.f32 %v2587, %v2589
        %2738 = vmax.xlane.f32.xlu0 %v2737
        %v2739 = vpop.xlane.xlu0 %2738
        %v2740 = vmax.f32 %v2591, %v2593
        %2741 = vmax.xlane.f32.xlu0 %v2740
        %v2742 = vpop.xlane.xlu0 %2741
        %v2743 = vmax.f32 %v2597, %v2599
        %2744 = vmax.xlane.f32.xlu0 %v2743
        %v2745 = vpop.xlane.xlu0 %2744
        %v2746 = vmax.f32 %v2601, %v2603
        %2747 = vmax.xlane.f32.xlu0 %v2746
        %v2748 = vpop.xlane.xlu0 %2747
        %v2749 = vmax.f32 %v2607, %v2609
        %2750 = vmax.xlane.f32.xlu0 %v2749
        %v2751 = vpop.xlane.xlu0 %2750
        %v2752 = vmax.f32 %v2611, %v2613
        %2753 = vmax.xlane.f32.xlu0 %v2752
        %v2754 = vpop.xlane.xlu0 %2753
        %v2755 = vmax.f32 %v2617, %v2619
        %2756 = vmax.xlane.f32.xlu0 %v2755
        %v2757 = vpop.xlane.xlu0 %2756
        %v2758 = vmax.f32 %v2621, %v2623
        %2759 = vmax.xlane.f32.xlu0 %v2758
        %v2760 = vpop.xlane.xlu0 %2759
        %v2761 = vmax.f32 %v2627, %v2629
        %2762 = vmax.xlane.f32.xlu0 %v2761
        %v2763 = vpop.xlane.xlu0 %2762
        %v2764 = vmax.f32 %v2631, %v2633
        %2765 = vmax.xlane.f32.xlu0 %v2764
        %v2766 = vpop.xlane.xlu0 %2765
        %v2767 = vmax.f32 %v2637, %v2639
        %2768 = vmax.xlane.f32.xlu0 %v2767
        %v2769 = vpop.xlane.xlu0 %2768
        %v2770 = vmax.f32 %v2641, %v2643
        %2771 = vmax.xlane.f32.xlu0 %v2770
        %v2772 = vpop.xlane.xlu0 %2771
        %v2773 = vmax.f32 %v2645, %v2679
        %v2774 = vmax.f32 %v2646, %v2682
        %v2775 = vmax.f32 %v2647, %v2685
        %v2776 = vmax.f32 %v2648, %v2688
        %v2777 = vmax.f32 %v2649, %v2691
        %v2778 = vmax.f32 %v2650, %v2694
        %v2779 = vmax.f32 %v2651, %v2697
        %v2780 = vmax.f32 %v2652, %v2700
        %v2781 = vmax.f32 %v2653, %v2703
        %v2782 = vmax.f32 %v2654, %v2706
        %v2783 = vmax.f32 %v2655, %v2709
        %v2784 = vmax.f32 %v2656, %v2712
        %v2785 = vmax.f32 %v2657, %v2715
        %v2786 = vmax.f32 %v2658, %v2718
        %v2787 = vmax.f32 %v2659, %v2721
        %v2788 = vmax.f32 %v2660, %v2724
        %v2789 = vmax.f32 %v2661, %v2727
        %v2790 = vmax.f32 %v2662, %v2730
        %v2791 = vmax.f32 %v2663, %v2733
        %v2792 = vmax.f32 %v2664, %v2736
        %v2793 = vmax.f32 %v2665, %v2739
        %v2794 = vmax.f32 %v2666, %v2742
        %v2795 = vmax.f32 %v2667, %v2745
        %v2796 = vmax.f32 %v2668, %v2748
        %v2797 = vmax.f32 %v2669, %v2751
        %v2798 = vmax.f32 %v2670, %v2754
        %v2799 = vmax.f32 %v2671, %v2757
        %v2800 = vmax.f32 %v2672, %v2760
        %v2801 = vmax.f32 %v2673, %v2763
        %v2802 = vmax.f32 %v2674, %v2766
        %v2803 = vmax.f32 %v2675, %v2769
        %v2804 = vmax.f32 %v2676, %v2772
        %v2805 = vsub.f32 %v2645, %v2773
        %v2806 = vsub.f32 %v2646, %v2774
        %v2807 = vsub.f32 %v2647, %v2775
        %v2808 = vsub.f32 %v2648, %v2776
        %v2809 = vsub.f32 %v2649, %v2777
        %v2810 = vsub.f32 %v2650, %v2778
        %v2811 = vsub.f32 %v2651, %v2779
        %v2812 = vsub.f32 %v2652, %v2780
        %v2813 = vsub.f32 %v2653, %v2781
        %v2814 = vsub.f32 %v2654, %v2782
        %v2815 = vsub.f32 %v2655, %v2783
        %v2816 = vsub.f32 %v2656, %v2784
        %v2817 = vsub.f32 %v2657, %v2785
        %v2818 = vsub.f32 %v2658, %v2786
        %v2819 = vsub.f32 %v2659, %v2787
        %v2820 = vsub.f32 %v2660, %v2788
        %v2821 = vsub.f32 %v2661, %v2789
        %v2822 = vsub.f32 %v2662, %v2790
        %v2823 = vsub.f32 %v2663, %v2791
        %v2824 = vsub.f32 %v2664, %v2792
        %v2825 = vsub.f32 %v2665, %v2793
        %v2826 = vsub.f32 %v2666, %v2794
        %v2827 = vsub.f32 %v2667, %v2795
        %v2828 = vsub.f32 %v2668, %v2796
        %v2829 = vsub.f32 %v2669, %v2797
        %v2830 = vsub.f32 %v2670, %v2798
        %v2831 = vsub.f32 %v2671, %v2799
        %v2832 = vsub.f32 %v2672, %v2800
        %v2833 = vsub.f32 %v2673, %v2801
        %v2834 = vsub.f32 %v2674, %v2802
        %v2835 = vsub.f32 %v2675, %v2803
        %v2836 = vsub.f32 %v2676, %v2804
        %v2837 = vmul.f32 %v2805, 1.442695
        %v2838 = vpow.pop %v2837
        %v2839 = vmul.f32 %v2806, 1.442695
        %v2840 = vpow.pop %v2839
        %v2841 = vmul.f32 %v2807, 1.442695
        %v2842 = vpow.pop %v2841
        %v2843 = vmul.f32 %v2808, 1.442695
        %v2844 = vpow.pop %v2843
        %v2845 = vmul.f32 %v2809, 1.442695
        %v2846 = vpow.pop %v2845
        %v2847 = vmul.f32 %v2810, 1.442695
        %v2848 = vpow.pop %v2847
        %v2849 = vmul.f32 %v2811, 1.442695
        %v2850 = vpow.pop %v2849
        %v2851 = vmul.f32 %v2812, 1.442695
        %v2852 = vpow.pop %v2851
        %v2853 = vmul.f32 %v2813, 1.442695
        %v2854 = vpow.pop %v2853
        %v2855 = vmul.f32 %v2814, 1.442695
        %v2856 = vpow.pop %v2855
        %v2857 = vmul.f32 %v2815, 1.442695
        %v2858 = vpow.pop %v2857
        %v2859 = vmul.f32 %v2816, 1.442695
        %v2860 = vpow.pop %v2859
        %v2861 = vmul.f32 %v2817, 1.442695
        %v2862 = vpow.pop %v2861
        %v2863 = vmul.f32 %v2818, 1.442695
        %v2864 = vpow.pop %v2863
        %v2865 = vmul.f32 %v2819, 1.442695
        %v2866 = vpow.pop %v2865
        %v2867 = vmul.f32 %v2820, 1.442695
        %v2868 = vpow.pop %v2867
        %v2869 = vmul.f32 %v2821, 1.442695
        %v2870 = vpow.pop %v2869
        %v2871 = vmul.f32 %v2822, 1.442695
        %v2872 = vpow.pop %v2871
        %v2873 = vmul.f32 %v2823, 1.442695
        %v2874 = vpow.pop %v2873
        %v2875 = vmul.f32 %v2824, 1.442695
        %v2876 = vpow.pop %v2875
        %v2877 = vmul.f32 %v2825, 1.442695
        %v2878 = vpow.pop %v2877
        %v2879 = vmul.f32 %v2826, 1.442695
        %v2880 = vpow.pop %v2879
        %v2881 = vmul.f32 %v2827, 1.442695
        %v2882 = vpow.pop %v2881
        %v2883 = vmul.f32 %v2828, 1.442695
        %v2884 = vpow.pop %v2883
        %v2885 = vmul.f32 %v2829, 1.442695
        %v2886 = vpow.pop %v2885
        %v2887 = vmul.f32 %v2830, 1.442695
        %v2888 = vpow.pop %v2887
        %v2889 = vmul.f32 %v2831, 1.442695
        %v2890 = vpow.pop %v2889
        %v2891 = vmul.f32 %v2832, 1.442695
        %v2892 = vpow.pop %v2891
        %v2893 = vmul.f32 %v2833, 1.442695
        %v2894 = vpow.pop %v2893
        %v2895 = vmul.f32 %v2834, 1.442695
        %v2896 = vpow.pop %v2895
        %v2897 = vmul.f32 %v2835, 1.442695
        %v2898 = vpow.pop %v2897
        %v2899 = vmul.f32 %v2836, 1.442695
        %v2900 = vpow.pop %v2899
        %2902 = vset.pattern.permute.xlu0 0
        %2903 = vperm.xlu0 %2902, %v2773
        %v2904 = vpop.permute.xlu0 %2903
        %2907 = vset.pattern.permute.xlu0 0
        %2908 = vperm.xlu0 %2907, %v2774
        %v2909 = vpop.permute.xlu0 %2908
        %2912 = vset.pattern.permute.xlu0 0
        %2913 = vperm.xlu0 %2912, %v2775
        %v2914 = vpop.permute.xlu0 %2913
        %2917 = vset.pattern.permute.xlu0 0
        %2918 = vperm.xlu0 %2917, %v2776
        %v2919 = vpop.permute.xlu0 %2918
        %2922 = vset.pattern.permute.xlu0 0
        %2923 = vperm.xlu0 %2922, %v2777
        %v2924 = vpop.permute.xlu0 %2923
        %2927 = vset.pattern.permute.xlu0 0
        %2928 = vperm.xlu0 %2927, %v2778
        %v2929 = vpop.permute.xlu0 %2928
        %2932 = vset.pattern.permute.xlu0 0
        %2933 = vperm.xlu0 %2932, %v2779
        %v2934 = vpop.permute.xlu0 %2933
        %2937 = vset.pattern.permute.xlu0 0
        %2938 = vperm.xlu0 %2937, %v2780
        %v2939 = vpop.permute.xlu0 %2938
        %2942 = vset.pattern.permute.xlu0 0
        %2943 = vperm.xlu0 %2942, %v2781
        %v2944 = vpop.permute.xlu0 %2943
        %2947 = vset.pattern.permute.xlu0 0
        %2948 = vperm.xlu0 %2947, %v2782
        %v2949 = vpop.permute.xlu0 %2948
        %2952 = vset.pattern.permute.xlu0 0
        %2953 = vperm.xlu0 %2952, %v2783
        %v2954 = vpop.permute.xlu0 %2953
        %2957 = vset.pattern.permute.xlu0 0
        %2958 = vperm.xlu0 %2957, %v2784
        %v2959 = vpop.permute.xlu0 %2958
        %2962 = vset.pattern.permute.xlu0 0
        %2963 = vperm.xlu0 %2962, %v2785
        %v2964 = vpop.permute.xlu0 %2963
        %2967 = vset.pattern.permute.xlu0 0
        %2968 = vperm.xlu0 %2967, %v2786
        %v2969 = vpop.permute.xlu0 %2968
        %2972 = vset.pattern.permute.xlu0 0
        %2973 = vperm.xlu0 %2972, %v2787
        %v2974 = vpop.permute.xlu0 %2973
        %2977 = vset.pattern.permute.xlu0 0
        %2978 = vperm.xlu0 %2977, %v2788
        %v2979 = vpop.permute.xlu0 %2978
        %2982 = vset.pattern.permute.xlu0 0
        %2983 = vperm.xlu0 %2982, %v2789
        %v2984 = vpop.permute.xlu0 %2983
        %2987 = vset.pattern.permute.xlu0 0
        %2988 = vperm.xlu0 %2987, %v2790
        %v2989 = vpop.permute.xlu0 %2988
        %2992 = vset.pattern.permute.xlu0 0
        %2993 = vperm.xlu0 %2992, %v2791
        %v2994 = vpop.permute.xlu0 %2993
        %2997 = vset.pattern.permute.xlu0 0
        %2998 = vperm.xlu0 %2997, %v2792
        %v2999 = vpop.permute.xlu0 %2998
        %3002 = vset.pattern.permute.xlu0 0
        %3003 = vperm.xlu0 %3002, %v2793
        %v3004 = vpop.permute.xlu0 %3003
        %3007 = vset.pattern.permute.xlu0 0
        %3008 = vperm.xlu0 %3007, %v2794
        %v3009 = vpop.permute.xlu0 %3008
        %3012 = vset.pattern.permute.xlu0 0
        %3013 = vperm.xlu0 %3012, %v2795
        %v3014 = vpop.permute.xlu0 %3013
        %3017 = vset.pattern.permute.xlu0 0
        %3018 = vperm.xlu0 %3017, %v2796
        %v3019 = vpop.permute.xlu0 %3018
        %3022 = vset.pattern.permute.xlu0 0
        %3023 = vperm.xlu0 %3022, %v2797
        %v3024 = vpop.permute.xlu0 %3023
        %3027 = vset.pattern.permute.xlu0 0
        %3028 = vperm.xlu0 %3027, %v2798
        %v3029 = vpop.permute.xlu0 %3028
        %3032 = vset.pattern.permute.xlu0 0
        %3033 = vperm.xlu0 %3032, %v2799
        %v3034 = vpop.permute.xlu0 %3033
        %3037 = vset.pattern.permute.xlu0 0
        %3038 = vperm.xlu0 %3037, %v2800
        %v3039 = vpop.permute.xlu0 %3038
        %3042 = vset.pattern.permute.xlu0 0
        %3043 = vperm.xlu0 %3042, %v2801
        %v3044 = vpop.permute.xlu0 %3043
        %3047 = vset.pattern.permute.xlu0 0
        %3048 = vperm.xlu0 %3047, %v2802
        %v3049 = vpop.permute.xlu0 %3048
        %3052 = vset.pattern.permute.xlu0 0
        %3053 = vperm.xlu0 %3052, %v2803
        %v3054 = vpop.permute.xlu0 %3053
        %3057 = vset.pattern.permute.xlu0 0
        %3058 = vperm.xlu0 %3057, %v2804
        %v3059 = vpop.permute.xlu0 %3058
        %v3061 = vsub.f32 %v2487, %v2904
        %v3062 = vsub.f32 %v2489, %v2904
        %v3063 = vsub.f32 %v2491, %v2909
        %v3064 = vsub.f32 %v2493, %v2909
        %v3065 = vsub.f32 %v2497, %v2914
        %v3066 = vsub.f32 %v2499, %v2914
        %v3067 = vsub.f32 %v2501, %v2919
        %v3068 = vsub.f32 %v2503, %v2919
        %v3069 = vsub.f32 %v2507, %v2924
        %v3070 = vsub.f32 %v2509, %v2924
        %v3071 = vsub.f32 %v2511, %v2929
        %v3072 = vsub.f32 %v2513, %v2929
        %v3073 = vsub.f32 %v2517, %v2934
        %v3074 = vsub.f32 %v2519, %v2934
        %v3075 = vsub.f32 %v2521, %v2939
        %v3076 = vsub.f32 %v2523, %v2939
        %v3077 = vsub.f32 %v2527, %v2944
        %v3078 = vsub.f32 %v2529, %v2944
        %v3079 = vsub.f32 %v2531, %v2949
        %v3080 = vsub.f32 %v2533, %v2949
        %v3081 = vsub.f32 %v2537, %v2954
        %v3082 = vsub.f32 %v2539, %v2954
        %v3083 = vsub.f32 %v2541, %v2959
        %v3084 = vsub.f32 %v2543, %v2959
        %v3085 = vsub.f32 %v2547, %v2964
        %v3086 = vsub.f32 %v2549, %v2964
        %v3087 = vsub.f32 %v2551, %v2969
        %v3088 = vsub.f32 %v2553, %v2969
        %v3089 = vsub.f32 %v2557, %v2974
        %v3090 = vsub.f32 %v2559, %v2974
        %v3091 = vsub.f32 %v2561, %v2979
        %v3092 = vsub.f32 %v2563, %v2979
        %v3093 = vsub.f32 %v2567, %v2984
        %v3094 = vsub.f32 %v2569, %v2984
        %v3095 = vsub.f32 %v2571, %v2989
        %v3096 = vsub.f32 %v2573, %v2989
        %v3097 = vsub.f32 %v2577, %v2994
        %v3098 = vsub.f32 %v2579, %v2994
        %v3099 = vsub.f32 %v2581, %v2999
        %v3100 = vsub.f32 %v2583, %v2999
        %v3101 = vsub.f32 %v2587, %v3004
        %v3102 = vsub.f32 %v2589, %v3004
        %v3103 = vsub.f32 %v2591, %v3009
        %v3104 = vsub.f32 %v2593, %v3009
        %v3105 = vsub.f32 %v2597, %v3014
        %v3106 = vsub.f32 %v2599, %v3014
        %v3107 = vsub.f32 %v2601, %v3019
        %v3108 = vsub.f32 %v2603, %v3019
        %v3109 = vsub.f32 %v2607, %v3024
        %v3110 = vsub.f32 %v2609, %v3024
        %v3111 = vsub.f32 %v2611, %v3029
        %v3112 = vsub.f32 %v2613, %v3029
        %v3113 = vsub.f32 %v2617, %v3034
        %v3114 = vsub.f32 %v2619, %v3034
        %v3115 = vsub.f32 %v2621, %v3039
        %v3116 = vsub.f32 %v2623, %v3039
        %v3117 = vsub.f32 %v2627, %v3044
        %v3118 = vsub.f32 %v2629, %v3044
        %v3119 = vsub.f32 %v2631, %v3049
        %v3120 = vsub.f32 %v2633, %v3049
        %v3121 = vsub.f32 %v2637, %v3054
        %v3122 = vsub.f32 %v2639, %v3054
        %v3123 = vsub.f32 %v2641, %v3059
        %v3124 = vsub.f32 %v2643, %v3059
        %v3125 = vmul.f32 %v3061, 1.442695
        %v3126 = vpow.pop %v3125
        %v3127 = vmul.f32 %v3062, 1.442695
        %v3128 = vpow.pop %v3127
        %v3129 = vmul.f32 %v3063, 1.442695
        %v3130 = vpow.pop %v3129
        %v3131 = vmul.f32 %v3064, 1.442695
        %v3132 = vpow.pop %v3131
        %v3133 = vmul.f32 %v3065, 1.442695
        %v3134 = vpow.pop %v3133
        %v3135 = vmul.f32 %v3066, 1.442695
        %v3136 = vpow.pop %v3135
        %v3137 = vmul.f32 %v3067, 1.442695
        %v3138 = vpow.pop %v3137
        %v3139 = vmul.f32 %v3068, 1.442695
        %v3140 = vpow.pop %v3139
        %v3141 = vmul.f32 %v3069, 1.442695
        %v3142 = vpow.pop %v3141
        %v3143 = vmul.f32 %v3070, 1.442695
        %v3144 = vpow.pop %v3143
        %v3145 = vmul.f32 %v3071, 1.442695
        %v3146 = vpow.pop %v3145
        %v3147 = vmul.f32 %v3072, 1.442695
        %v3148 = vpow.pop %v3147
        %v3149 = vmul.f32 %v3073, 1.442695
        %v3150 = vpow.pop %v3149
        %v3151 = vmul.f32 %v3074, 1.442695
        %v3152 = vpow.pop %v3151
        %v3153 = vmul.f32 %v3075, 1.442695
        %v3154 = vpow.pop %v3153
        %v3155 = vmul.f32 %v3076, 1.442695
        %v3156 = vpow.pop %v3155
        %v3157 = vmul.f32 %v3077, 1.442695
        %v3158 = vpow.pop %v3157
        %v3159 = vmul.f32 %v3078, 1.442695
        %v3160 = vpow.pop %v3159
        %v3161 = vmul.f32 %v3079, 1.442695
        %v3162 = vpow.pop %v3161
        %v3163 = vmul.f32 %v3080, 1.442695
        %v3164 = vpow.pop %v3163
        %v3165 = vmul.f32 %v3081, 1.442695
        %v3166 = vpow.pop %v3165
        %v3167 = vmul.f32 %v3082, 1.442695
        %v3168 = vpow.pop %v3167
        %v3169 = vmul.f32 %v3083, 1.442695
        %v3170 = vpow.pop %v3169
        %v3171 = vmul.f32 %v3084, 1.442695
        %v3172 = vpow.pop %v3171
        %v3173 = vmul.f32 %v3085, 1.442695
        %v3174 = vpow.pop %v3173
        %v3175 = vmul.f32 %v3086, 1.442695
        %v3176 = vpow.pop %v3175
        %v3177 = vmul.f32 %v3087, 1.442695
        %v3178 = vpow.pop %v3177
        %v3179 = vmul.f32 %v3088, 1.442695
        %v3180 = vpow.pop %v3179
        %v3181 = vmul.f32 %v3089, 1.442695
        %v3182 = vpow.pop %v3181
        %v3183 = vmul.f32 %v3090, 1.442695
        %v3184 = vpow.pop %v3183
        %v3185 = vmul.f32 %v3091, 1.442695
        %v3186 = vpow.pop %v3185
        %v3187 = vmul.f32 %v3092, 1.442695
        %v3188 = vpow.pop %v3187
        %v3189 = vmul.f32 %v3093, 1.442695
        %v3190 = vpow.pop %v3189
        %v3191 = vmul.f32 %v3094, 1.442695
        %v3192 = vpow.pop %v3191
        %v3193 = vmul.f32 %v3095, 1.442695
        %v3194 = vpow.pop %v3193
        %v3195 = vmul.f32 %v3096, 1.442695
        %v3196 = vpow.pop %v3195
        %v3197 = vmul.f32 %v3097, 1.442695
        %v3198 = vpow.pop %v3197
        %v3199 = vmul.f32 %v3098, 1.442695
        %v3200 = vpow.pop %v3199
        %v3201 = vmul.f32 %v3099, 1.442695
        %v3202 = vpow.pop %v3201
        %v3203 = vmul.f32 %v3100, 1.442695
        %v3204 = vpow.pop %v3203
        %v3205 = vmul.f32 %v3101, 1.442695
        %v3206 = vpow.pop %v3205
        %v3207 = vmul.f32 %v3102, 1.442695
        %v3208 = vpow.pop %v3207
        %v3209 = vmul.f32 %v3103, 1.442695
        %v3210 = vpow.pop %v3209
        %v3211 = vmul.f32 %v3104, 1.442695
        %v3212 = vpow.pop %v3211
        %v3213 = vmul.f32 %v3105, 1.442695
        %v3214 = vpow.pop %v3213
        %v3215 = vmul.f32 %v3106, 1.442695
        %v3216 = vpow.pop %v3215
        %v3217 = vmul.f32 %v3107, 1.442695
        %v3218 = vpow.pop %v3217
        %v3219 = vmul.f32 %v3108, 1.442695
        %v3220 = vpow.pop %v3219
        %v3221 = vmul.f32 %v3109, 1.442695
        %v3222 = vpow.pop %v3221
        %v3223 = vmul.f32 %v3110, 1.442695
        %v3224 = vpow.pop %v3223
        %v3225 = vmul.f32 %v3111, 1.442695
        %v3226 = vpow.pop %v3225
        %v3227 = vmul.f32 %v3112, 1.442695
        %v3228 = vpow.pop %v3227
        %v3229 = vmul.f32 %v3113, 1.442695
        %v3230 = vpow.pop %v3229
        %v3231 = vmul.f32 %v3114, 1.442695
        %v3232 = vpow.pop %v3231
        %v3233 = vmul.f32 %v3115, 1.442695
        %v3234 = vpow.pop %v3233
        %v3235 = vmul.f32 %v3116, 1.442695
        %v3236 = vpow.pop %v3235
        %v3237 = vmul.f32 %v3117, 1.442695
        %v3238 = vpow.pop %v3237
        %v3239 = vmul.f32 %v3118, 1.442695
        %v3240 = vpow.pop %v3239
        %v3241 = vmul.f32 %v3119, 1.442695
        %v3242 = vpow.pop %v3241
        %v3243 = vmul.f32 %v3120, 1.442695
        %v3244 = vpow.pop %v3243
        %v3245 = vmul.f32 %v3121, 1.442695
        %v3246 = vpow.pop %v3245
        %v3247 = vmul.f32 %v3122, 1.442695
        %v3248 = vpow.pop %v3247
        %v3249 = vmul.f32 %v3123, 1.442695
        %v3250 = vpow.pop %v3249
        %v3251 = vmul.f32 %v3124, 1.442695
        %v3252 = vpow.pop %v3251
        %v3253 = vadd.f32 %v3126, %v3128
        %3254 = vadd.xlane.f32.xlu0 %v3253
        %v3255 = vpop.xlane.xlu0 %3254
        %v3256 = vadd.f32 %v3130, %v3132
        %3257 = vadd.xlane.f32.xlu0 %v3256
        %v3258 = vpop.xlane.xlu0 %3257
        %v3259 = vadd.f32 %v3134, %v3136
        %3260 = vadd.xlane.f32.xlu0 %v3259
        %v3261 = vpop.xlane.xlu0 %3260
        %v3262 = vadd.f32 %v3138, %v3140
        %3263 = vadd.xlane.f32.xlu0 %v3262
        %v3264 = vpop.xlane.xlu0 %3263
        %v3265 = vadd.f32 %v3142, %v3144
        %3266 = vadd.xlane.f32.xlu0 %v3265
        %v3267 = vpop.xlane.xlu0 %3266
        %v3268 = vadd.f32 %v3146, %v3148
        %3269 = vadd.xlane.f32.xlu0 %v3268
        %v3270 = vpop.xlane.xlu0 %3269
        %v3271 = vadd.f32 %v3150, %v3152
        %3272 = vadd.xlane.f32.xlu0 %v3271
        %v3273 = vpop.xlane.xlu0 %3272
        %v3274 = vadd.f32 %v3154, %v3156
        %3275 = vadd.xlane.f32.xlu0 %v3274
        %v3276 = vpop.xlane.xlu0 %3275
        %v3277 = vadd.f32 %v3158, %v3160
        %3278 = vadd.xlane.f32.xlu0 %v3277
        %v3279 = vpop.xlane.xlu0 %3278
        %v3280 = vadd.f32 %v3162, %v3164
        %3281 = vadd.xlane.f32.xlu0 %v3280
        %v3282 = vpop.xlane.xlu0 %3281
        %v3283 = vadd.f32 %v3166, %v3168
        %3284 = vadd.xlane.f32.xlu0 %v3283
        %v3285 = vpop.xlane.xlu0 %3284
        %v3286 = vadd.f32 %v3170, %v3172
        %3287 = vadd.xlane.f32.xlu0 %v3286
        %v3288 = vpop.xlane.xlu0 %3287
        %v3289 = vadd.f32 %v3174, %v3176
        %3290 = vadd.xlane.f32.xlu0 %v3289
        %v3291 = vpop.xlane.xlu0 %3290
        %v3292 = vadd.f32 %v3178, %v3180
        %3293 = vadd.xlane.f32.xlu0 %v3292
        %v3294 = vpop.xlane.xlu0 %3293
        %v3295 = vadd.f32 %v3182, %v3184
        %3296 = vadd.xlane.f32.xlu0 %v3295
        %v3297 = vpop.xlane.xlu0 %3296
        %v3298 = vadd.f32 %v3186, %v3188
        %3299 = vadd.xlane.f32.xlu0 %v3298
        %v3300 = vpop.xlane.xlu0 %3299
        %v3301 = vadd.f32 %v3190, %v3192
        %3302 = vadd.xlane.f32.xlu0 %v3301
        %v3303 = vpop.xlane.xlu0 %3302
        %v3304 = vadd.f32 %v3194, %v3196
        %3305 = vadd.xlane.f32.xlu0 %v3304
        %v3306 = vpop.xlane.xlu0 %3305
        %v3307 = vadd.f32 %v3198, %v3200
        %3308 = vadd.xlane.f32.xlu0 %v3307
        %v3309 = vpop.xlane.xlu0 %3308
        %v3310 = vadd.f32 %v3202, %v3204
        %3311 = vadd.xlane.f32.xlu0 %v3310
        %v3312 = vpop.xlane.xlu0 %3311
        %v3313 = vadd.f32 %v3206, %v3208
        %3314 = vadd.xlane.f32.xlu0 %v3313
        %v3315 = vpop.xlane.xlu0 %3314
        %v3316 = vadd.f32 %v3210, %v3212
        %3317 = vadd.xlane.f32.xlu0 %v3316
        %v3318 = vpop.xlane.xlu0 %3317
        %v3319 = vadd.f32 %v3214, %v3216
        %3320 = vadd.xlane.f32.xlu0 %v3319
        %v3321 = vpop.xlane.xlu0 %3320
        %v3322 = vadd.f32 %v3218, %v3220
        %3323 = vadd.xlane.f32.xlu0 %v3322
        %v3324 = vpop.xlane.xlu0 %3323
        %v3325 = vadd.f32 %v3222, %v3224
        %3326 = vadd.xlane.f32.xlu0 %v3325
        %v3327 = vpop.xlane.xlu0 %3326
        %v3328 = vadd.f32 %v3226, %v3228
        %3329 = vadd.xlane.f32.xlu0 %v3328
        %v3330 = vpop.xlane.xlu0 %3329
        %v3331 = vadd.f32 %v3230, %v3232
        %3332 = vadd.xlane.f32.xlu0 %v3331
        %v3333 = vpop.xlane.xlu0 %3332
        %v3334 = vadd.f32 %v3234, %v3236
        %3335 = vadd.xlane.f32.xlu0 %v3334
        %v3336 = vpop.xlane.xlu0 %3335
        %v3337 = vadd.f32 %v3238, %v3240
        %3338 = vadd.xlane.f32.xlu0 %v3337
        %v3339 = vpop.xlane.xlu0 %3338
        %v3340 = vadd.f32 %v3242, %v3244
        %3341 = vadd.xlane.f32.xlu0 %v3340
        %v3342 = vpop.xlane.xlu0 %3341
        %v3343 = vadd.f32 %v3246, %v3248
        %3344 = vadd.xlane.f32.xlu0 %v3343
        %v3345 = vpop.xlane.xlu0 %3344
        %v3346 = vadd.f32 %v3250, %v3252
        %3347 = vadd.xlane.f32.xlu0 %v3346
        %v3348 = vpop.xlane.xlu0 %3347
        %v3349 = vpack.c.bf16 %v3130, %v3126
        %v3350 = vpack.c.bf16 %v3132, %v3128
        %v3351 = vpack.c.bf16 %v3138, %v3134
        %v3352 = vpack.c.bf16 %v3140, %v3136
        %v3353 = vpack.c.bf16 %v3146, %v3142
        %v3354 = vpack.c.bf16 %v3148, %v3144
        %v3355 = vpack.c.bf16 %v3154, %v3150
        %v3356 = vpack.c.bf16 %v3156, %v3152
        %v3357 = vpack.c.bf16 %v3162, %v3158
        %v3358 = vpack.c.bf16 %v3164, %v3160
        %v3359 = vpack.c.bf16 %v3170, %v3166
        %v3360 = vpack.c.bf16 %v3172, %v3168
        %v3361 = vpack.c.bf16 %v3178, %v3174
        %v3362 = vpack.c.bf16 %v3180, %v3176
        %v3363 = vpack.c.bf16 %v3186, %v3182
        %v3364 = vpack.c.bf16 %v3188, %v3184
        %v3365 = vpack.c.bf16 %v3194, %v3190
        %v3366 = vpack.c.bf16 %v3196, %v3192
        %v3367 = vpack.c.bf16 %v3202, %v3198
        %v3368 = vpack.c.bf16 %v3204, %v3200
        %v3369 = vpack.c.bf16 %v3210, %v3206
        %v3370 = vpack.c.bf16 %v3212, %v3208
        %v3371 = vpack.c.bf16 %v3218, %v3214
        %v3372 = vpack.c.bf16 %v3220, %v3216
        %v3373 = vpack.c.bf16 %v3226, %v3222
        %v3374 = vpack.c.bf16 %v3228, %v3224
        %v3375 = vpack.c.bf16 %v3234, %v3230
        %v3376 = vpack.c.bf16 %v3236, %v3232
        %v3377 = vpack.c.bf16 %v3242, %v3238
        %v3378 = vpack.c.bf16 %v3244, %v3240
        %v3379 = vpack.c.bf16 %v3250, %v3246
        %v3380 = vpack.c.bf16 %v3252, %v3248
        %v3381 = vld [vmem:[#allocation4] sm:$0xff]
        %v3382 = vld [vmem:[#allocation4 + $0x8] sm:$0xff]
        %v3383 = vld [vmem:[#allocation4 + $0x10] sm:$0xff]
        %v3384 = vld [vmem:[#allocation4 + $0x18] sm:$0xff]
        %v3385 = vld [vmem:[#allocation4 + $0x20] sm:$0xff]
        %v3386 = vld [vmem:[#allocation4 + $0x28] sm:$0xff]
        %v3387 = vld [vmem:[#allocation4 + $0x30] sm:$0xff]
        %v3388 = vld [vmem:[#allocation4 + $0x38] sm:$0xff]
        %v3389 = vld [vmem:[#allocation4 + $0x40] sm:$0xff]
        %v3390 = vld [vmem:[#allocation4 + $0x48] sm:$0xff]
        %v3391 = vld [vmem:[#allocation4 + $0x50] sm:$0xff]
        %v3392 = vld [vmem:[#allocation4 + $0x58] sm:$0xff]
        %v3393 = vld [vmem:[#allocation4 + $0x60] sm:$0xff]
        %v3394 = vld [vmem:[#allocation4 + $0x68] sm:$0xff]
        %v3395 = vld [vmem:[#allocation4 + $0x70] sm:$0xff]
        %v3396 = vld [vmem:[#allocation4 + $0x78] sm:$0xff]
        %v3397 = vld [vmem:[#allocation4 + $0x80] sm:$0xff]
        %v3398 = vld [vmem:[#allocation4 + $0x88] sm:$0xff]
        %v3399 = vld [vmem:[#allocation4 + $0x90] sm:$0xff]
        %v3400 = vld [vmem:[#allocation4 + $0x98] sm:$0xff]
        %v3401 = vld [vmem:[#allocation4 + $0xa0] sm:$0xff]
        %v3402 = vld [vmem:[#allocation4 + $0xa8] sm:$0xff]
        %v3403 = vld [vmem:[#allocation4 + $0xb0] sm:$0xff]
        %v3404 = vld [vmem:[#allocation4 + $0xb8] sm:$0xff]
        %v3405 = vld [vmem:[#allocation4 + $0xc0] sm:$0xff]
        %v3406 = vld [vmem:[#allocation4 + $0xc8] sm:$0xff]
        %v3407 = vld [vmem:[#allocation4 + $0xd0] sm:$0xff]
        %v3408 = vld [vmem:[#allocation4 + $0xd8] sm:$0xff]
        %v3409 = vld [vmem:[#allocation4 + $0xe0] sm:$0xff]
        %v3410 = vld [vmem:[#allocation4 + $0xe8] sm:$0xff]
        %v3411 = vld [vmem:[#allocation4 + $0xf0] sm:$0xff]
        %v3412 = vld [vmem:[#allocation4 + $0xf8] sm:$0xff]
        %v3413 = vmul.f32 %v2838, %v3381
        %v3414 = vmul.f32 %v2840, %v3382
        %v3415 = vmul.f32 %v2842, %v3383
        %v3416 = vmul.f32 %v2844, %v3384
        %v3417 = vmul.f32 %v2846, %v3385
        %v3418 = vmul.f32 %v2848, %v3386
        %v3419 = vmul.f32 %v2850, %v3387
        %v3420 = vmul.f32 %v2852, %v3388
        %v3421 = vmul.f32 %v2854, %v3389
        %v3422 = vmul.f32 %v2856, %v3390
        %v3423 = vmul.f32 %v2858, %v3391
        %v3424 = vmul.f32 %v2860, %v3392
        %v3425 = vmul.f32 %v2862, %v3393
        %v3426 = vmul.f32 %v2864, %v3394
        %v3427 = vmul.f32 %v2866, %v3395
        %v3428 = vmul.f32 %v2868, %v3396
        %v3429 = vmul.f32 %v2870, %v3397
        %v3430 = vmul.f32 %v2872, %v3398
        %v3431 = vmul.f32 %v2874, %v3399
        %v3432 = vmul.f32 %v2876, %v3400
        %v3433 = vmul.f32 %v2878, %v3401
        %v3434 = vmul.f32 %v2880, %v3402
        %v3435 = vmul.f32 %v2882, %v3403
        %v3436 = vmul.f32 %v2884, %v3404
        %v3437 = vmul.f32 %v2886, %v3405
        %v3438 = vmul.f32 %v2888, %v3406
        %v3439 = vmul.f32 %v2890, %v3407
        %v3440 = vmul.f32 %v2892, %v3408
        %v3441 = vmul.f32 %v2894, %v3409
        %v3442 = vmul.f32 %v2896, %v3410
        %v3443 = vmul.f32 %v2898, %v3411
        %v3444 = vmul.f32 %v2900, %v3412
        %v3445 = vadd.f32 %v3413, %v3255
        %v3446 = vadd.f32 %v3414, %v3258
        %v3447 = vadd.f32 %v3415, %v3261
        %v3448 = vadd.f32 %v3416, %v3264
        %v3449 = vadd.f32 %v3417, %v3267
        %v3450 = vadd.f32 %v3418, %v3270
        %v3451 = vadd.f32 %v3419, %v3273
        %v3452 = vadd.f32 %v3420, %v3276
        %v3453 = vadd.f32 %v3421, %v3279
        %v3454 = vadd.f32 %v3422, %v3282
        %v3455 = vadd.f32 %v3423, %v3285
        %v3456 = vadd.f32 %v3424, %v3288
        %v3457 = vadd.f32 %v3425, %v3291
        %v3458 = vadd.f32 %v3426, %v3294
        %v3459 = vadd.f32 %v3427, %v3297
        %v3460 = vadd.f32 %v3428, %v3300
        %v3461 = vadd.f32 %v3429, %v3303
        %v3462 = vadd.f32 %v3430, %v3306
        %v3463 = vadd.f32 %v3431, %v3309
        %v3464 = vadd.f32 %v3432, %v3312
        %v3465 = vadd.f32 %v3433, %v3315
        %v3466 = vadd.f32 %v3434, %v3318
        %v3467 = vadd.f32 %v3435, %v3321
        %v3468 = vadd.f32 %v3436, %v3324
        %v3469 = vadd.f32 %v3437, %v3327
        %v3470 = vadd.f32 %v3438, %v3330
        %v3471 = vadd.f32 %v3439, %v3333
        %v3472 = vadd.f32 %v3440, %v3336
        %v3473 = vadd.f32 %v3441, %v3339
        %v3474 = vadd.f32 %v3442, %v3342
        %v3475 = vadd.f32 %v3443, %v3345
        %v3476 = vadd.f32 %v3444, %v3348
        %vm3477 = vcmask 7168
        %3478 = vst.msk [vmem:[#allocation4] sm:$0xff] %vm3477, %v3445
        %3479 = vst.msk [vmem:[#allocation4 + $0x8] sm:$0xff] %vm3477, %v3446
        %3480 = vst.msk [vmem:[#allocation4 + $0x10] sm:$0xff] %vm3477, %v3447
        %3481 = vst.msk [vmem:[#allocation4 + $0x18] sm:$0xff] %vm3477, %v3448
        %3482 = vst.msk [vmem:[#allocation4 + $0x20] sm:$0xff] %vm3477, %v3449
        %3483 = vst.msk [vmem:[#allocation4 + $0x28] sm:$0xff] %vm3477, %v3450
        %3484 = vst.msk [vmem:[#allocation4 + $0x30] sm:$0xff] %vm3477, %v3451
        %3485 = vst.msk [vmem:[#allocation4 + $0x38] sm:$0xff] %vm3477, %v3452
        %3486 = vst.msk [vmem:[#allocation4 + $0x40] sm:$0xff] %vm3477, %v3453
        %3487 = vst.msk [vmem:[#allocation4 + $0x48] sm:$0xff] %vm3477, %v3454
        %3488 = vst.msk [vmem:[#allocation4 + $0x50] sm:$0xff] %vm3477, %v3455
        %3489 = vst.msk [vmem:[#allocation4 + $0x58] sm:$0xff] %vm3477, %v3456
        %3490 = vst.msk [vmem:[#allocation4 + $0x60] sm:$0xff] %vm3477, %v3457
        %3491 = vst.msk [vmem:[#allocation4 + $0x68] sm:$0xff] %vm3477, %v3458
        %3492 = vst.msk [vmem:[#allocation4 + $0x70] sm:$0xff] %vm3477, %v3459
        %3493 = vst.msk [vmem:[#allocation4 + $0x78] sm:$0xff] %vm3477, %v3460
        %3494 = vst.msk [vmem:[#allocation4 + $0x80] sm:$0xff] %vm3477, %v3461
        %3495 = vst.msk [vmem:[#allocation4 + $0x88] sm:$0xff] %vm3477, %v3462
        %3496 = vst.msk [vmem:[#allocation4 + $0x90] sm:$0xff] %vm3477, %v3463
        %3497 = vst.msk [vmem:[#allocation4 + $0x98] sm:$0xff] %vm3477, %v3464
        %3498 = vst.msk [vmem:[#allocation4 + $0xa0] sm:$0xff] %vm3477, %v3465
        %3499 = vst.msk [vmem:[#allocation4 + $0xa8] sm:$0xff] %vm3477, %v3466
        %3500 = vst.msk [vmem:[#allocation4 + $0xb0] sm:$0xff] %vm3477, %v3467
        %3501 = vst.msk [vmem:[#allocation4 + $0xb8] sm:$0xff] %vm3477, %v3468
        %3502 = vst.msk [vmem:[#allocation4 + $0xc0] sm:$0xff] %vm3477, %v3469
        %3503 = vst.msk [vmem:[#allocation4 + $0xc8] sm:$0xff] %vm3477, %v3470
        %3504 = vst.msk [vmem:[#allocation4 + $0xd0] sm:$0xff] %vm3477, %v3471
        %3505 = vst.msk [vmem:[#allocation4 + $0xd8] sm:$0xff] %vm3477, %v3472
        %3506 = vst.msk [vmem:[#allocation4 + $0xe0] sm:$0xff] %vm3477, %v3473
        %3507 = vst.msk [vmem:[#allocation4 + $0xe8] sm:$0xff] %vm3477, %v3474
        %3508 = vst.msk [vmem:[#allocation4 + $0xf0] sm:$0xff] %vm3477, %v3475
        %3509 = vst.msk [vmem:[#allocation4 + $0xf8] sm:$0xff] %vm3477, %v3476
        %v3510 = vld [vmem:[#allocation5] sm:$0xff]
        %v3511 = vld [vmem:[#allocation5 + $0x8] sm:$0xff]
        %v3512 = vld [vmem:[#allocation5 + $0x10] sm:$0xff]
        %v3513 = vld [vmem:[#allocation5 + $0x18] sm:$0xff]
        %v3514 = vld [vmem:[#allocation5 + $0x20] sm:$0xff]
        %v3515 = vld [vmem:[#allocation5 + $0x28] sm:$0xff]
        %v3516 = vld [vmem:[#allocation5 + $0x30] sm:$0xff]
        %v3517 = vld [vmem:[#allocation5 + $0x38] sm:$0xff]
        %v3518 = vld [vmem:[#allocation5 + $0x40] sm:$0xff]
        %v3519 = vld [vmem:[#allocation5 + $0x48] sm:$0xff]
        %v3520 = vld [vmem:[#allocation5 + $0x50] sm:$0xff]
        %v3521 = vld [vmem:[#allocation5 + $0x58] sm:$0xff]
        %v3522 = vld [vmem:[#allocation5 + $0x60] sm:$0xff]
        %v3523 = vld [vmem:[#allocation5 + $0x68] sm:$0xff]
        %v3524 = vld [vmem:[#allocation5 + $0x70] sm:$0xff]
        %v3525 = vld [vmem:[#allocation5 + $0x78] sm:$0xff]
        %v3526 = vld [vmem:[#allocation5 + $0x80] sm:$0xff]
        %v3527 = vld [vmem:[#allocation5 + $0x88] sm:$0xff]
        %v3528 = vld [vmem:[#allocation5 + $0x90] sm:$0xff]
        %v3529 = vld [vmem:[#allocation5 + $0x98] sm:$0xff]
        %v3530 = vld [vmem:[#allocation5 + $0xa0] sm:$0xff]
        %v3531 = vld [vmem:[#allocation5 + $0xa8] sm:$0xff]
        %v3532 = vld [vmem:[#allocation5 + $0xb0] sm:$0xff]
        %v3533 = vld [vmem:[#allocation5 + $0xb8] sm:$0xff]
        %v3534 = vld [vmem:[#allocation5 + $0xc0] sm:$0xff]
        %v3535 = vld [vmem:[#allocation5 + $0xc8] sm:$0xff]
        %v3536 = vld [vmem:[#allocation5 + $0xd0] sm:$0xff]
        %v3537 = vld [vmem:[#allocation5 + $0xd8] sm:$0xff]
        %v3538 = vld [vmem:[#allocation5 + $0xe0] sm:$0xff]
        %v3539 = vld [vmem:[#allocation5 + $0xe8] sm:$0xff]
        %v3540 = vld [vmem:[#allocation5 + $0xf0] sm:$0xff]
        %v3541 = vld [vmem:[#allocation5 + $0xf8] sm:$0xff]
        %3543 = vset.pattern.permute.xlu0 0
        %3544 = vperm.xlu0 %3543, %v2838
        %v3545 = vpop.permute.xlu0 %3544
        %3548 = vset.pattern.permute.xlu0 0
        %3549 = vperm.xlu0 %3548, %v2840
        %v3550 = vpop.permute.xlu0 %3549
        %3553 = vset.pattern.permute.xlu0 0
        %3554 = vperm.xlu0 %3553, %v2842
        %v3555 = vpop.permute.xlu0 %3554
        %3558 = vset.pattern.permute.xlu0 0
        %3559 = vperm.xlu0 %3558, %v2844
        %v3560 = vpop.permute.xlu0 %3559
        %3563 = vset.pattern.permute.xlu0 0
        %3564 = vperm.xlu0 %3563, %v2846
        %v3565 = vpop.permute.xlu0 %3564
        %3568 = vset.pattern.permute.xlu0 0
        %3569 = vperm.xlu0 %3568, %v2848
        %v3570 = vpop.permute.xlu0 %3569
        %3573 = vset.pattern.permute.xlu0 0
        %3574 = vperm.xlu0 %3573, %v2850
        %v3575 = vpop.permute.xlu0 %3574
        %3578 = vset.pattern.permute.xlu0 0
        %3579 = vperm.xlu0 %3578, %v2852
        %v3580 = vpop.permute.xlu0 %3579
        %3583 = vset.pattern.permute.xlu0 0
        %3584 = vperm.xlu0 %3583, %v2854
        %v3585 = vpop.permute.xlu0 %3584
        %3588 = vset.pattern.permute.xlu0 0
        %3589 = vperm.xlu0 %3588, %v2856
        %v3590 = vpop.permute.xlu0 %3589
        %3593 = vset.pattern.permute.xlu0 0
        %3594 = vperm.xlu0 %3593, %v2858
        %v3595 = vpop.permute.xlu0 %3594
        %3598 = vset.pattern.permute.xlu0 0
        %3599 = vperm.xlu0 %3598, %v2860
        %v3600 = vpop.permute.xlu0 %3599
        %3603 = vset.pattern.permute.xlu0 0
        %3604 = vperm.xlu0 %3603, %v2862
        %v3605 = vpop.permute.xlu0 %3604
        %3608 = vset.pattern.permute.xlu0 0
        %3609 = vperm.xlu0 %3608, %v2864
        %v3610 = vpop.permute.xlu0 %3609
        %3613 = vset.pattern.permute.xlu0 0
        %3614 = vperm.xlu0 %3613, %v2866
        %v3615 = vpop.permute.xlu0 %3614
        %3618 = vset.pattern.permute.xlu0 0
        %3619 = vperm.xlu0 %3618, %v2868
        %v3620 = vpop.permute.xlu0 %3619
        %3623 = vset.pattern.permute.xlu0 0
        %3624 = vperm.xlu0 %3623, %v2870
        %v3625 = vpop.permute.xlu0 %3624
        %3628 = vset.pattern.permute.xlu0 0
        %3629 = vperm.xlu0 %3628, %v2872
        %v3630 = vpop.permute.xlu0 %3629
        %3633 = vset.pattern.permute.xlu0 0
        %3634 = vperm.xlu0 %3633, %v2874
        %v3635 = vpop.permute.xlu0 %3634
        %3638 = vset.pattern.permute.xlu0 0
        %3639 = vperm.xlu0 %3638, %v2876
        %v3640 = vpop.permute.xlu0 %3639
        %3643 = vset.pattern.permute.xlu0 0
        %3644 = vperm.xlu0 %3643, %v2878
        %v3645 = vpop.permute.xlu0 %3644
        %3648 = vset.pattern.permute.xlu0 0
        %3649 = vperm.xlu0 %3648, %v2880
        %v3650 = vpop.permute.xlu0 %3649
        %3653 = vset.pattern.permute.xlu0 0
        %3654 = vperm.xlu0 %3653, %v2882
        %v3655 = vpop.permute.xlu0 %3654
        %3658 = vset.pattern.permute.xlu0 0
        %3659 = vperm.xlu0 %3658, %v2884
        %v3660 = vpop.permute.xlu0 %3659
        %3663 = vset.pattern.permute.xlu0 0
        %3664 = vperm.xlu0 %3663, %v2886
        %v3665 = vpop.permute.xlu0 %3664
        %3668 = vset.pattern.permute.xlu0 0
        %3669 = vperm.xlu0 %3668, %v2888
        %v3670 = vpop.permute.xlu0 %3669
        %3673 = vset.pattern.permute.xlu0 0
        %3674 = vperm.xlu0 %3673, %v2890
        %v3675 = vpop.permute.xlu0 %3674
        %3678 = vset.pattern.permute.xlu0 0
        %3679 = vperm.xlu0 %3678, %v2892
        %v3680 = vpop.permute.xlu0 %3679
        %3683 = vset.pattern.permute.xlu0 0
        %3684 = vperm.xlu0 %3683, %v2894
        %v3685 = vpop.permute.xlu0 %3684
        %3688 = vset.pattern.permute.xlu0 0
        %3689 = vperm.xlu0 %3688, %v2896
        %v3690 = vpop.permute.xlu0 %3689
        %3693 = vset.pattern.permute.xlu0 0
        %3694 = vperm.xlu0 %3693, %v2898
        %v3695 = vpop.permute.xlu0 %3694
        %3698 = vset.pattern.permute.xlu0 0
        %3699 = vperm.xlu0 %3698, %v2900
        %v3700 = vpop.permute.xlu0 %3699
        %v3702 = vmul.f32 %v3545, %v3510
        %v3703 = vmul.f32 %v3550, %v3511
        %v3704 = vmul.f32 %v3555, %v3512
        %v3705 = vmul.f32 %v3560, %v3513
        %v3706 = vmul.f32 %v3565, %v3514
        %v3707 = vmul.f32 %v3570, %v3515
        %v3708 = vmul.f32 %v3575, %v3516
        %v3709 = vmul.f32 %v3580, %v3517
        %v3710 = vmul.f32 %v3585, %v3518
        %v3711 = vmul.f32 %v3590, %v3519
        %v3712 = vmul.f32 %v3595, %v3520
        %v3713 = vmul.f32 %v3600, %v3521
        %v3714 = vmul.f32 %v3605, %v3522
        %v3715 = vmul.f32 %v3610, %v3523
        %v3716 = vmul.f32 %v3615, %v3524
        %v3717 = vmul.f32 %v3620, %v3525
        %v3718 = vmul.f32 %v3625, %v3526
        %v3719 = vmul.f32 %v3630, %v3527
        %v3720 = vmul.f32 %v3635, %v3528
        %v3721 = vmul.f32 %v3640, %v3529
        %v3722 = vmul.f32 %v3645, %v3530
        %v3723 = vmul.f32 %v3650, %v3531
        %v3724 = vmul.f32 %v3655, %v3532
        %v3725 = vmul.f32 %v3660, %v3533
        %v3726 = vmul.f32 %v3665, %v3534
        %v3727 = vmul.f32 %v3670, %v3535
        %v3728 = vmul.f32 %v3675, %v3536
        %v3729 = vmul.f32 %v3680, %v3537
        %v3730 = vmul.f32 %v3685, %v3538
        %v3731 = vmul.f32 %v3690, %v3539
        %v3732 = vmul.f32 %v3695, %v3540
        %v3733 = vmul.f32 %v3700, %v3541
        %3734 = vmatprep.subr.bf16.mxu0 0
        %3735 = vmatpush1.bf16.msra.mxu0 %v2182
        %3736 = vmatprep.subr.bf16.mxu0 0
        %3737 = vmatpush1.bf16.msra.mxu0 %v2184
        %3738 = vmatprep.subr.bf16.mxu0 0
        %3739 = vmatpush1.bf16.msra.mxu0 %v2186
        %3740 = vmatprep.subr.bf16.mxu0 0
        %3741 = vmatpush1.bf16.msra.mxu0 %v2188
        %3742 = vmatprep.subr.bf16.mxu0 0
        %3743 = vmatpush1.bf16.msra.mxu0 %v2190
        %3744 = vmatprep.subr.bf16.mxu0 0
        %3745 = vmatpush1.bf16.msra.mxu0 %v2192
        %3746 = vmatprep.subr.bf16.mxu0 0
        %3747 = vmatpush1.bf16.msra.mxu0 %v2194
        %3748 = vmatprep.subr.bf16.mxu0 0
        %3749 = vmatpush1.bf16.msra.mxu0 %v2196
        %3750 = vmatprep.subr.bf16.mxu0 0
        %3751 = vmatpush1.bf16.msra.mxu0 %v2198
        %3752 = vmatprep.subr.bf16.mxu0 0
        %3753 = vmatpush1.bf16.msra.mxu0 %v2200
        %3754 = vmatprep.subr.bf16.mxu0 0
        %3755 = vmatpush1.bf16.msra.mxu0 %v2202
        %3756 = vmatprep.subr.bf16.mxu0 0
        %3757 = vmatpush1.bf16.msra.mxu0 %v2204
        %3758 = vmatprep.subr.bf16.mxu0 0
        %3759 = vmatpush1.bf16.msra.mxu0 %v2206
        %3760 = vmatprep.subr.bf16.mxu0 0
        %3761 = vmatpush1.bf16.msra.mxu0 %v2208
        %3762 = vmatprep.subr.bf16.mxu0 0
        %3763 = vmatpush1.bf16.msra.mxu0 %v2210
        %3764 = vmatprep.subr.bf16.mxu0 0
        %3765 = vmatpush1.bf16.msra.mxu0 %v2212
        %3766 = vmatprep.mubr.bf16.mxu0 %v3350
        %3767 = vmatmul.mubr.bf16.gmra.mrb[0].mxu0 %v3349
        %v3768 = vpop.f32.mrb[0].mxu0
        %v3769 = vadd.f32 0.0, %v3768
        %v3770 = vpop.f32.mrb[0].mxu0
        %v3771 = vpop.f32.mrb[0].mxu0
        %v3772 = vadd.f32 0.0, %v3771
        %v3773 = vpop.f32.mrb[0].mxu0
        %3774 = vmatprep.mubr.bf16.mxu0 %v3352
        %3775 = vmatmul.mubr.bf16.gmra.mrb[0].mxu0 %v3351
        %v3776 = vpop.f32.mrb[0].mxu0
        %v3777 = vadd.f32 0.0, %v3776
        %v3778 = vpop.f32.mrb[0].mxu0
        %v3779 = vpop.f32.mrb[0].mxu0
        %v3780 = vadd.f32 0.0, %v3779
        %v3781 = vpop.f32.mrb[0].mxu0
        %3782 = vmatprep.mubr.bf16.mxu0 %v3354
        %3783 = vmatmul.mubr.bf16.gmra.mrb[0].mxu0 %v3353
        %v3784 = vpop.f32.mrb[0].mxu0
        %v3785 = vadd.f32 0.0, %v3784
        %v3786 = vpop.f32.mrb[0].mxu0
        %v3787 = vpop.f32.mrb[0].mxu0
        %v3788 = vadd.f32 0.0, %v3787
        %v3789 = vpop.f32.mrb[0].mxu0
        %3790 = vmatprep.mubr.bf16.mxu0 %v3356
        %3791 = vmatmul.mubr.bf16.gmra.mrb[0].mxu0 %v3355
        %v3792 = vpop.f32.mrb[0].mxu0
        %v3793 = vadd.f32 0.0, %v3792
        %v3794 = vpop.f32.mrb[0].mxu0
        %v3795 = vpop.f32.mrb[0].mxu0
        %v3796 = vadd.f32 0.0, %v3795
        %v3797 = vpop.f32.mrb[0].mxu0
        %3798 = vmatprep.mubr.bf16.mxu0 %v3358
        %3799 = vmatmul.mubr.bf16.gmra.mrb[0].mxu0 %v3357
        %v3800 = vpop.f32.mrb[0].mxu0
        %v3801 = vadd.f32 0.0, %v3800
        %v3802 = vpop.f32.mrb[0].mxu0
        %v3803 = vpop.f32.mrb[0].mxu0
        %v3804 = vadd.f32 0.0, %v3803
        %v3805 = vpop.f32.mrb[0].mxu0
        %3806 = vmatprep.mubr.bf16.mxu0 %v3360
        %3807 = vmatmul.mubr.bf16.gmra.mrb[0].mxu0 %v3359
        %v3808 = vpop.f32.mrb[0].mxu0
        %v3809 = vadd.f32 0.0, %v3808
        %v3810 = vpop.f32.mrb[0].mxu0
        %v3811 = vpop.f32.mrb[0].mxu0
        %v3812 = vadd.f32 0.0, %v3811
        %v3813 = vpop.f32.mrb[0].mxu0
        %3814 = vmatprep.mubr.bf16.mxu0 %v3362
        %3815 = vmatmul.mubr.bf16.gmra.mrb[0].mxu0 %v3361
        %v3816 = vpop.f32.mrb[0].mxu0
        %v3817 = vadd.f32 0.0, %v3816
        %v3818 = vpop.f32.mrb[0].mxu0
        %v3819 = vpop.f32.mrb[0].mxu0
        %v3820 = vadd.f32 0.0, %v3819
        %v3821 = vpop.f32.mrb[0].mxu0
        %3822 = vmatprep.mubr.bf16.mxu0 %v3364
        %3823 = vmatmul.mubr.bf16.gmra.mrb[0].mxu0 %v3363
        %v3824 = vpop.f32.mrb[0].mxu0
        %v3825 = vadd.f32 0.0, %v3824
        %v3826 = vpop.f32.mrb[0].mxu0
        %v3827 = vpop.f32.mrb[0].mxu0
        %v3828 = vadd.f32 0.0, %v3827
        %v3829 = vpop.f32.mrb[0].mxu0
        %3830 = vmatprep.mubr.bf16.mxu0 %v3366
        %3831 = vmatmul.mubr.bf16.gmra.mrb[0].mxu0 %v3365
        %v3832 = vpop.f32.mrb[0].mxu0
        %v3833 = vadd.f32 0.0, %v3832
        %v3834 = vpop.f32.mrb[0].mxu0
        %v3835 = vpop.f32.mrb[0].mxu0
        %v3836 = vadd.f32 0.0, %v3835
        %v3837 = vpop.f32.mrb[0].mxu0
        %3838 = vmatprep.mubr.bf16.mxu0 %v3368
        %3839 = vmatmul.mubr.bf16.gmra.mrb[0].mxu0 %v3367
        %v3840 = vpop.f32.mrb[0].mxu0
        %v3841 = vadd.f32 0.0, %v3840
        %v3842 = vpop.f32.mrb[0].mxu0
        %v3843 = vpop.f32.mrb[0].mxu0
        %v3844 = vadd.f32 0.0, %v3843
        %v3845 = vpop.f32.mrb[0].mxu0
        %3846 = vmatprep.mubr.bf16.mxu0 %v3370
        %3847 = vmatmul.mubr.bf16.gmra.mrb[0].mxu0 %v3369
        %v3848 = vpop.f32.mrb[0].mxu0
        %v3849 = vadd.f32 0.0, %v3848
        %v3850 = vpop.f32.mrb[0].mxu0
        %v3851 = vpop.f32.mrb[0].mxu0
        %v3852 = vadd.f32 0.0, %v3851
        %v3853 = vpop.f32.mrb[0].mxu0
        %3854 = vmatprep.mubr.bf16.mxu0 %v3372
        %3855 = vmatmul.mubr.bf16.gmra.mrb[0].mxu0 %v3371
        %v3856 = vpop.f32.mrb[0].mxu0
        %v3857 = vadd.f32 0.0, %v3856
        %v3858 = vpop.f32.mrb[0].mxu0
        %v3859 = vpop.f32.mrb[0].mxu0
        %v3860 = vadd.f32 0.0, %v3859
        %v3861 = vpop.f32.mrb[0].mxu0
        %3862 = vmatprep.mubr.bf16.mxu0 %v3374
        %3863 = vmatmul.mubr.bf16.gmra.mrb[0].mxu0 %v3373
        %v3864 = vpop.f32.mrb[0].mxu0
        %v3865 = vadd.f32 0.0, %v3864
        %v3866 = vpop.f32.mrb[0].mxu0
        %v3867 = vpop.f32.mrb[0].mxu0
        %v3868 = vadd.f32 0.0, %v3867
        %v3869 = vpop.f32.mrb[0].mxu0
        %3870 = vmatprep.mubr.bf16.mxu0 %v3376
        %3871 = vmatmul.mubr.bf16.gmra.mrb[0].mxu0 %v3375
        %v3872 = vpop.f32.mrb[0].mxu0
        %v3873 = vadd.f32 0.0, %v3872
        %v3874 = vpop.f32.mrb[0].mxu0
        %v3875 = vpop.f32.mrb[0].mxu0
        %v3876 = vadd.f32 0.0, %v3875
        %v3877 = vpop.f32.mrb[0].mxu0
        %3878 = vmatprep.mubr.bf16.mxu0 %v3378
        %3879 = vmatmul.mubr.bf16.gmra.mrb[0].mxu0 %v3377
        %v3880 = vpop.f32.mrb[0].mxu0
        %v3881 = vadd.f32 0.0, %v3880
        %v3882 = vpop.f32.mrb[0].mxu0
        %v3883 = vpop.f32.mrb[0].mxu0
        %v3884 = vadd.f32 0.0, %v3883
        %v3885 = vpop.f32.mrb[0].mxu0
        %3886 = vmatprep.mubr.bf16.mxu0 %v3380
        %3887 = vmatmul.mubr.bf16.gmra.mrb[0].mxu0 %v3379
        %v3888 = vpop.f32.mrb[0].mxu0
        %v3889 = vadd.f32 0.0, %v3888
        %v3890 = vpop.f32.mrb[0].mxu0
        %v3891 = vpop.f32.mrb[0].mxu0
        %v3892 = vadd.f32 0.0, %v3891
        %v3893 = vpop.f32.mrb[0].mxu0
        %3894 = vdwg.mxu0
        %v3895 = vadd.f32 %v3702, %v3769
        %v3896 = vadd.f32 %v3703, %v3772
        %v3897 = vadd.f32 %v3704, %v3777
        %v3898 = vadd.f32 %v3705, %v3780
        %v3899 = vadd.f32 %v3706, %v3785
        %v3900 = vadd.f32 %v3707, %v3788
        %v3901 = vadd.f32 %v3708, %v3793
        %v3902 = vadd.f32 %v3709, %v3796
        %v3903 = vadd.f32 %v3710, %v3801
        %v3904 = vadd.f32 %v3711, %v3804
        %v3905 = vadd.f32 %v3712, %v3809
        %v3906 = vadd.f32 %v3713, %v3812
        %v3907 = vadd.f32 %v3714, %v3817
        %v3908 = vadd.f32 %v3715, %v3820
        %v3909 = vadd.f32 %v3716, %v3825
        %v3910 = vadd.f32 %v3717, %v3828
        %v3911 = vadd.f32 %v3718, %v3833
        %v3912 = vadd.f32 %v3719, %v3836
        %v3913 = vadd.f32 %v3720, %v3841
        %v3914 = vadd.f32 %v3721, %v3844
        %v3915 = vadd.f32 %v3722, %v3849
        %v3916 = vadd.f32 %v3723, %v3852
        %v3917 = vadd.f32 %v3724, %v3857
        %v3918 = vadd.f32 %v3725, %v3860
        %v3919 = vadd.f32 %v3726, %v3865
        %v3920 = vadd.f32 %v3727, %v3868
        %v3921 = vadd.f32 %v3728, %v3873
        %v3922 = vadd.f32 %v3729, %v3876
        %v3923 = vadd.f32 %v3730, %v3881
        %v3924 = vadd.f32 %v3731, %v3884
        %v3925 = vadd.f32 %v3732, %v3889
        %v3926 = vadd.f32 %v3733, %v3892
        %3927 = vst [vmem:[#allocation5] sm:$0xff] %v3895
        %3928 = vst [vmem:[#allocation5 + $0x8] sm:$0xff] %v3896
        %3929 = vst [vmem:[#allocation5 + $0x10] sm:$0xff] %v3897
        %3930 = vst [vmem:[#allocation5 + $0x18] sm:$0xff] %v3898
        %3931 = vst [vmem:[#allocation5 + $0x20] sm:$0xff] %v3899
        %3932 = vst [vmem:[#allocation5 + $0x28] sm:$0xff] %v3900
        %3933 = vst [vmem:[#allocation5 + $0x30] sm:$0xff] %v3901
        %3934 = vst [vmem:[#allocation5 + $0x38] sm:$0xff] %v3902
        %3935 = vst [vmem:[#allocation5 + $0x40] sm:$0xff] %v3903
        %3936 = vst [vmem:[#allocation5 + $0x48] sm:$0xff] %v3904
        %3937 = vst [vmem:[#allocation5 + $0x50] sm:$0xff] %v3905
        %3938 = vst [vmem:[#allocation5 + $0x58] sm:$0xff] %v3906
        %3939 = vst [vmem:[#allocation5 + $0x60] sm:$0xff] %v3907
        %3940 = vst [vmem:[#allocation5 + $0x68] sm:$0xff] %v3908
        %3941 = vst [vmem:[#allocation5 + $0x70] sm:$0xff] %v3909
        %3942 = vst [vmem:[#allocation5 + $0x78] sm:$0xff] %v3910
        %3943 = vst [vmem:[#allocation5 + $0x80] sm:$0xff] %v3911
        %3944 = vst [vmem:[#allocation5 + $0x88] sm:$0xff] %v3912
        %3945 = vst [vmem:[#allocation5 + $0x90] sm:$0xff] %v3913
        %3946 = vst [vmem:[#allocation5 + $0x98] sm:$0xff] %v3914
        %3947 = vst [vmem:[#allocation5 + $0xa0] sm:$0xff] %v3915
        %3948 = vst [vmem:[#allocation5 + $0xa8] sm:$0xff] %v3916
        %3949 = vst [vmem:[#allocation5 + $0xb0] sm:$0xff] %v3917
        %3950 = vst [vmem:[#allocation5 + $0xb8] sm:$0xff] %v3918
        %3951 = vst [vmem:[#allocation5 + $0xc0] sm:$0xff] %v3919
        %3952 = vst [vmem:[#allocation5 + $0xc8] sm:$0xff] %v3920
        %3953 = vst [vmem:[#allocation5 + $0xd0] sm:$0xff] %v3921
        %3954 = vst [vmem:[#allocation5 + $0xd8] sm:$0xff] %v3922
        %3955 = vst [vmem:[#allocation5 + $0xe0] sm:$0xff] %v3923
        %3956 = vst [vmem:[#allocation5 + $0xe8] sm:$0xff] %v3924
        %3957 = vst [vmem:[#allocation5 + $0xf0] sm:$0xff] %v3925
        %3958 = vst [vmem:[#allocation5 + $0xf8] sm:$0xff] %v3926
        %3959 = vst.msk [vmem:[#allocation3] sm:$0xff] %vm3477, %v2773
        %3960 = vst.msk [vmem:[#allocation3 + $0x8] sm:$0xff] %vm3477, %v2774
        %3961 = vst.msk [vmem:[#allocation3 + $0x10] sm:$0xff] %vm3477, %v2775
        %3962 = vst.msk [vmem:[#allocation3 + $0x18] sm:$0xff] %vm3477, %v2776
        %3963 = vst.msk [vmem:[#allocation3 + $0x20] sm:$0xff] %vm3477, %v2777
        %3964 = vst.msk [vmem:[#allocation3 + $0x28] sm:$0xff] %vm3477, %v2778
        %3965 = vst.msk [vmem:[#allocation3 + $0x30] sm:$0xff] %vm3477, %v2779
        %3966 = vst.msk [vmem:[#allocation3 + $0x38] sm:$0xff] %vm3477, %v2780
        %3967 = vst.msk [vmem:[#allocation3 + $0x40] sm:$0xff] %vm3477, %v2781
        %3968 = vst.msk [vmem:[#allocation3 + $0x48] sm:$0xff] %vm3477, %v2782
        %3969 = vst.msk [vmem:[#allocation3 + $0x50] sm:$0xff] %vm3477, %v2783
        %3970 = vst.msk [vmem:[#allocation3 + $0x58] sm:$0xff] %vm3477, %v2784
        %3971 = vst.msk [vmem:[#allocation3 + $0x60] sm:$0xff] %vm3477, %v2785
        %3972 = vst.msk [vmem:[#allocation3 + $0x68] sm:$0xff] %vm3477, %v2786
        %3973 = vst.msk [vmem:[#allocation3 + $0x70] sm:$0xff] %vm3477, %v2787
        %3974 = vst.msk [vmem:[#allocation3 + $0x78] sm:$0xff] %vm3477, %v2788
        %3975 = vst.msk [vmem:[#allocation3 + $0x80] sm:$0xff] %vm3477, %v2789
        %3976 = vst.msk [vmem:[#allocation3 + $0x88] sm:$0xff] %vm3477, %v2790
        %3977 = vst.msk [vmem:[#allocation3 + $0x90] sm:$0xff] %vm3477, %v2791
        %3978 = vst.msk [vmem:[#allocation3 + $0x98] sm:$0xff] %vm3477, %v2792
        %3979 = vst.msk [vmem:[#allocation3 + $0xa0] sm:$0xff] %vm3477, %v2793
        %3980 = vst.msk [vmem:[#allocation3 + $0xa8] sm:$0xff] %vm3477, %v2794
        %3981 = vst.msk [vmem:[#allocation3 + $0xb0] sm:$0xff] %vm3477, %v2795
        %3982 = vst.msk [vmem:[#allocation3 + $0xb8] sm:$0xff] %vm3477, %v2796
        %3983 = vst.msk [vmem:[#allocation3 + $0xc0] sm:$0xff] %vm3477, %v2797
        %3984 = vst.msk [vmem:[#allocation3 + $0xc8] sm:$0xff] %vm3477, %v2798
        %3985 = vst.msk [vmem:[#allocation3 + $0xd0] sm:$0xff] %vm3477, %v2799
        %3986 = vst.msk [vmem:[#allocation3 + $0xd8] sm:$0xff] %vm3477, %v2800
        %3987 = vst.msk [vmem:[#allocation3 + $0xe0] sm:$0xff] %vm3477, %v2801
        %3988 = vst.msk [vmem:[#allocation3 + $0xe8] sm:$0xff] %vm3477, %v2802
        %3989 = vst.msk [vmem:[#allocation3 + $0xf0] sm:$0xff] %vm3477, %v2803
        %3990 = vst.msk [vmem:[#allocation3 + $0xf8] sm:$0xff] %vm3477, %v2804
        %p3991 = scmp.eq.s32.totalorder %s35, 1
        // Predicated region
        $region73: #{tpu_custom_call.1} parent=47 // pred_check
          %p3992 = pneg %p3991
        $region74: #{tpu_custom_call.1} parent=47 // pred_check_branch
          %3994 = sbr.rel (%p3992) target = $region76
        $region75: #{tpu_custom_call.1} parent=47 // pred_region
          %v3995 = vld [vmem:[#allocation4] sm:$0xff]
          %v3996 = vld [vmem:[#allocation4 + $0x8] sm:$0xff]
          %v3997 = vld [vmem:[#allocation4 + $0x10] sm:$0xff]
          %v3998 = vld [vmem:[#allocation4 + $0x18] sm:$0xff]
          %v3999 = vld [vmem:[#allocation4 + $0x20] sm:$0xff]
          %v4000 = vld [vmem:[#allocation4 + $0x28] sm:$0xff]
          %v4001 = vld [vmem:[#allocation4 + $0x30] sm:$0xff]
          %v4002 = vld [vmem:[#allocation4 + $0x38] sm:$0xff]
          %v4003 = vld [vmem:[#allocation4 + $0x40] sm:$0xff]
          %v4004 = vld [vmem:[#allocation4 + $0x48] sm:$0xff]
          %v4005 = vld [vmem:[#allocation4 + $0x50] sm:$0xff]
          %v4006 = vld [vmem:[#allocation4 + $0x58] sm:$0xff]
          %v4007 = vld [vmem:[#allocation4 + $0x60] sm:$0xff]
          %v4008 = vld [vmem:[#allocation4 + $0x68] sm:$0xff]
          %v4009 = vld [vmem:[#allocation4 + $0x70] sm:$0xff]
          %v4010 = vld [vmem:[#allocation4 + $0x78] sm:$0xff]
          %v4011 = vld [vmem:[#allocation4 + $0x80] sm:$0xff]
          %v4012 = vld [vmem:[#allocation4 + $0x88] sm:$0xff]
          %v4013 = vld [vmem:[#allocation4 + $0x90] sm:$0xff]
          %v4014 = vld [vmem:[#allocation4 + $0x98] sm:$0xff]
          %v4015 = vld [vmem:[#allocation4 + $0xa0] sm:$0xff]
          %v4016 = vld [vmem:[#allocation4 + $0xa8] sm:$0xff]
          %v4017 = vld [vmem:[#allocation4 + $0xb0] sm:$0xff]
          %v4018 = vld [vmem:[#allocation4 + $0xb8] sm:$0xff]
          %v4019 = vld [vmem:[#allocation4 + $0xc0] sm:$0xff]
          %v4020 = vld [vmem:[#allocation4 + $0xc8] sm:$0xff]
          %v4021 = vld [vmem:[#allocation4 + $0xd0] sm:$0xff]
          %v4022 = vld [vmem:[#allocation4 + $0xd8] sm:$0xff]
          %v4023 = vld [vmem:[#allocation4 + $0xe0] sm:$0xff]
          %v4024 = vld [vmem:[#allocation4 + $0xe8] sm:$0xff]
          %v4025 = vld [vmem:[#allocation4 + $0xf0] sm:$0xff]
          %v4026 = vld [vmem:[#allocation4 + $0xf8] sm:$0xff]
          %v4027 = vrcp.pop %v3995
          %v4028 = vrcp.pop %v3996
          %v4029 = vrcp.pop %v3997
          %v4030 = vrcp.pop %v3998
          %v4031 = vrcp.pop %v3999
          %v4032 = vrcp.pop %v4000
          %v4033 = vrcp.pop %v4001
          %v4034 = vrcp.pop %v4002
          %v4035 = vrcp.pop %v4003
          %v4036 = vrcp.pop %v4004
          %v4037 = vrcp.pop %v4005
          %v4038 = vrcp.pop %v4006
          %v4039 = vrcp.pop %v4007
          %v4040 = vrcp.pop %v4008
          %v4041 = vrcp.pop %v4009
          %v4042 = vrcp.pop %v4010
          %v4043 = vrcp.pop %v4011
          %v4044 = vrcp.pop %v4012
          %v4045 = vrcp.pop %v4013
          %v4046 = vrcp.pop %v4014
          %v4047 = vrcp.pop %v4015
          %v4048 = vrcp.pop %v4016
          %v4049 = vrcp.pop %v4017
          %v4050 = vrcp.pop %v4018
          %v4051 = vrcp.pop %v4019
          %v4052 = vrcp.pop %v4020
          %v4053 = vrcp.pop %v4021
          %v4054 = vrcp.pop %v4022
          %v4055 = vrcp.pop %v4023
          %v4056 = vrcp.pop %v4024
          %v4057 = vrcp.pop %v4025
          %v4058 = vrcp.pop %v4026
          %v4059 = vld [vmem:[#allocation5] sm:$0xff]
          %v4060 = vld [vmem:[#allocation5 + $0x8] sm:$0xff]
          %v4061 = vld [vmem:[#allocation5 + $0x10] sm:$0xff]
          %v4062 = vld [vmem:[#allocation5 + $0x18] sm:$0xff]
          %v4063 = vld [vmem:[#allocation5 + $0x20] sm:$0xff]
          %v4064 = vld [vmem:[#allocation5 + $0x28] sm:$0xff]
          %v4065 = vld [vmem:[#allocation5 + $0x30] sm:$0xff]
          %v4066 = vld [vmem:[#allocation5 + $0x38] sm:$0xff]
          %v4067 = vld [vmem:[#allocation5 + $0x40] sm:$0xff]
          %v4068 = vld [vmem:[#allocation5 + $0x48] sm:$0xff]
          %v4069 = vld [vmem:[#allocation5 + $0x50] sm:$0xff]
          %v4070 = vld [vmem:[#allocation5 + $0x58] sm:$0xff]
          %v4071 = vld [vmem:[#allocation5 + $0x60] sm:$0xff]
          %v4072 = vld [vmem:[#allocation5 + $0x68] sm:$0xff]
          %v4073 = vld [vmem:[#allocation5 + $0x70] sm:$0xff]
          %v4074 = vld [vmem:[#allocation5 + $0x78] sm:$0xff]
          %v4075 = vld [vmem:[#allocation5 + $0x80] sm:$0xff]
          %v4076 = vld [vmem:[#allocation5 + $0x88] sm:$0xff]
          %v4077 = vld [vmem:[#allocation5 + $0x90] sm:$0xff]
          %v4078 = vld [vmem:[#allocation5 + $0x98] sm:$0xff]
          %v4079 = vld [vmem:[#allocation5 + $0xa0] sm:$0xff]
          %v4080 = vld [vmem:[#allocation5 + $0xa8] sm:$0xff]
          %v4081 = vld [vmem:[#allocation5 + $0xb0] sm:$0xff]
          %v4082 = vld [vmem:[#allocation5 + $0xb8] sm:$0xff]
          %v4083 = vld [vmem:[#allocation5 + $0xc0] sm:$0xff]
          %v4084 = vld [vmem:[#allocation5 + $0xc8] sm:$0xff]
          %v4085 = vld [vmem:[#allocation5 + $0xd0] sm:$0xff]
          %v4086 = vld [vmem:[#allocation5 + $0xd8] sm:$0xff]
          %v4087 = vld [vmem:[#allocation5 + $0xe0] sm:$0xff]
          %v4088 = vld [vmem:[#allocation5 + $0xe8] sm:$0xff]
          %v4089 = vld [vmem:[#allocation5 + $0xf0] sm:$0xff]
          %v4090 = vld [vmem:[#allocation5 + $0xf8] sm:$0xff]
          %4092 = vset.pattern.permute.xlu0 0
          %4093 = vperm.xlu0 %4092, %v4027
          %v4094 = vpop.permute.xlu0 %4093
          %4097 = vset.pattern.permute.xlu0 0
          %4098 = vperm.xlu0 %4097, %v4028
          %v4099 = vpop.permute.xlu0 %4098
          %4102 = vset.pattern.permute.xlu0 0
          %4103 = vperm.xlu0 %4102, %v4029
          %v4104 = vpop.permute.xlu0 %4103
          %4107 = vset.pattern.permute.xlu0 0
          %4108 = vperm.xlu0 %4107, %v4030
          %v4109 = vpop.permute.xlu0 %4108
          %4112 = vset.pattern.permute.xlu0 0
          %4113 = vperm.xlu0 %4112, %v4031
          %v4114 = vpop.permute.xlu0 %4113
          %4117 = vset.pattern.permute.xlu0 0
          %4118 = vperm.xlu0 %4117, %v4032
          %v4119 = vpop.permute.xlu0 %4118
          %4122 = vset.pattern.permute.xlu0 0
          %4123 = vperm.xlu0 %4122, %v4033
          %v4124 = vpop.permute.xlu0 %4123
          %4127 = vset.pattern.permute.xlu0 0
          %4128 = vperm.xlu0 %4127, %v4034
          %v4129 = vpop.permute.xlu0 %4128
          %4132 = vset.pattern.permute.xlu0 0
          %4133 = vperm.xlu0 %4132, %v4035
          %v4134 = vpop.permute.xlu0 %4133
          %4137 = vset.pattern.permute.xlu0 0
          %4138 = vperm.xlu0 %4137, %v4036
          %v4139 = vpop.permute.xlu0 %4138
          %4142 = vset.pattern.permute.xlu0 0
          %4143 = vperm.xlu0 %4142, %v4037
          %v4144 = vpop.permute.xlu0 %4143
          %4147 = vset.pattern.permute.xlu0 0
          %4148 = vperm.xlu0 %4147, %v4038
          %v4149 = vpop.permute.xlu0 %4148
          %4152 = vset.pattern.permute.xlu0 0
          %4153 = vperm.xlu0 %4152, %v4039
          %v4154 = vpop.permute.xlu0 %4153
          %4157 = vset.pattern.permute.xlu0 0
          %4158 = vperm.xlu0 %4157, %v4040
          %v4159 = vpop.permute.xlu0 %4158
          %4162 = vset.pattern.permute.xlu0 0
          %4163 = vperm.xlu0 %4162, %v4041
          %v4164 = vpop.permute.xlu0 %4163
          %4167 = vset.pattern.permute.xlu0 0
          %4168 = vperm.xlu0 %4167, %v4042
          %v4169 = vpop.permute.xlu0 %4168
          %4172 = vset.pattern.permute.xlu0 0
          %4173 = vperm.xlu0 %4172, %v4043
          %v4174 = vpop.permute.xlu0 %4173
          %4177 = vset.pattern.permute.xlu0 0
          %4178 = vperm.xlu0 %4177, %v4044
          %v4179 = vpop.permute.xlu0 %4178
          %4182 = vset.pattern.permute.xlu0 0
          %4183 = vperm.xlu0 %4182, %v4045
          %v4184 = vpop.permute.xlu0 %4183
          %4187 = vset.pattern.permute.xlu0 0
          %4188 = vperm.xlu0 %4187, %v4046
          %v4189 = vpop.permute.xlu0 %4188
          %4192 = vset.pattern.permute.xlu0 0
          %4193 = vperm.xlu0 %4192, %v4047
          %v4194 = vpop.permute.xlu0 %4193
          %4197 = vset.pattern.permute.xlu0 0
          %4198 = vperm.xlu0 %4197, %v4048
          %v4199 = vpop.permute.xlu0 %4198
          %4202 = vset.pattern.permute.xlu0 0
          %4203 = vperm.xlu0 %4202, %v4049
          %v4204 = vpop.permute.xlu0 %4203
          %4207 = vset.pattern.permute.xlu0 0
          %4208 = vperm.xlu0 %4207, %v4050
          %v4209 = vpop.permute.xlu0 %4208
          %4212 = vset.pattern.permute.xlu0 0
          %4213 = vperm.xlu0 %4212, %v4051
          %v4214 = vpop.permute.xlu0 %4213
          %4217 = vset.pattern.permute.xlu0 0
          %4218 = vperm.xlu0 %4217, %v4052
          %v4219 = vpop.permute.xlu0 %4218
          %4222 = vset.pattern.permute.xlu0 0
          %4223 = vperm.xlu0 %4222, %v4053
          %v4224 = vpop.permute.xlu0 %4223
          %4227 = vset.pattern.permute.xlu0 0
          %4228 = vperm.xlu0 %4227, %v4054
          %v4229 = vpop.permute.xlu0 %4228
          %4232 = vset.pattern.permute.xlu0 0
          %4233 = vperm.xlu0 %4232, %v4055
          %v4234 = vpop.permute.xlu0 %4233
          %4237 = vset.pattern.permute.xlu0 0
          %4238 = vperm.xlu0 %4237, %v4056
          %v4239 = vpop.permute.xlu0 %4238
          %4242 = vset.pattern.permute.xlu0 0
          %4243 = vperm.xlu0 %4242, %v4057
          %v4244 = vpop.permute.xlu0 %4243
          %4247 = vset.pattern.permute.xlu0 0
          %4248 = vperm.xlu0 %4247, %v4058
          %v4249 = vpop.permute.xlu0 %4248
          %v4251 = vmul.f32 %v4059, %v4094
          %v4252 = vmul.f32 %v4060, %v4099
          %v4253 = vmul.f32 %v4061, %v4104
          %v4254 = vmul.f32 %v4062, %v4109
          %v4255 = vmul.f32 %v4063, %v4114
          %v4256 = vmul.f32 %v4064, %v4119
          %v4257 = vmul.f32 %v4065, %v4124
          %v4258 = vmul.f32 %v4066, %v4129
          %v4259 = vmul.f32 %v4067, %v4134
          %v4260 = vmul.f32 %v4068, %v4139
          %v4261 = vmul.f32 %v4069, %v4144
          %v4262 = vmul.f32 %v4070, %v4149
          %v4263 = vmul.f32 %v4071, %v4154
          %v4264 = vmul.f32 %v4072, %v4159
          %v4265 = vmul.f32 %v4073, %v4164
          %v4266 = vmul.f32 %v4074, %v4169
          %v4267 = vmul.f32 %v4075, %v4174
          %v4268 = vmul.f32 %v4076, %v4179
          %v4269 = vmul.f32 %v4077, %v4184
          %v4270 = vmul.f32 %v4078, %v4189
          %v4271 = vmul.f32 %v4079, %v4194
          %v4272 = vmul.f32 %v4080, %v4199
          %v4273 = vmul.f32 %v4081, %v4204
          %v4274 = vmul.f32 %v4082, %v4209
          %v4275 = vmul.f32 %v4083, %v4214
          %v4276 = vmul.f32 %v4084, %v4219
          %v4277 = vmul.f32 %v4085, %v4224
          %v4278 = vmul.f32 %v4086, %v4229
          %v4279 = vmul.f32 %v4087, %v4234
          %v4280 = vmul.f32 %v4088, %v4239
          %v4281 = vmul.f32 %v4089, %v4244
          %v4282 = vmul.f32 %v4090, %v4249
          %4283 = vst [vmem:[%s400] sm:$0xff] %v4251
          %4284 = vst [vmem:[%s400 + $0x8] sm:$0xff] %v4252
          %4285 = vst [vmem:[%s400 + $0x10] sm:$0xff] %v4253
          %4286 = vst [vmem:[%s400 + $0x18] sm:$0xff] %v4254
          %4287 = vst [vmem:[%s400 + $0x20] sm:$0xff] %v4255
          %4288 = vst [vmem:[%s400 + $0x28] sm:$0xff] %v4256
          %4289 = vst [vmem:[%s400 + $0x30] sm:$0xff] %v4257
          %4290 = vst [vmem:[%s400 + $0x38] sm:$0xff] %v4258
          %4291 = vst [vmem:[%s400 + $0x40] sm:$0xff] %v4259
          %4292 = vst [vmem:[%s400 + $0x48] sm:$0xff] %v4260
          %4293 = vst [vmem:[%s400 + $0x50] sm:$0xff] %v4261
          %4294 = vst [vmem:[%s400 + $0x58] sm:$0xff] %v4262
          %4295 = vst [vmem:[%s400 + $0x60] sm:$0xff] %v4263
          %4296 = vst [vmem:[%s400 + $0x68] sm:$0xff] %v4264
          %4297 = vst [vmem:[%s400 + $0x70] sm:$0xff] %v4265
          %4298 = vst [vmem:[%s400 + $0x78] sm:$0xff] %v4266
          %4299 = vst [vmem:[%s400 + $0x80] sm:$0xff] %v4267
          %4300 = vst [vmem:[%s400 + $0x88] sm:$0xff] %v4268
          %4301 = vst [vmem:[%s400 + $0x90] sm:$0xff] %v4269
          %4302 = vst [vmem:[%s400 + $0x98] sm:$0xff] %v4270
          %4303 = vst [vmem:[%s400 + $0xa0] sm:$0xff] %v4271
          %4304 = vst [vmem:[%s400 + $0xa8] sm:$0xff] %v4272
          %4305 = vst [vmem:[%s400 + $0xb0] sm:$0xff] %v4273
          %4306 = vst [vmem:[%s400 + $0xb8] sm:$0xff] %v4274
          %4307 = vst [vmem:[%s400 + $0xc0] sm:$0xff] %v4275
          %4308 = vst [vmem:[%s400 + $0xc8] sm:$0xff] %v4276
          %4309 = vst [vmem:[%s400 + $0xd0] sm:$0xff] %v4277
          %4310 = vst [vmem:[%s400 + $0xd8] sm:$0xff] %v4278
          %4311 = vst [vmem:[%s400 + $0xe0] sm:$0xff] %v4279
          %4312 = vst [vmem:[%s400 + $0xe8] sm:$0xff] %v4280
          %4313 = vst [vmem:[%s400 + $0xf0] sm:$0xff] %v4281
          %4314 = vst [vmem:[%s400 + $0xf8] sm:$0xff] %v4282
        $region76: #{tpu_custom_call.1} parent=47 // pred_fallthru
          _
        %s4315 = sand.u32 %s222, 1
        %s4316 = scalar_lea.sflag [#allocation9], %s4315
        %s4317 = sand.u32 %s222, 1
        %s4318 = smul.addr %s4317, 256
        %s4319 = scalar_lea.vmem [#allocation15], %s4318
        // Predicated region
        $region77: #{tpu_custom_call.1} parent=47 // pred_check
          %p4320 = pneg %p232
        $region78: #{tpu_custom_call.1} parent=47 // pred_check_branch
          %4322 = sbr.rel (%p4320) target = $region80
        $region79: #{tpu_custom_call.1} parent=47 // pred_region
          %s4323 = smul.u32 32, %s34
          %s4325 = ssub.s32 4096, 4096
          %4326 = vsyncadd %s4316, %s4325
          %s4327 = smul.addr %s33, 64
          %s4328 = sadd.s32 %s4323, %s4327
          %s4329 = smul.addr %s4328, 128
          %s4330 = scalar_lea.hbm %s7, %s4329
          %s4331 = sshll.u32 %s4319, 4
          %s4332 = int_to_ptr.vmem [resolvable:$true] %s4331
          %4337 = dma.vmem_to_hbm [thread:$0]  %s4332, 4096, %s4330, %s4316, 128, 128, 8
        $region80: #{tpu_custom_call.1} parent=47 // pred_fallthru
          _
      $region48: #{tpu_custom_call.1} parent=5 // pred_fallthru
        _
      %p4338 = scmp.le.s32.totalorder 2, %s23
      // Predicated region
      $region81: #{tpu_custom_call.1} parent=5 // pred_check
        %p4339 = pneg %p4338
      $region82: #{tpu_custom_call.1} parent=5 // pred_check_branch
        %4341 = sbr.rel (%p4339) target = $region84
      $region83: #{tpu_custom_call.1} parent=5 // pred_region
        %s4342 = ssub.s32 %s23, 2
        // Predicated region
        $region85: #{tpu_custom_call.1} parent=83 // pred_check
          %p4343 = pneg %p238
        $region86: #{tpu_custom_call.1} parent=83 // pred_check_branch
          %4345 = sbr.rel (%p4343) target = $region88
        $region87: #{tpu_custom_call.1} parent=83 // pred_region
          %s4346 = sand.u32 %s223, 1
          %s4347 = scalar_lea.sflag [#allocation9], %s4346
          %s4348 = sand.u32 %s223, 1
          %s4349 = smul.addr %s4348, 256
          %s4350 = scalar_lea.vmem [#allocation15], %s4349
          %4351 = dma.done %s4347, 4096
        $region88: #{tpu_custom_call.1} parent=83 // pred_fallthru
          _
      $region84: #{tpu_custom_call.1} parent=5 // pred_fallthru
        _
    $region6: #{tpu_custom_call.1} parent=1 // loop_footer
      %s27 = sadd.s32 1, %s23
    $region7: #{tpu_custom_call.1} parent=1 // loop_footer_branch
      %22 = sbr.rel target = $region3
    $region8: #{tpu_custom_call.1} parent=1 // loop_exit
      _
    %4352 = vsyncpa [#allocation8], 1
    %s4353 = scalar_lea.sflag [#allocation8], 1
    %4354 = vsyncpa %s4353, 1
    %4355 = vsyncpa [#allocation11], 1
    %s4356 = scalar_lea.sflag [#allocation11], 1
    %4357 = vsyncpa %s4356, 1
    %4358 = vsyncpa [#allocation14], 1
    %4359 = vsyncpa [#allocation9], 1
    %s4360 = scalar_lea.sflag [#allocation9], 1
    %4361 = vsyncpa %s4360, 1

</llo_original>
